<compile_context>
chip_gen: v6e
topology: v6e:2x2x1
jax: 0.10.0
libtpu: 0.0.40
codegen_flags: <defaults>
</compile_context>

<pallas_src>
import jax
import jax.numpy as jnp
from jax import lax
from jax.experimental import pallas as pl
from jax.experimental.pallas import tpu as pltpu

LPAD = 8  # left halo pad along W: keeps interior scratch stores sublane-aligned


# ---------------------------------------------------------------------------
# Fused kernel: conv1+bn1+relu  ->  conv2+bn2 + residual + relu   (one image)
# ---------------------------------------------------------------------------
def fused_basic_block_kernel(x_ref, w1_ref, w2_ref, s1_ref, b1_ref,
                             s2_ref, b2_ref, out_ref, xpad, mid):
    # x_ref : (1, H, W, C)        bf16 input tile (one image)
    # w1_ref: (9*C, P)            bf16 im2col conv1 weight, row = (ky*3+kx)*C + cin
    # w2_ref: (9*P, P)            bf16 im2col conv2 weight
    # s*/b* : (1, P)              f32 folded BatchNorm scale / bias
    # out_ref:(1, H, W, P)        f32 output tile (lane-dense: P == 128)
    # xpad  : (H+2, W+LPAD+1, C)  f32 VMEM scratch: zero halo + input interior
    # mid   : (H+2, W+LPAD+1, P)  f32 VMEM scratch: padded stage-1 activation
    #                             (never written to HBM)
    H, W, P = out_ref.shape[1], out_ref.shape[2], out_ref.shape[3]
    C = x_ref.shape[3]

    # In-kernel halo handling.  Zeroing every grid step keeps each core's
    # private scratch correct under megacore "parallel" splitting; it is a
    # handful of aligned vreg stores (cheap).
    xpad[...] = jnp.zeros_like(xpad)
    mid[...] = jnp.zeros_like(mid)

    x = x_ref[0]                                              # (H, W, C) bf16
    # Interior write: W-offset LPAD=8 -> sublane-aligned, unmasked stores.
    xpad[1:H + 1, LPAD:LPAD + W, :] = x.astype(xpad.dtype)

    def conv3x3_im2col(pad_ref, w_ref, cin):
        # Gather the 9 shifted windows into one (H*W, 9*cin) bf16 tile and do
        # a single lane-dense MXU matmul with f32 accumulation.
        cols = []
        for dy in range(3):
            for dx in range(3):
                w0 = LPAD - 1 + dx                            # 7, 8, 9
                win = pad_ref[dy:dy + H, w0:w0 + W, :]        # (H, W, cin) f32
                cols.append(win.astype(jnp.bfloat16).reshape(H * W, cin))
        patches = jnp.concatenate(cols, axis=-1)              # (H*W, 9*cin)
        return jnp.dot(patches, w_ref[...],
                       preferred_element_type=jnp.float32)    # (H*W, P) f32

    # ---- stage 1: conv1 + bn1 + relu (result stays resident in VMEM) ------
    y1 = conv3x3_im2col(xpad, w1_ref, C)
    y1 = jnp.maximum(y1 * s1_ref[...] + b1_ref[...], 0.0)
    mid[1:H + 1, LPAD:LPAD + W, :] = y1.reshape(H, W, P)      # aligned store

    # ---- stage 2: conv2 + bn2 + residual add + relu ------------------------
    y2 = conv3x3_im2col(mid, w2_ref, P)
    y2 = y2 * s2_ref[...] + b2_ref[...]
    y2 = y2 + x.reshape(H * W, C).astype(jnp.float32)         # identity add
    y2 = jnp.maximum(y2, 0.0)
    out_ref[0, :, :, :] = y2.reshape(H, W, P).astype(out_ref.dtype)


# ---------------------------------------------------------------------------
# Wrapper
# ---------------------------------------------------------------------------
def _im2col_weight(w_oihw):
    # PyTorch (Cout, Cin, 3, 3) -> (9*Cin, Cout), row = (ky*3 + kx)*Cin + cin.
    cout, cin, kh, kw = w_oihw.shape
    w = jnp.transpose(w_oihw, (2, 3, 1, 0)).reshape(kh * kw * cin, cout)
    return w.astype(jnp.bfloat16)


def _fold_bn(gamma, beta, mean, var, eps=1e-5):
    scale = gamma / jnp.sqrt(var + eps)
    bias = beta - mean * scale
    return (scale.reshape(1, -1).astype(jnp.float32),
            bias.reshape(1, -1).astype(jnp.float32))


def basic_block_forward_nhwc(x_nhwc, params):
    """Fused BasicBlock forward in NHWC: (N, H, W, C) -> (N, H, W, P)."""
    N, H, W, C = x_nhwc.shape
    w1 = _im2col_weight(params["conv1_w"])                    # (9*C, P) bf16
    w2 = _im2col_weight(params["conv2_w"])                    # (9*P, P) bf16
    P = w1.shape[1]
    assert P == C, "identity add requires planes == inplanes (no downsample)"

    s1, b1 = _fold_bn(params["bn1_gamma"], params["bn1_beta"],
                      params["bn1_mean"], params["bn1_var"])
    s2, b2 = _fold_bn(params["bn2_gamma"], params["bn2_beta"],
                      params["bn2_mean"], params["bn2_var"])

    x_bf16 = x_nhwc.astype(jnp.bfloat16)      # bf16 on the HBM/MXU path

    full2 = lambda n: (0, 0)
    wpad = W + LPAD + 1
    return pl.pallas_call(
        fused_basic_block_kernel,
        out_shape=jax.ShapeDtypeStruct((N, H, W, P), jnp.float32),
        grid=(N,),
        in_specs=[
            pl.BlockSpec((1, H, W, C), lambda n: (n, 0, 0, 0)),
            pl.BlockSpec((9 * C, P), full2),
            pl.BlockSpec((9 * P, P), full2),
            pl.BlockSpec((1, P), full2),
            pl.BlockSpec((1, P), full2),
            pl.BlockSpec((1, P), full2),
            pl.BlockSpec((1, P), full2),
        ],
        out_specs=pl.BlockSpec((1, H, W, P), lambda n: (n, 0, 0, 0)),
        scratch_shapes=[
            pltpu.VMEM((H + 2, wpad, C), jnp.float32),   # padded input
            pltpu.VMEM((H + 2, wpad, P), jnp.float32),   # padded stage-1 act
        ],
        compiler_params=pltpu.CompilerParams(
            dimension_semantics=("parallel",)),
    )(x_bf16, w1, w2, s1, b1, s2, b2)


def basic_block_forward(x_nchw, params):
    """NCHW wrapper matching the PyTorch module interface.

    If the surrounding model can stay NHWC, call basic_block_forward_nhwc
    directly and drop these two layout transposes (each is a full HBM pass).
    """
    x_nhwc = jnp.transpose(x_nchw, (0, 2, 3, 1))
    out_nhwc = basic_block_forward_nhwc(x_nhwc, params)
    return jnp.transpose(out_nhwc, (0, 3, 1, 2))


# ---------------------------------------------------------------------------
# Pure-JAX reference (mirrors the PyTorch forward, eval-mode BN, f32)
# ---------------------------------------------------------------------------
def _ref_forward(x_nchw, params, eps=1e-5):
    def conv3x3(x, w):
        return lax.conv_general_dilated(
            x, w, window_strides=(1, 1), padding=((1, 1), (1, 1)),
            dimension_numbers=('NCHW', 'OIHW', 'NCHW'))

    def bn(x, g, b, m, v):
        g = g[None, :, None, None]; b = b[None, :, None, None]
        m = m[None, :, None, None]; v = v[None, :, None, None]
        return (x - m) / jnp.sqrt(v + eps) * g + b

    out = conv3x3(x_nchw, params["conv1_w"])
    out = bn(out, params["bn1_gamma"], params["bn1_beta"],
             params["bn1_mean"], params["bn1_var"])
    out = jnp.maximum(out, 0.0)
    out = conv3x3(out, params["conv2_w"])
    out = bn(out, params["bn2_gamma"], params["bn2_beta"],
             params["bn2_mean"], params["bn2_var"])
    out = out + x_nchw
    return jnp.maximum(out, 0.0)


if __name__ == "__main__":
    key = jax.random.PRNGKey(0)
    # ResNet-like small shapes; C = 128 keeps every tile lane-dense.
    N, C, H, W = 2, 128, 16, 16
    P = C

    ks = jax.random.split(key, 9)
    params = {
        "conv1_w":   0.05 * jax.random.normal(ks[0], (P, C, 3, 3), jnp.float32),
        "conv2_w":   0.05 * jax.random.normal(ks[1], (P, P, 3, 3), jnp.float32),
        "bn1_gamma": 1.0 + 0.1 * jax.random.normal(ks[2], (P,), jnp.float32),
        "bn1_beta":  0.1 * jax.random.normal(ks[3], (P,), jnp.float32),
        "bn1_mean":  0.05 * jax.random.normal(ks[4], (P,), jnp.float32),
        "bn1_var":   jnp.abs(1.0 + 0.1 * jax.random.normal(ks[5], (P,), jnp.float32)),
        "bn2_gamma": 1.0 + 0.1 * jax.random.normal(ks[6], (P,), jnp.float32),
        "bn2_beta":  0.1 * jax.random.normal(ks[7], (P,), jnp.float32),
        "bn2_mean":  jnp.zeros((P,), jnp.float32),
        "bn2_var":   jnp.ones((P,), jnp.float32),
    }

    x = jax.random.normal(ks[8], (N, C, H, W), jnp.float32)

    fwd = jax.jit(lambda xx: basic_block_forward(xx, params))
    out = jax.block_until_ready(fwd(x))

    ref = _ref_forward(x, params)
    assert out.shape == (N, C, H, W)
    # bf16 activations/weights on the MXU path => looser tolerance than f32.
    assert jnp.allclose(out, ref, atol=0.15, rtol=0.05), \
        f"max abs err {jnp.max(jnp.abs(out - ref))}"

    print("KERNEL_OK")
</pallas_src>

<mosaic_0001>
module attributes {stable_mosaic.version = 11 : i64} {
  func.func @fused_basic_block_kernel(%arg0: i32, %arg1: memref<1x16x16x128xbf16, #tpu.memory_space<vmem>>, %arg2: memref<1152x128xbf16, #tpu.memory_space<vmem>>, %arg3: memref<1152x128xbf16, #tpu.memory_space<vmem>>, %arg4: memref<1x128xf32, #tpu.memory_space<vmem>>, %arg5: memref<1x128xf32, #tpu.memory_space<vmem>>, %arg6: memref<1x128xf32, #tpu.memory_space<vmem>>, %arg7: memref<1x128xf32, #tpu.memory_space<vmem>>, %arg8: memref<1x16x16x128xf32, #tpu.memory_space<vmem>>, %arg9: memref<18x25x128xf32, #tpu.memory_space<vmem>>, %arg10: memref<18x25x128xf32, #tpu.memory_space<vmem>>) attributes {dimension_semantics = [#tpu.dimension_semantics<parallel>], iteration_bounds = array<i64: 2>, scalar_prefetch = 0 : i64, scratch_operands = 2 : i64, tpu.core_type = #tpu.core_type<tc>, window_params = [{transform_indices = @transform_0, window_bounds = array<i64: 1, 16, 16, 128>}, {pipeline_mode = #tpu.pipeline_mode<synchronous>, transform_indices = @transform_1, window_bounds = array<i64: 1152, 128>}, {pipeline_mode = #tpu.pipeline_mode<synchronous>, transform_indices = @transform_2, window_bounds = array<i64: 1152, 128>}, {pipeline_mode = #tpu.pipeline_mode<synchronous>, transform_indices = @transform_3, window_bounds = array<i64: 1, 128>}, {pipeline_mode = #tpu.pipeline_mode<synchronous>, transform_indices = @transform_4, window_bounds = array<i64: 1, 128>}, {pipeline_mode = #tpu.pipeline_mode<synchronous>, transform_indices = @transform_5, window_bounds = array<i64: 1, 128>}, {pipeline_mode = #tpu.pipeline_mode<synchronous>, transform_indices = @transform_6, window_bounds = array<i64: 1, 128>}, {transform_indices = @transform_7, window_bounds = array<i64: 1, 16, 16, 128>}]} {
    %cst = arith.constant 0.000000e+00 : f32
    %0 = vector.broadcast %cst : f32 to vector<18x25x128xf32>
    %c0 = arith.constant 0 : index
    %c0_0 = arith.constant 0 : index
    %c0_1 = arith.constant 0 : index
    %1 = vector.load %arg9[%c0, %c0_0, %c0_1] : memref<18x25x128xf32, #tpu.memory_space<vmem>>, vector<18x25x128xf32>
    tpu.vector_store %arg9[%c0, %c0_0, %c0_1], %0 {strides = array<i32>} : memref<18x25x128xf32, #tpu.memory_space<vmem>>, vector<18x25x128xf32>,
    %cst_2 = arith.constant 0.000000e+00 : f32
    %2 = vector.broadcast %cst_2 : f32 to vector<18x25x128xf32>
    %c0_3 = arith.constant 0 : index
    %c0_4 = arith.constant 0 : index
    %c0_5 = arith.constant 0 : index
    %3 = vector.load %arg10[%c0_3, %c0_4, %c0_5] : memref<18x25x128xf32, #tpu.memory_space<vmem>>, vector<18x25x128xf32>
    tpu.vector_store %arg10[%c0_3, %c0_4, %c0_5], %2 {strides = array<i32>} : memref<18x25x128xf32, #tpu.memory_space<vmem>>, vector<18x25x128xf32>,
    %c0_6 = arith.constant 0 : index
    %c0_7 = arith.constant 0 : index
    %c0_8 = arith.constant 0 : index
    %c0_9 = arith.constant 0 : index
    %4 = vector.load %arg1[%c0_6, %c0_7, %c0_8, %c0_9] : memref<1x16x16x128xbf16, #tpu.memory_space<vmem>>, vector<1x16x16x128xbf16>
    %5 = vector.shape_cast %4 : vector<1x16x16x128xbf16> to vector<16x16x128xbf16>
    %6 = arith.extf %5 : vector<16x16x128xbf16> to vector<16x16x128xf32>
    %c1 = arith.constant 1 : index
    %c8 = arith.constant 8 : index
    %c0_10 = arith.constant 0 : index
    %7 = vector.load %arg9[%c1, %c8, %c0_10] : memref<18x25x128xf32, #tpu.memory_space<vmem>>, vector<16x16x128xf32>
    tpu.vector_store %arg9[%c1, %c8, %c0_10], %6 {strides = array<i32>} : memref<18x25x128xf32, #tpu.memory_space<vmem>>, vector<16x16x128xf32>,
    %c0_11 = arith.constant 0 : index
    %c7 = arith.constant 7 : index
    %c0_12 = arith.constant 0 : index
    %8 = vector.load %arg9[%c0_11, %c7, %c0_12] : memref<18x25x128xf32, #tpu.memory_space<vmem>>, vector<16x16x128xf32>
    %9 = arith.truncf %8 : vector<16x16x128xf32> to vector<16x16x128xbf16>
    %10 = vector.shape_cast %9 : vector<16x16x128xbf16> to vector<256x128xbf16>
    %c0_13 = arith.constant 0 : index
    %c8_14 = arith.constant 8 : index
    %c0_15 = arith.constant 0 : index
    %11 = vector.load %arg9[%c0_13, %c8_14, %c0_15] : memref<18x25x128xf32, #tpu.memory_space<vmem>>, vector<16x16x128xf32>
    %12 = arith.truncf %11 : vector<16x16x128xf32> to vector<16x16x128xbf16>
    %13 = vector.shape_cast %12 : vector<16x16x128xbf16> to vector<256x128xbf16>
    %c0_16 = arith.constant 0 : index
    %c9 = arith.constant 9 : index
    %c0_17 = arith.constant 0 : index
    %14 = vector.load %arg9[%c0_16, %c9, %c0_17] : memref<18x25x128xf32, #tpu.memory_space<vmem>>, vector<16x16x128xf32>
    %15 = arith.truncf %14 : vector<16x16x128xf32> to vector<16x16x128xbf16>
    %16 = vector.shape_cast %15 : vector<16x16x128xbf16> to vector<256x128xbf16>
    %c1_18 = arith.constant 1 : index
    %c7_19 = arith.constant 7 : index
    %c0_20 = arith.constant 0 : index
    %17 = vector.load %arg9[%c1_18, %c7_19, %c0_20] : memref<18x25x128xf32, #tpu.memory_space<vmem>>, vector<16x16x128xf32>
    %18 = arith.truncf %17 : vector<16x16x128xf32> to vector<16x16x128xbf16>
    %19 = vector.shape_cast %18 : vector<16x16x128xbf16> to vector<256x128xbf16>
    %c1_21 = arith.constant 1 : index
    %c8_22 = arith.constant 8 : index
    %c0_23 = arith.constant 0 : index
    %20 = vector.load %arg9[%c1_21, %c8_22, %c0_23] : memref<18x25x128xf32, #tpu.memory_space<vmem>>, vector<16x16x128xf32>
    %21 = arith.truncf %20 : vector<16x16x128xf32> to vector<16x16x128xbf16>
    %22 = vector.shape_cast %21 : vector<16x16x128xbf16> to vector<256x128xbf16>
    %c1_24 = arith.constant 1 : index
    %c9_25 = arith.constant 9 : index
    %c0_26 = arith.constant 0 : index
    %23 = vector.load %arg9[%c1_24, %c9_25, %c0_26] : memref<18x25x128xf32, #tpu.memory_space<vmem>>, vector<16x16x128xf32>
    %24 = arith.truncf %23 : vector<16x16x128xf32> to vector<16x16x128xbf16>
    %25 = vector.shape_cast %24 : vector<16x16x128xbf16> to vector<256x128xbf16>
    %c2 = arith.constant 2 : index
    %c7_27 = arith.constant 7 : index
    %c0_28 = arith.constant 0 : index
    %26 = vector.load %arg9[%c2, %c7_27, %c0_28] : memref<18x25x128xf32, #tpu.memory_space<vmem>>, vector<16x16x128xf32>
    %27 = arith.truncf %26 : vector<16x16x128xf32> to vector<16x16x128xbf16>
    %28 = vector.shape_cast %27 : vector<16x16x128xbf16> to vector<256x128xbf16>
    %c2_29 = arith.constant 2 : index
    %c8_30 = arith.constant 8 : index
    %c0_31 = arith.constant 0 : index
    %29 = vector.load %arg9[%c2_29, %c8_30, %c0_31] : memref<18x25x128xf32, #tpu.memory_space<vmem>>, vector<16x16x128xf32>
    %30 = arith.truncf %29 : vector<16x16x128xf32> to vector<16x16x128xbf16>
    %31 = vector.shape_cast %30 : vector<16x16x128xbf16> to vector<256x128xbf16>
    %c2_32 = arith.constant 2 : index
    %c9_33 = arith.constant 9 : index
    %c0_34 = arith.constant 0 : index
    %32 = vector.load %arg9[%c2_32, %c9_33, %c0_34] : memref<18x25x128xf32, #tpu.memory_space<vmem>>, vector<16x16x128xf32>
    %33 = arith.truncf %32 : vector<16x16x128xf32> to vector<16x16x128xbf16>
    %34 = vector.shape_cast %33 : vector<16x16x128xbf16> to vector<256x128xbf16>
    %35 = tpu.concatenate %10, %13, %16, %19, %22, %25, %28, %31, %34 in 1 : vector<256x128xbf16>, vector<256x128xbf16>, vector<256x128xbf16>, vector<256x128xbf16>, vector<256x128xbf16>, vector<256x128xbf16>, vector<256x128xbf16>, vector<256x128xbf16>, vector<256x128xbf16> -> vector<256x1152xbf16>
    %c0_35 = arith.constant 0 : index
    %c0_36 = arith.constant 0 : index
    %36 = vector.load %arg2[%c0_35, %c0_36] : memref<1152x128xbf16, #tpu.memory_space<vmem>>, vector<1152x128xbf16>
    %cst_37 = arith.constant dense<0.000000e+00> : vector<256x128xf32>
    %37 = tpu.matmul %35, %36, %cst_37 {dimension_numbers = #tpu.dot_dimension_numbers<[1], [0], [0], [1], [0, 0, 1, 1], [], []>} : vector<256x1152xbf16>, vector<1152x128xbf16>, vector<256x128xf32> -> vector<256x128xf32>
    %c0_38 = arith.constant 0 : index
    %c0_39 = arith.constant 0 : index
    %38 = vector.load %arg4[%c0_38, %c0_39] : memref<1x128xf32, #tpu.memory_space<vmem>>, vector<1x128xf32>
    %39 = vector.broadcast %38 : vector<1x128xf32> to vector<256x128xf32>
    %40 = arith.mulf %37, %39 : vector<256x128xf32>
    %c0_40 = arith.constant 0 : index
    %c0_41 = arith.constant 0 : index
    %41 = vector.load %arg5[%c0_40, %c0_41] : memref<1x128xf32, #tpu.memory_space<vmem>>, vector<1x128xf32>
    %42 = vector.broadcast %41 : vector<1x128xf32> to vector<256x128xf32>
    %43 = arith.addf %40, %42 : vector<256x128xf32>
    %cst_42 = arith.constant 0.000000e+00 : f32
    %44 = vector.broadcast %cst_42 : f32 to vector<256x128xf32>
    %45 = arith.maximumf %43, %44 : vector<256x128xf32>
    %46 = vector.shape_cast %45 : vector<256x128xf32> to vector<16x16x128xf32>
    %c1_43 = arith.constant 1 : index
    %c8_44 = arith.constant 8 : index
    %c0_45 = arith.constant 0 : index
    %47 = vector.load %arg10[%c1_43, %c8_44, %c0_45] : memref<18x25x128xf32, #tpu.memory_space<vmem>>, vector<16x16x128xf32>
    tpu.vector_store %arg10[%c1_43, %c8_44, %c0_45], %46 {strides = array<i32>} : memref<18x25x128xf32, #tpu.memory_space<vmem>>, vector<16x16x128xf32>,
    %c0_46 = arith.constant 0 : index
    %c7_47 = arith.constant 7 : index
    %c0_48 = arith.constant 0 : index
    %48 = vector.load %arg10[%c0_46, %c7_47, %c0_48] : memref<18x25x128xf32, #tpu.memory_space<vmem>>, vector<16x16x128xf32>
    %49 = arith.truncf %48 : vector<16x16x128xf32> to vector<16x16x128xbf16>
    %50 = vector.shape_cast %49 : vector<16x16x128xbf16> to vector<256x128xbf16>
    %c0_49 = arith.constant 0 : index
    %c8_50 = arith.constant 8 : index
    %c0_51 = arith.constant 0 : index
    %51 = vector.load %arg10[%c0_49, %c8_50, %c0_51] : memref<18x25x128xf32, #tpu.memory_space<vmem>>, vector<16x16x128xf32>
    %52 = arith.truncf %51 : vector<16x16x128xf32> to vector<16x16x128xbf16>
    %53 = vector.shape_cast %52 : vector<16x16x128xbf16> to vector<256x128xbf16>
    %c0_52 = arith.constant 0 : index
    %c9_53 = arith.constant 9 : index
    %c0_54 = arith.constant 0 : index
    %54 = vector.load %arg10[%c0_52, %c9_53, %c0_54] : memref<18x25x128xf32, #tpu.memory_space<vmem>>, vector<16x16x128xf32>
    %55 = arith.truncf %54 : vector<16x16x128xf32> to vector<16x16x128xbf16>
    %56 = vector.shape_cast %55 : vector<16x16x128xbf16> to vector<256x128xbf16>
    %c1_55 = arith.constant 1 : index
    %c7_56 = arith.constant 7 : index
    %c0_57 = arith.constant 0 : index
    %57 = vector.load %arg10[%c1_55, %c7_56, %c0_57] : memref<18x25x128xf32, #tpu.memory_space<vmem>>, vector<16x16x128xf32>
    %58 = arith.truncf %57 : vector<16x16x128xf32> to vector<16x16x128xbf16>
    %59 = vector.shape_cast %58 : vector<16x16x128xbf16> to vector<256x128xbf16>
    %c1_58 = arith.constant 1 : index
    %c8_59 = arith.constant 8 : index
    %c0_60 = arith.constant 0 : index
    %60 = vector.load %arg10[%c1_58, %c8_59, %c0_60] : memref<18x25x128xf32, #tpu.memory_space<vmem>>, vector<16x16x128xf32>
    %61 = arith.truncf %60 : vector<16x16x128xf32> to vector<16x16x128xbf16>
    %62 = vector.shape_cast %61 : vector<16x16x128xbf16> to vector<256x128xbf16>
    %c1_61 = arith.constant 1 : index
    %c9_62 = arith.constant 9 : index
    %c0_63 = arith.constant 0 : index
    %63 = vector.load %arg10[%c1_61, %c9_62, %c0_63] : memref<18x25x128xf32, #tpu.memory_space<vmem>>, vector<16x16x128xf32>
    %64 = arith.truncf %63 : vector<16x16x128xf32> to vector<16x16x128xbf16>
    %65 = vector.shape_cast %64 : vector<16x16x128xbf16> to vector<256x128xbf16>
    %c2_64 = arith.constant 2 : index
    %c7_65 = arith.constant 7 : index
    %c0_66 = arith.constant 0 : index
    %66 = vector.load %arg10[%c2_64, %c7_65, %c0_66] : memref<18x25x128xf32, #tpu.memory_space<vmem>>, vector<16x16x128xf32>
    %67 = arith.truncf %66 : vector<16x16x128xf32> to vector<16x16x128xbf16>
    %68 = vector.shape_cast %67 : vector<16x16x128xbf16> to vector<256x128xbf16>
    %c2_67 = arith.constant 2 : index
    %c8_68 = arith.constant 8 : index
    %c0_69 = arith.constant 0 : index
    %69 = vector.load %arg10[%c2_67, %c8_68, %c0_69] : memref<18x25x128xf32, #tpu.memory_space<vmem>>, vector<16x16x128xf32>
    %70 = arith.truncf %69 : vector<16x16x128xf32> to vector<16x16x128xbf16>
    %71 = vector.shape_cast %70 : vector<16x16x128xbf16> to vector<256x128xbf16>
    %c2_70 = arith.constant 2 : index
    %c9_71 = arith.constant 9 : index
    %c0_72 = arith.constant 0 : index
    %72 = vector.load %arg10[%c2_70, %c9_71, %c0_72] : memref<18x25x128xf32, #tpu.memory_space<vmem>>, vector<16x16x128xf32>
    %73 = arith.truncf %72 : vector<16x16x128xf32> to vector<16x16x128xbf16>
    %74 = vector.shape_cast %73 : vector<16x16x128xbf16> to vector<256x128xbf16>
    %75 = tpu.concatenate %50, %53, %56, %59, %62, %65, %68, %71, %74 in 1 : vector<256x128xbf16>, vector<256x128xbf16>, vector<256x128xbf16>, vector<256x128xbf16>, vector<256x128xbf16>, vector<256x128xbf16>, vector<256x128xbf16>, vector<256x128xbf16>, vector<256x128xbf16> -> vector<256x1152xbf16>
    %c0_73 = arith.constant 0 : index
    %c0_74 = arith.constant 0 : index
    %76 = vector.load %arg3[%c0_73, %c0_74] : memref<1152x128xbf16, #tpu.memory_space<vmem>>, vector<1152x128xbf16>
    %cst_75 = arith.constant dense<0.000000e+00> : vector<256x128xf32>
    %77 = tpu.matmul %75, %76, %cst_75 {dimension_numbers = #tpu.dot_dimension_numbers<[1], [0], [0], [1], [0, 0, 1, 1], [], []>} : vector<256x1152xbf16>, vector<1152x128xbf16>, vector<256x128xf32> -> vector<256x128xf32>
    %c0_76 = arith.constant 0 : index
    %c0_77 = arith.constant 0 : index
    %78 = vector.load %arg6[%c0_76, %c0_77] : memref<1x128xf32, #tpu.memory_space<vmem>>, vector<1x128xf32>
    %79 = vector.broadcast %78 : vector<1x128xf32> to vector<256x128xf32>
    %80 = arith.mulf %77, %79 : vector<256x128xf32>
    %c0_78 = arith.constant 0 : index
    %c0_79 = arith.constant 0 : index
    %81 = vector.load %arg7[%c0_78, %c0_79] : memref<1x128xf32, #tpu.memory_space<vmem>>, vector<1x128xf32>
    %82 = vector.broadcast %81 : vector<1x128xf32> to vector<256x128xf32>
    %83 = arith.addf %80, %82 : vector<256x128xf32>
    %84 = vector.shape_cast %5 : vector<16x16x128xbf16> to vector<256x128xbf16>
    %85 = arith.extf %84 : vector<256x128xbf16> to vector<256x128xf32>
    %86 = arith.addf %83, %85 : vector<256x128xf32>
    %cst_80 = arith.constant 0.000000e+00 : f32
    %87 = vector.broadcast %cst_80 : f32 to vector<256x128xf32>
    %88 = arith.maximumf %86, %87 : vector<256x128xf32>
    %89 = vector.shape_cast %88 : vector<256x128xf32> to vector<16x16x128xf32>
    %c0_81 = arith.constant 0 : index
    %c0_82 = arith.constant 0 : index
    %c0_83 = arith.constant 0 : index
    %c0_84 = arith.constant 0 : index
    %90 = vector.load %arg8[%c0_81, %c0_82, %c0_83, %c0_84] : memref<1x16x16x128xf32, #tpu.memory_space<vmem>>, vector<1x16x16x128xf32>
    %91 = vector.shape_cast %90 : vector<1x16x16x128xf32> to vector<16x16x128xf32>
    %92 = vector.shape_cast %89 : vector<16x16x128xf32> to vector<1x16x16x128xf32>
    tpu.vector_store %arg8[%c0_81, %c0_82, %c0_83, %c0_84], %92 {strides = array<i32>} : memref<1x16x16x128xf32, #tpu.memory_space<vmem>>, vector<1x16x16x128xf32>,
    return
  }
  func.func @transform_0(%arg0: i32) -> (i32, i32, i32, i32) {
    %c0_i32 = arith.constant 0 : i32
    %c0_i32_0 = arith.constant 0 : i32
    %c0_i32_1 = arith.constant 0 : i32
    %c0_i32_2 = arith.constant 0 : i32
    return %arg0, %c0_i32, %c0_i32_0, %c0_i32_1 : i32, i32, i32, i32
  }
  func.func @transform_1(%arg0: i32) -> (i32, i32) {
    %c0_i32 = arith.constant 0 : i32
    %c0_i32_0 = arith.constant 0 : i32
    %c0_i32_1 = arith.constant 0 : i32
    return %c0_i32, %c0_i32_0 : i32, i32
  }
  func.func @transform_2(%arg0: i32) -> (i32, i32) {
    %c0_i32 = arith.constant 0 : i32
    %c0_i32_0 = arith.constant 0 : i32
    %c0_i32_1 = arith.constant 0 : i32
    return %c0_i32, %c0_i32_0 : i32, i32
  }
  func.func @transform_3(%arg0: i32) -> (i32, i32) {
    %c0_i32 = arith.constant 0 : i32
    %c0_i32_0 = arith.constant 0 : i32
    %c0_i32_1 = arith.constant 0 : i32
    return %c0_i32, %c0_i32_0 : i32, i32
  }
  func.func @transform_4(%arg0: i32) -> (i32, i32) {
    %c0_i32 = arith.constant 0 : i32
    %c0_i32_0 = arith.constant 0 : i32
    %c0_i32_1 = arith.constant 0 : i32
    return %c0_i32, %c0_i32_0 : i32, i32
  }
  func.func @transform_5(%arg0: i32) -> (i32, i32) {
    %c0_i32 = arith.constant 0 : i32
    %c0_i32_0 = arith.constant 0 : i32
    %c0_i32_1 = arith.constant 0 : i32
    return %c0_i32, %c0_i32_0 : i32, i32
  }
  func.func @transform_6(%arg0: i32) -> (i32, i32) {
    %c0_i32 = arith.constant 0 : i32
    %c0_i32_0 = arith.constant 0 : i32
    %c0_i32_1 = arith.constant 0 : i32
    return %c0_i32, %c0_i32_0 : i32, i32
  }
  func.func @transform_7(%arg0: i32) -> (i32, i32, i32, i32) {
    %c0_i32 = arith.constant 0 : i32
    %c0_i32_0 = arith.constant 0 : i32
    %c0_i32_1 = arith.constant 0 : i32
    %c0_i32_2 = arith.constant 0 : i32
    return %arg0, %c0_i32, %c0_i32_0, %c0_i32_1 : i32, i32, i32, i32
  }
}

</mosaic_0001>

<llo_original>
// kernel: _lambda_.1
$region0: #{_lambda_.1}
  #allocation0 [shape = 'u32[]', space=smem, size = 0x4, offset = 0x4, fixed_abs, tag = 'smem constant byte address 0x4 - core index']
  #allocation1 [shape = 'u32[144,128]{1,0:T(1,128)}', space=vmem, size = 0x12000, scoped, tag = 'internal scratch']
  #allocation2 [shape = 'f32[18,25,128]{2,1,0:T(8,128)}', space=vmem, size = 0x48000, scoped, tag = 'scratch operand']
  #allocation3 [shape = 'f32[18,25,128]{2,1,0:T(8,128)}', space=vmem, size = 0x48000, scoped, tag = 'scratch operand']
  %s0 = inlined_call_operand.vmem [shape: bf16[2,16,16,128], index: 0, kind: input, shape index: {}]
  %s1 = inlined_call_operand.hbm [shape: bf16[1152,128], index: 1, kind: input, shape index: {}]
  %s2 = inlined_call_operand.vmem [shape: bf16[1152,128], index: 2, kind: input, shape index: {}]
  %s3 = inlined_call_operand.vmem [shape: f32[1,128], index: 3, kind: input, shape index: {}]
  %s4 = inlined_call_operand.vmem [shape: f32[1,128], index: 4, kind: input, shape index: {}]
  %s5 = inlined_call_operand.vmem [shape: f32[1,128], index: 5, kind: input, shape index: {}]
  %s6 = inlined_call_operand.vmem [shape: f32[1,128], index: 6, kind: input, shape index: {}]
  %s7 = inlined_call_operand.hbm [shape: f32[2,16,16,128], index: 7, kind: output, shape index: {}]
  %s8 = sld [smem:[#allocation0]]
  $region65: #{_lambda_.1} parent=0
    _
  %s10 = ssub.s32 1, %s8
  %s11 = scalar_select 0, %s10, %s8
  $region1: #{_lambda_.1} parent=0
    #allocation4 [shape = 'u8[294912]{0}', space=vmem, size = 0x48000, scoped, tag = 'input window, operand 1, single buffered']
    #allocation5 [shape = 's32[2]{0}', space=sflag, size = 0x8, scoped, tag = 'scoped memory for _lambda_.1']
    #allocation6 [shape = 's32[2]{0}', space=sflag, size = 0x8, scoped, tag = 'scoped memory for _lambda_.1']
    #allocation7 [shape = 'u8[262144]{0}', space=vmem, size = 0x40000, scoped, tag = 'output window, operand 0']
    %12 = vsyncpa [#allocation5], 0
    %13 = vsyncpa [#allocation6], 0
    %s14 = scalar_lea.sflag [#allocation6], 1
    %15 = vsyncpa %s14, 0
    loop: start=0, step=1, limit=4
    $region2: #{_lambda_.1} parent=1 // loop_pre_header
      _
    $region3: #{_lambda_.1} parent=1 // loop_header
      %s17 = sphi 0, %s21
      %p18 = scmp.ge.s32.totalorder %s17, 4
      %s27 = sphi 0, %s29
      %s30 = sphi 0, %s27
      %s31 = sphi 0, %s30
      %s47 = sphi 0, %s31
      %s51 = sphi 0, %s51
      %s53 = sphi 0, %s51
      %s54 = sphi 0, %s53
      %s68 = sphi 0, %s54
      %s72 = sphi 0, %s72
      %s74 = sphi 0, %s72
      %s75 = sphi 0, %s74
      %s89 = sphi 0, %s75
      %s93 = sphi 0, %s93
      %s95 = sphi 0, %s93
      %s96 = sphi 0, %s95
      %s110 = sphi 0, %s96
      %s114 = sphi 0, %s114
      %s116 = sphi 0, %s114
      %s117 = sphi 0, %s116
      %s131 = sphi 0, %s117
      %s135 = sphi 0, %s135
      %s137 = sphi 0, %s135
      %s138 = sphi 0, %s137
      %s152 = sphi 0, %s138
      %s156 = sphi 0, %s156
      %s158 = sphi 0, %s156
      %s159 = sphi 0, %s158
      %s173 = sphi 0, %s159
      %s179 = sphi 0, %s181
      %s182 = sphi 0, %s179
      %s183 = sphi 0, %s182
      %s199 = sphi 0, %s183
    $region4: #{_lambda_.1} parent=1 // loop_header_branch
      %20 = sbr.rel (%p18) target = $region8
    $region5: #{_lambda_.1} parent=1 // loop_body
      %s22 = ssub.s32 %s17, 1
      %s23 = ssub.s32 %s17, 2
      %s24 = sadd.s32 %s17, 1
      %s25 = ssub.s32 %s17, %s24
      %p26 = scmp.eq.s32.totalorder %s25, 0
      %s28 = sadd.s32 %s27, 1
      %s29 = scalar_select %p26, %s27, %s28
      %p32 = pneg %p26
      %p33 = scmp.eq.s32.totalorder %s17, 1
      %p34 = por %p32, %p33
      %p35 = scmp.ne.s32.totalorder %s27, %s30
      %p36 = scmp.eq.s32.totalorder %s17, 0
      %p37 = por %p35, %p36
      %p38 = scmp.ne.s32.totalorder %s27, %s30
      %p39 = scmp.eq.s32.totalorder %s22, 1
      %p40 = por %p38, %p39
      %p41 = scmp.ne.s32.totalorder %s30, %s31
      %p42 = scmp.eq.s32.totalorder %s22, 0
      %p43 = por %p41, %p42
      %p44 = scmp.ne.s32.totalorder %s30, %s31
      %p45 = scmp.eq.s32.totalorder %s23, 1
      %p46 = por %p44, %p45
      %p48 = scmp.ne.s32.totalorder %s31, %s47
      %p49 = scmp.eq.s32.totalorder %s23, 0
      %p50 = por %p48, %p49
      %s52 = sadd.s32 %s51, 1
      %p55 = scmp.eq.s32.totalorder %s17, 1
      %p56 = scmp.ne.s32.totalorder %s51, %s53
      %p57 = scmp.eq.s32.totalorder %s17, 0
      %p58 = por %p56, %p57
      %p59 = scmp.ne.s32.totalorder %s51, %s53
      %p60 = scmp.eq.s32.totalorder %s22, 1
      %p61 = por %p59, %p60
      %p62 = scmp.ne.s32.totalorder %s53, %s54
      %p63 = scmp.eq.s32.totalorder %s22, 0
      %p64 = por %p62, %p63
      %p65 = scmp.ne.s32.totalorder %s53, %s54
      %p66 = scmp.eq.s32.totalorder %s23, 1
      %p67 = por %p65, %p66
      %p69 = scmp.ne.s32.totalorder %s54, %s68
      %p70 = scmp.eq.s32.totalorder %s23, 0
      %p71 = por %p69, %p70
      %s73 = sadd.s32 %s72, 1
      %p76 = scmp.eq.s32.totalorder %s17, 1
      %p77 = scmp.ne.s32.totalorder %s72, %s74
      %p78 = scmp.eq.s32.totalorder %s17, 0
      %p79 = por %p77, %p78
      %p80 = scmp.ne.s32.totalorder %s72, %s74
      %p81 = scmp.eq.s32.totalorder %s22, 1
      %p82 = por %p80, %p81
      %p83 = scmp.ne.s32.totalorder %s74, %s75
      %p84 = scmp.eq.s32.totalorder %s22, 0
      %p85 = por %p83, %p84
      %p86 = scmp.ne.s32.totalorder %s74, %s75
      %p87 = scmp.eq.s32.totalorder %s23, 1
      %p88 = por %p86, %p87
      %p90 = scmp.ne.s32.totalorder %s75, %s89
      %p91 = scmp.eq.s32.totalorder %s23, 0
      %p92 = por %p90, %p91
      %s94 = sadd.s32 %s93, 1
      %p97 = scmp.eq.s32.totalorder %s17, 1
      %p98 = scmp.ne.s32.totalorder %s93, %s95
      %p99 = scmp.eq.s32.totalorder %s17, 0
      %p100 = por %p98, %p99
      %p101 = scmp.ne.s32.totalorder %s93, %s95
      %p102 = scmp.eq.s32.totalorder %s22, 1
      %p103 = por %p101, %p102
      %p104 = scmp.ne.s32.totalorder %s95, %s96
      %p105 = scmp.eq.s32.totalorder %s22, 0
      %p106 = por %p104, %p105
      %p107 = scmp.ne.s32.totalorder %s95, %s96
      %p108 = scmp.eq.s32.totalorder %s23, 1
      %p109 = por %p107, %p108
      %p111 = scmp.ne.s32.totalorder %s96, %s110
      %p112 = scmp.eq.s32.totalorder %s23, 0
      %p113 = por %p111, %p112
      %s115 = sadd.s32 %s114, 1
      %p118 = scmp.eq.s32.totalorder %s17, 1
      %p119 = scmp.ne.s32.totalorder %s114, %s116
      %p120 = scmp.eq.s32.totalorder %s17, 0
      %p121 = por %p119, %p120
      %p122 = scmp.ne.s32.totalorder %s114, %s116
      %p123 = scmp.eq.s32.totalorder %s22, 1
      %p124 = por %p122, %p123
      %p125 = scmp.ne.s32.totalorder %s116, %s117
      %p126 = scmp.eq.s32.totalorder %s22, 0
      %p127 = por %p125, %p126
      %p128 = scmp.ne.s32.totalorder %s116, %s117
      %p129 = scmp.eq.s32.totalorder %s23, 1
      %p130 = por %p128, %p129
      %p132 = scmp.ne.s32.totalorder %s117, %s131
      %p133 = scmp.eq.s32.totalorder %s23, 0
      %p134 = por %p132, %p133
      %s136 = sadd.s32 %s135, 1
      %p139 = scmp.eq.s32.totalorder %s17, 1
      %p140 = scmp.ne.s32.totalorder %s135, %s137
      %p141 = scmp.eq.s32.totalorder %s17, 0
      %p142 = por %p140, %p141
      %p143 = scmp.ne.s32.totalorder %s135, %s137
      %p144 = scmp.eq.s32.totalorder %s22, 1
      %p145 = por %p143, %p144
      %p146 = scmp.ne.s32.totalorder %s137, %s138
      %p147 = scmp.eq.s32.totalorder %s22, 0
      %p148 = por %p146, %p147
      %p149 = scmp.ne.s32.totalorder %s137, %s138
      %p150 = scmp.eq.s32.totalorder %s23, 1
      %p151 = por %p149, %p150
      %p153 = scmp.ne.s32.totalorder %s138, %s152
      %p154 = scmp.eq.s32.totalorder %s23, 0
      %p155 = por %p153, %p154
      %s157 = sadd.s32 %s156, 1
      %p160 = scmp.eq.s32.totalorder %s17, 1
      %p161 = scmp.ne.s32.totalorder %s156, %s158
      %p162 = scmp.eq.s32.totalorder %s17, 0
      %p163 = por %p161, %p162
      %p164 = scmp.ne.s32.totalorder %s156, %s158
      %p165 = scmp.eq.s32.totalorder %s22, 1
      %p166 = por %p164, %p165
      %p167 = scmp.ne.s32.totalorder %s158, %s159
      %p168 = scmp.eq.s32.totalorder %s22, 0
      %p169 = por %p167, %p168
      %p170 = scmp.ne.s32.totalorder %s158, %s159
      %p171 = scmp.eq.s32.totalorder %s23, 1
      %p172 = por %p170, %p171
      %p174 = scmp.ne.s32.totalorder %s159, %s173
      %p175 = scmp.eq.s32.totalorder %s23, 0
      %p176 = por %p174, %p175
      %s177 = ssub.s32 %s17, %s24
      %p178 = scmp.eq.s32.totalorder %s177, 0
      %s180 = sadd.s32 %s179, 1
      %s181 = scalar_select %p178, %s179, %s180
      %p184 = pneg %p178
      %p185 = scmp.eq.s32.totalorder %s17, 1
      %p186 = por %p184, %p185
      %p187 = scmp.ne.s32.totalorder %s179, %s182
      %p188 = scmp.eq.s32.totalorder %s17, 0
      %p189 = por %p187, %p188
      %p190 = scmp.ne.s32.totalorder %s179, %s182
      %p191 = scmp.eq.s32.totalorder %s22, 1
      %p192 = por %p190, %p191
      %p193 = scmp.ne.s32.totalorder %s182, %s183
      %p194 = scmp.eq.s32.totalorder %s22, 0
      %p195 = por %p193, %p194
      %p196 = scmp.ne.s32.totalorder %s182, %s183
      %p197 = scmp.eq.s32.totalorder %s23, 1
      %p198 = por %p196, %p197
      %p200 = scmp.ne.s32.totalorder %s183, %s199
      %p201 = scmp.eq.s32.totalorder %s23, 0
      %p202 = por %p200, %p201
      %p203 = scmp.le.s32.totalorder 1, %s17
      %p204 = scmp.lt.s32.totalorder %s17, 3
      %p205 = pnand %p203, %p204
      %p206 = pneg %p205
      // Predicated region
      $region9: #{_lambda_.1} parent=5 // pred_check
        _
      $region10: #{_lambda_.1} parent=5 // pred_check_branch
        %208 = sbr.rel (%p205) target = $region12
      $region11: #{_lambda_.1} parent=5 // pred_region
        %s209 = ssub.s32 %s17, 1
        // Predicated region
        $region13: #{_lambda_.1} parent=11 // pred_check
          %p210 = pneg %p64
        $region14: #{_lambda_.1} parent=11 // pred_check_branch
          %212 = sbr.rel (%p210) target = $region16
        $region15: #{_lambda_.1} parent=11 // pred_region
          %s214 = ssub.s32 9216, 9216
          %215 = vsyncadd [#allocation5], %s214
          %s216 = sshll.u32 [#allocation4], 4
          %s217 = int_to_ptr.vmem [resolvable:$true] %s216
          %222 = dma.hbm_to_vmem [thread:$0]  %s1, 9216, %s217, [#allocation5], 64, 64, 4
        $region16: #{_lambda_.1} parent=11 // pred_fallthru
          _
        // Predicated region
        $region17: #{_lambda_.1} parent=11 // pred_check
          %p223 = pneg %p85
        $region18: #{_lambda_.1} parent=11 // pred_check_branch
          %225 = sbr.rel (%p223) target = $region20
        $region19: #{_lambda_.1} parent=11 // pred_region
          _
        $region20: #{_lambda_.1} parent=11 // pred_fallthru
          _
        // Predicated region
        $region21: #{_lambda_.1} parent=11 // pred_check
          %p226 = pneg %p106
        $region22: #{_lambda_.1} parent=11 // pred_check_branch
          %228 = sbr.rel (%p226) target = $region24
        $region23: #{_lambda_.1} parent=11 // pred_region
          _
        $region24: #{_lambda_.1} parent=11 // pred_fallthru
          _
        // Predicated region
        $region25: #{_lambda_.1} parent=11 // pred_check
          %p229 = pneg %p127
        $region26: #{_lambda_.1} parent=11 // pred_check_branch
          %231 = sbr.rel (%p229) target = $region28
        $region27: #{_lambda_.1} parent=11 // pred_region
          _
        $region28: #{_lambda_.1} parent=11 // pred_fallthru
          _
        // Predicated region
        $region29: #{_lambda_.1} parent=11 // pred_check
          %p232 = pneg %p148
        $region30: #{_lambda_.1} parent=11 // pred_check_branch
          %234 = sbr.rel (%p232) target = $region32
        $region31: #{_lambda_.1} parent=11 // pred_region
          _
        $region32: #{_lambda_.1} parent=11 // pred_fallthru
          _
        // Predicated region
        $region33: #{_lambda_.1} parent=11 // pred_check
          %p235 = pneg %p169
        $region34: #{_lambda_.1} parent=11 // pred_check_branch
          %237 = sbr.rel (%p235) target = $region36
        $region35: #{_lambda_.1} parent=11 // pred_region
          _
        $region36: #{_lambda_.1} parent=11 // pred_fallthru
          _
      $region12: #{_lambda_.1} parent=5 // pred_fallthru
        _
      %p238 = scmp.lt.s32.totalorder %s17, 2
      // Predicated region
      $region37: #{_lambda_.1} parent=5 // pred_check
        %p239 = pneg %p238
      $region38: #{_lambda_.1} parent=5 // pred_check_branch
        %241 = sbr.rel (%p239) target = $region40
      $region39: #{_lambda_.1} parent=5 // pred_region
        // Predicated region
        $region41: #{_lambda_.1} parent=39 // pred_check
          %p242 = pneg %p37
        $region42: #{_lambda_.1} parent=39 // pred_check_branch
          %244 = sbr.rel (%p242) target = $region44
        $region43: #{_lambda_.1} parent=39 // pred_region
          %p245 = scmp.lt.s32.totalorder %s17, 1
          %s246 = scalar_select %p245, %s17, 1
          %s247 = smul.addr %s246, 32
          %s248 = smul.addr %s247, 4
          %s249 = scalar_lea.vmem %s0, %s248
        $region44: #{_lambda_.1} parent=39 // pred_fallthru
          _
      $region40: #{_lambda_.1} parent=5 // pred_fallthru
        _
      %p250 = scmp.le.s32.totalorder 1, %s17
      %p251 = scmp.lt.s32.totalorder %s17, 3
      %p252 = pnand %p250, %p251
      %p253 = pneg %p252
      // Predicated region
      $region45: #{_lambda_.1} parent=5 // pred_check
        _
      $region46: #{_lambda_.1} parent=5 // pred_check_branch
        %255 = sbr.rel (%p252) target = $region48
      $region47: #{_lambda_.1} parent=5 // pred_region
        %s256 = ssub.s32 %s17, 1
        // Predicated region
        $region49: #{_lambda_.1} parent=47 // pred_check
          %p257 = pneg %p64
        $region50: #{_lambda_.1} parent=47 // pred_check_branch
          %259 = sbr.rel (%p257) target = $region52
        $region51: #{_lambda_.1} parent=47 // pred_region
          %260 = dma.done [#allocation5], 9216
        $region52: #{_lambda_.1} parent=47 // pred_fallthru
          _
        %p261 = scmp.lt.s32.totalorder %s22, 1
        %s262 = scalar_select %p261, %s22, 1
        %s263 = smul.addr %s262, 32
        %s264 = smul.addr %s263, 4
        %s265 = scalar_lea.vmem %s0, %s264
        %p266 = pneg %p43
        %p267 = pneg %p40
        %p268 = pneg %p64
        %p269 = pneg %p61
        %p270 = pneg %p85
        %p271 = pneg %p82
        %p272 = pneg %p106
        %p273 = pneg %p103
        %p274 = pneg %p127
        %p275 = pneg %p124
        %p276 = pneg %p148
        %p277 = pneg %p145
        %p278 = pneg %p169
        %p279 = pneg %p166
        %p280 = pneg %p195
        %p281 = pneg %p192
        %s282 = sand.u32 %s182, 1
        %s283 = scalar_lea.sflag [#allocation6], %s282
        %s284 = sand.u32 %s182, 1
        %s285 = smul.addr %s284, 256
        %s286 = scalar_lea.vmem [#allocation7], %s285
        %p287 = scmp.lt.s32.totalorder %s22, 1
        %s288 = scalar_select %p287, %s22, 1
        %s289 = smul.addr %s288, 32
        %s290 = smul.addr %s289, 4
        %s291 = scalar_lea.vmem %s0, %s290
        %293 = vst [vmem:[#allocation2] sm:$0xff] 0.0
        %294 = vst [vmem:[#allocation2 + $0x8] sm:$0xff] 0.0
        %295 = vst [vmem:[#allocation2 + $0x10] sm:$0xff] 0.0
        %296 = vst [vmem:[#allocation2 + $0x18] sm:$0x1] 0.0
        %297 = vst [vmem:[#allocation2 + $0x20] sm:$0xff] 0.0
        %298 = vst [vmem:[#allocation2 + $0x28] sm:$0xff] 0.0
        %299 = vst [vmem:[#allocation2 + $0x30] sm:$0xff] 0.0
        %300 = vst [vmem:[#allocation2 + $0x38] sm:$0x1] 0.0
        %301 = vst [vmem:[#allocation2 + $0x40] sm:$0xff] 0.0
        %302 = vst [vmem:[#allocation2 + $0x48] sm:$0xff] 0.0
        %303 = vst [vmem:[#allocation2 + $0x50] sm:$0xff] 0.0
        %304 = vst [vmem:[#allocation2 + $0x58] sm:$0x1] 0.0
        %305 = vst [vmem:[#allocation2 + $0x60] sm:$0xff] 0.0
        %306 = vst [vmem:[#allocation2 + $0x68] sm:$0xff] 0.0
        %307 = vst [vmem:[#allocation2 + $0x70] sm:$0xff] 0.0
        %308 = vst [vmem:[#allocation2 + $0x78] sm:$0x1] 0.0
        %309 = vst [vmem:[#allocation2 + $0x80] sm:$0xff] 0.0
        %310 = vst [vmem:[#allocation2 + $0x88] sm:$0xff] 0.0
        %311 = vst [vmem:[#allocation2 + $0x90] sm:$0xff] 0.0
        %312 = vst [vmem:[#allocation2 + $0x98] sm:$0x1] 0.0
        %313 = vst [vmem:[#allocation2 + $0xa0] sm:$0xff] 0.0
        %314 = vst [vmem:[#allocation2 + $0xa8] sm:$0xff] 0.0
        %315 = vst [vmem:[#allocation2 + $0xb0] sm:$0xff] 0.0
        %316 = vst [vmem:[#allocation2 + $0xb8] sm:$0x1] 0.0
        %317 = vst [vmem:[#allocation2 + $0xc0] sm:$0xff] 0.0
        %318 = vst [vmem:[#allocation2 + $0xc8] sm:$0xff] 0.0
        %319 = vst [vmem:[#allocation2 + $0xd0] sm:$0xff] 0.0
        %320 = vst [vmem:[#allocation2 + $0xd8] sm:$0x1] 0.0
        %321 = vst [vmem:[#allocation2 + $0xe0] sm:$0xff] 0.0
        %322 = vst [vmem:[#allocation2 + $0xe8] sm:$0xff] 0.0
        %323 = vst [vmem:[#allocation2 + $0xf0] sm:$0xff] 0.0
        %324 = vst [vmem:[#allocation2 + $0xf8] sm:$0x1] 0.0
        %325 = vst [vmem:[#allocation2 + $0x100] sm:$0xff] 0.0
        %326 = vst [vmem:[#allocation2 + $0x108] sm:$0xff] 0.0
        %327 = vst [vmem:[#allocation2 + $0x110] sm:$0xff] 0.0
        %328 = vst [vmem:[#allocation2 + $0x118] sm:$0x1] 0.0
        %329 = vst [vmem:[#allocation2 + $0x120] sm:$0xff] 0.0
        %330 = vst [vmem:[#allocation2 + $0x128] sm:$0xff] 0.0
        %331 = vst [vmem:[#allocation2 + $0x130] sm:$0xff] 0.0
        %332 = vst [vmem:[#allocation2 + $0x138] sm:$0x1] 0.0
        %333 = vst [vmem:[#allocation2 + $0x140] sm:$0xff] 0.0
        %334 = vst [vmem:[#allocation2 + $0x148] sm:$0xff] 0.0
        %335 = vst [vmem:[#allocation2 + $0x150] sm:$0xff] 0.0
        %336 = vst [vmem:[#allocation2 + $0x158] sm:$0x1] 0.0
        %337 = vst [vmem:[#allocation2 + $0x160] sm:$0xff] 0.0
        %338 = vst [vmem:[#allocation2 + $0x168] sm:$0xff] 0.0
        %339 = vst [vmem:[#allocation2 + $0x170] sm:$0xff] 0.0
        %340 = vst [vmem:[#allocation2 + $0x178] sm:$0x1] 0.0
        %341 = vst [vmem:[#allocation2 + $0x180] sm:$0xff] 0.0
        %342 = vst [vmem:[#allocation2 + $0x188] sm:$0xff] 0.0
        %343 = vst [vmem:[#allocation2 + $0x190] sm:$0xff] 0.0
        %344 = vst [vmem:[#allocation2 + $0x198] sm:$0x1] 0.0
        %345 = vst [vmem:[#allocation2 + $0x1a0] sm:$0xff] 0.0
        %346 = vst [vmem:[#allocation2 + $0x1a8] sm:$0xff] 0.0
        %347 = vst [vmem:[#allocation2 + $0x1b0] sm:$0xff] 0.0
        %348 = vst [vmem:[#allocation2 + $0x1b8] sm:$0x1] 0.0
        %349 = vst [vmem:[#allocation2 + $0x1c0] sm:$0xff] 0.0
        %350 = vst [vmem:[#allocation2 + $0x1c8] sm:$0xff] 0.0
        %351 = vst [vmem:[#allocation2 + $0x1d0] sm:$0xff] 0.0
        %352 = vst [vmem:[#allocation2 + $0x1d8] sm:$0x1] 0.0
        %353 = vst [vmem:[#allocation2 + $0x1e0] sm:$0xff] 0.0
        %354 = vst [vmem:[#allocation2 + $0x1e8] sm:$0xff] 0.0
        %355 = vst [vmem:[#allocation2 + $0x1f0] sm:$0xff] 0.0
        %356 = vst [vmem:[#allocation2 + $0x1f8] sm:$0x1] 0.0
        %357 = vst [vmem:[#allocation2 + $0x200] sm:$0xff] 0.0
        %358 = vst [vmem:[#allocation2 + $0x208] sm:$0xff] 0.0
        %359 = vst [vmem:[#allocation2 + $0x210] sm:$0xff] 0.0
        %360 = vst [vmem:[#allocation2 + $0x218] sm:$0x1] 0.0
        %361 = vst [vmem:[#allocation2 + $0x220] sm:$0xff] 0.0
        %362 = vst [vmem:[#allocation2 + $0x228] sm:$0xff] 0.0
        %363 = vst [vmem:[#allocation2 + $0x230] sm:$0xff] 0.0
        %364 = vst [vmem:[#allocation2 + $0x238] sm:$0x1] 0.0
        %365 = vst [vmem:[#allocation3] sm:$0xff] 0.0
        %366 = vst [vmem:[#allocation3 + $0x8] sm:$0xff] 0.0
        %367 = vst [vmem:[#allocation3 + $0x10] sm:$0xff] 0.0
        %368 = vst [vmem:[#allocation3 + $0x18] sm:$0x1] 0.0
        %369 = vst [vmem:[#allocation3 + $0x20] sm:$0xff] 0.0
        %370 = vst [vmem:[#allocation3 + $0x28] sm:$0xff] 0.0
        %371 = vst [vmem:[#allocation3 + $0x30] sm:$0xff] 0.0
        %372 = vst [vmem:[#allocation3 + $0x38] sm:$0x1] 0.0
        %373 = vst [vmem:[#allocation3 + $0x40] sm:$0xff] 0.0
        %374 = vst [vmem:[#allocation3 + $0x48] sm:$0xff] 0.0
        %375 = vst [vmem:[#allocation3 + $0x50] sm:$0xff] 0.0
        %376 = vst [vmem:[#allocation3 + $0x58] sm:$0x1] 0.0
        %377 = vst [vmem:[#allocation3 + $0x60] sm:$0xff] 0.0
        %378 = vst [vmem:[#allocation3 + $0x68] sm:$0xff] 0.0
        %379 = vst [vmem:[#allocation3 + $0x70] sm:$0xff] 0.0
        %380 = vst [vmem:[#allocation3 + $0x78] sm:$0x1] 0.0
        %381 = vst [vmem:[#allocation3 + $0x80] sm:$0xff] 0.0
        %382 = vst [vmem:[#allocation3 + $0x88] sm:$0xff] 0.0
        %383 = vst [vmem:[#allocation3 + $0x90] sm:$0xff] 0.0
        %384 = vst [vmem:[#allocation3 + $0x98] sm:$0x1] 0.0
        %385 = vst [vmem:[#allocation3 + $0xa0] sm:$0xff] 0.0
        %386 = vst [vmem:[#allocation3 + $0xa8] sm:$0xff] 0.0
        %387 = vst [vmem:[#allocation3 + $0xb0] sm:$0xff] 0.0
        %388 = vst [vmem:[#allocation3 + $0xb8] sm:$0x1] 0.0
        %389 = vst [vmem:[#allocation3 + $0xc0] sm:$0xff] 0.0
        %390 = vst [vmem:[#allocation3 + $0xc8] sm:$0xff] 0.0
        %391 = vst [vmem:[#allocation3 + $0xd0] sm:$0xff] 0.0
        %392 = vst [vmem:[#allocation3 + $0xd8] sm:$0x1] 0.0
        %393 = vst [vmem:[#allocation3 + $0xe0] sm:$0xff] 0.0
        %394 = vst [vmem:[#allocation3 + $0xe8] sm:$0xff] 0.0
        %395 = vst [vmem:[#allocation3 + $0xf0] sm:$0xff] 0.0
        %396 = vst [vmem:[#allocation3 + $0xf8] sm:$0x1] 0.0
        %397 = vst [vmem:[#allocation3 + $0x100] sm:$0xff] 0.0
        %398 = vst [vmem:[#allocation3 + $0x108] sm:$0xff] 0.0
        %399 = vst [vmem:[#allocation3 + $0x110] sm:$0xff] 0.0
        %400 = vst [vmem:[#allocation3 + $0x118] sm:$0x1] 0.0
        %401 = vst [vmem:[#allocation3 + $0x120] sm:$0xff] 0.0
        %402 = vst [vmem:[#allocation3 + $0x128] sm:$0xff] 0.0
        %403 = vst [vmem:[#allocation3 + $0x130] sm:$0xff] 0.0
        %404 = vst [vmem:[#allocation3 + $0x138] sm:$0x1] 0.0
        %405 = vst [vmem:[#allocation3 + $0x140] sm:$0xff] 0.0
        %406 = vst [vmem:[#allocation3 + $0x148] sm:$0xff] 0.0
        %407 = vst [vmem:[#allocation3 + $0x150] sm:$0xff] 0.0
        %408 = vst [vmem:[#allocation3 + $0x158] sm:$0x1] 0.0
        %409 = vst [vmem:[#allocation3 + $0x160] sm:$0xff] 0.0
        %410 = vst [vmem:[#allocation3 + $0x168] sm:$0xff] 0.0
        %411 = vst [vmem:[#allocation3 + $0x170] sm:$0xff] 0.0
        %412 = vst [vmem:[#allocation3 + $0x178] sm:$0x1] 0.0
        %413 = vst [vmem:[#allocation3 + $0x180] sm:$0xff] 0.0
        %414 = vst [vmem:[#allocation3 + $0x188] sm:$0xff] 0.0
        %415 = vst [vmem:[#allocation3 + $0x190] sm:$0xff] 0.0
        %416 = vst [vmem:[#allocation3 + $0x198] sm:$0x1] 0.0
        %417 = vst [vmem:[#allocation3 + $0x1a0] sm:$0xff] 0.0
        %418 = vst [vmem:[#allocation3 + $0x1a8] sm:$0xff] 0.0
        %419 = vst [vmem:[#allocation3 + $0x1b0] sm:$0xff] 0.0
        %420 = vst [vmem:[#allocation3 + $0x1b8] sm:$0x1] 0.0
        %421 = vst [vmem:[#allocation3 + $0x1c0] sm:$0xff] 0.0
        %422 = vst [vmem:[#allocation3 + $0x1c8] sm:$0xff] 0.0
        %423 = vst [vmem:[#allocation3 + $0x1d0] sm:$0xff] 0.0
        %424 = vst [vmem:[#allocation3 + $0x1d8] sm:$0x1] 0.0
        %425 = vst [vmem:[#allocation3 + $0x1e0] sm:$0xff] 0.0
        %426 = vst [vmem:[#allocation3 + $0x1e8] sm:$0xff] 0.0
        %427 = vst [vmem:[#allocation3 + $0x1f0] sm:$0xff] 0.0
        %428 = vst [vmem:[#allocation3 + $0x1f8] sm:$0x1] 0.0
        %429 = vst [vmem:[#allocation3 + $0x200] sm:$0xff] 0.0
        %430 = vst [vmem:[#allocation3 + $0x208] sm:$0xff] 0.0
        %431 = vst [vmem:[#allocation3 + $0x210] sm:$0xff] 0.0
        %432 = vst [vmem:[#allocation3 + $0x218] sm:$0x1] 0.0
        %433 = vst [vmem:[#allocation3 + $0x220] sm:$0xff] 0.0
        %434 = vst [vmem:[#allocation3 + $0x228] sm:$0xff] 0.0
        %435 = vst [vmem:[#allocation3 + $0x230] sm:$0xff] 0.0
        %436 = vst [vmem:[#allocation3 + $0x238] sm:$0x1] 0.0
        %v437 = vld [vmem:[%s291] sm:$0xf]
        %v438 = vld [vmem:[%s291 + $0x4] sm:$0xf]
        %v439 = vld [vmem:[%s291 + $0x8] sm:$0xf]
        %v440 = vld [vmem:[%s291 + $0xc] sm:$0xf]
        %v441 = vld [vmem:[%s291 + $0x10] sm:$0xf]
        %v442 = vld [vmem:[%s291 + $0x14] sm:$0xf]
        %v443 = vld [vmem:[%s291 + $0x18] sm:$0xf]
        %v444 = vld [vmem:[%s291 + $0x1c] sm:$0xf]
        %v445 = vld [vmem:[%s291 + $0x20] sm:$0xf]
        %v446 = vld [vmem:[%s291 + $0x24] sm:$0xf]
        %v447 = vld [vmem:[%s291 + $0x28] sm:$0xf]
        %v448 = vld [vmem:[%s291 + $0x2c] sm:$0xf]
        %v449 = vld [vmem:[%s291 + $0x30] sm:$0xf]
        %v450 = vld [vmem:[%s291 + $0x34] sm:$0xf]
        %v451 = vld [vmem:[%s291 + $0x38] sm:$0xf]
        %v452 = vld [vmem:[%s291 + $0x3c] sm:$0xf]
        %v453 = vld [vmem:[%s291 + $0x40] sm:$0xf]
        %v454 = vld [vmem:[%s291 + $0x44] sm:$0xf]
        %v455 = vld [vmem:[%s291 + $0x48] sm:$0xf]
        %v456 = vld [vmem:[%s291 + $0x4c] sm:$0xf]
        %v457 = vld [vmem:[%s291 + $0x50] sm:$0xf]
        %v458 = vld [vmem:[%s291 + $0x54] sm:$0xf]
        %v459 = vld [vmem:[%s291 + $0x58] sm:$0xf]
        %v460 = vld [vmem:[%s291 + $0x5c] sm:$0xf]
        %v461 = vld [vmem:[%s291 + $0x60] sm:$0xf]
        %v462 = vld [vmem:[%s291 + $0x64] sm:$0xf]
        %v463 = vld [vmem:[%s291 + $0x68] sm:$0xf]
        %v464 = vld [vmem:[%s291 + $0x6c] sm:$0xf]
        %v465 = vld [vmem:[%s291 + $0x70] sm:$0xf]
        %v466 = vld [vmem:[%s291 + $0x74] sm:$0xf]
        %v467 = vld [vmem:[%s291 + $0x78] sm:$0xf]
        %v468 = vld [vmem:[%s291 + $0x7c] sm:$0xf]
        %v469 = vunpack.c.l.bf16 %v437
        %v470 = vunpack.c.l.bf16 %v438
        %v471 = vunpack.c.l.bf16 %v439
        %v472 = vunpack.c.l.bf16 %v440
        %v473 = vunpack.c.l.bf16 %v441
        %v474 = vunpack.c.l.bf16 %v442
        %v475 = vunpack.c.l.bf16 %v443
        %v476 = vunpack.c.l.bf16 %v444
        %v477 = vunpack.c.l.bf16 %v445
        %v478 = vunpack.c.l.bf16 %v446
        %v479 = vunpack.c.l.bf16 %v447
        %v480 = vunpack.c.l.bf16 %v448
        %v481 = vunpack.c.l.bf16 %v449
        %v482 = vunpack.c.l.bf16 %v450
        %v483 = vunpack.c.l.bf16 %v451
        %v484 = vunpack.c.l.bf16 %v452
        %v485 = vunpack.c.l.bf16 %v453
        %v486 = vunpack.c.l.bf16 %v454
        %v487 = vunpack.c.l.bf16 %v455
        %v488 = vunpack.c.l.bf16 %v456
        %v489 = vunpack.c.l.bf16 %v457
        %v490 = vunpack.c.l.bf16 %v458
        %v491 = vunpack.c.l.bf16 %v459
        %v492 = vunpack.c.l.bf16 %v460
        %v493 = vunpack.c.l.bf16 %v461
        %v494 = vunpack.c.l.bf16 %v462
        %v495 = vunpack.c.l.bf16 %v463
        %v496 = vunpack.c.l.bf16 %v464
        %v497 = vunpack.c.l.bf16 %v465
        %v498 = vunpack.c.l.bf16 %v466
        %v499 = vunpack.c.l.bf16 %v467
        %v500 = vunpack.c.l.bf16 %v468
        %s501 = scalar_lea.vmem [#allocation2], 32
        %502 = vst [vmem:[%s501 + $0x8] sm:$0xff] %v469
        %503 = vst [vmem:[%s501 + $0x10] sm:$0xff] %v470
        %504 = vst [vmem:[%s501 + $0x28] sm:$0xff] %v471
        %505 = vst [vmem:[%s501 + $0x30] sm:$0xff] %v472
        %506 = vst [vmem:[%s501 + $0x48] sm:$0xff] %v473
        %507 = vst [vmem:[%s501 + $0x50] sm:$0xff] %v474
        %508 = vst [vmem:[%s501 + $0x68] sm:$0xff] %v475
        %509 = vst [vmem:[%s501 + $0x70] sm:$0xff] %v476
        %510 = vst [vmem:[%s501 + $0x88] sm:$0xff] %v477
        %511 = vst [vmem:[%s501 + $0x90] sm:$0xff] %v478
        %512 = vst [vmem:[%s501 + $0xa8] sm:$0xff] %v479
        %513 = vst [vmem:[%s501 + $0xb0] sm:$0xff] %v480
        %514 = vst [vmem:[%s501 + $0xc8] sm:$0xff] %v481
        %515 = vst [vmem:[%s501 + $0xd0] sm:$0xff] %v482
        %516 = vst [vmem:[%s501 + $0xe8] sm:$0xff] %v483
        %517 = vst [vmem:[%s501 + $0xf0] sm:$0xff] %v484
        %518 = vst [vmem:[%s501 + $0x108] sm:$0xff] %v485
        %519 = vst [vmem:[%s501 + $0x110] sm:$0xff] %v486
        %520 = vst [vmem:[%s501 + $0x128] sm:$0xff] %v487
        %521 = vst [vmem:[%s501 + $0x130] sm:$0xff] %v488
        %522 = vst [vmem:[%s501 + $0x148] sm:$0xff] %v489
        %523 = vst [vmem:[%s501 + $0x150] sm:$0xff] %v490
        %524 = vst [vmem:[%s501 + $0x168] sm:$0xff] %v491
        %525 = vst [vmem:[%s501 + $0x170] sm:$0xff] %v492
        %526 = vst [vmem:[%s501 + $0x188] sm:$0xff] %v493
        %527 = vst [vmem:[%s501 + $0x190] sm:$0xff] %v494
        %528 = vst [vmem:[%s501 + $0x1a8] sm:$0xff] %v495
        %529 = vst [vmem:[%s501 + $0x1b0] sm:$0xff] %v496
        %530 = vst [vmem:[%s501 + $0x1c8] sm:$0xff] %v497
        %531 = vst [vmem:[%s501 + $0x1d0] sm:$0xff] %v498
        %532 = vst [vmem:[%s501 + $0x1e8] sm:$0xff] %v499
        %533 = vst [vmem:[%s501 + $0x1f0] sm:$0xff] %v500
        %v534 = vld [vmem:[#allocation2 + $0x7] sm:$0xff]
        %v535 = vld [vmem:[#allocation2 + $0xf] sm:$0xff]
        %v536 = vld [vmem:[#allocation2 + $0x27] sm:$0xff]
        %v537 = vld [vmem:[#allocation2 + $0x2f] sm:$0xff]
        %v538 = vld [vmem:[#allocation2 + $0x47] sm:$0xff]
        %v539 = vld [vmem:[#allocation2 + $0x4f] sm:$0xff]
        %v540 = vld [vmem:[#allocation2 + $0x67] sm:$0xff]
        %v541 = vld [vmem:[#allocation2 + $0x6f] sm:$0xff]
        %v542 = vld [vmem:[#allocation2 + $0x87] sm:$0xff]
        %v543 = vld [vmem:[#allocation2 + $0x8f] sm:$0xff]
        %v544 = vld [vmem:[#allocation2 + $0xa7] sm:$0xff]
        %v545 = vld [vmem:[#allocation2 + $0xaf] sm:$0xff]
        %v546 = vld [vmem:[#allocation2 + $0xc7] sm:$0xff]
        %v547 = vld [vmem:[#allocation2 + $0xcf] sm:$0xff]
        %v548 = vld [vmem:[#allocation2 + $0xe7] sm:$0xff]
        %v549 = vld [vmem:[#allocation2 + $0xef] sm:$0xff]
        %v550 = vld [vmem:[#allocation2 + $0x107] sm:$0xff]
        %v551 = vld [vmem:[#allocation2 + $0x10f] sm:$0xff]
        %v552 = vld [vmem:[#allocation2 + $0x127] sm:$0xff]
        %v553 = vld [vmem:[#allocation2 + $0x12f] sm:$0xff]
        %v554 = vld [vmem:[#allocation2 + $0x147] sm:$0xff]
        %v555 = vld [vmem:[#allocation2 + $0x14f] sm:$0xff]
        %v556 = vld [vmem:[#allocation2 + $0x167] sm:$0xff]
        %v557 = vld [vmem:[#allocation2 + $0x16f] sm:$0xff]
        %v558 = vld [vmem:[#allocation2 + $0x187] sm:$0xff]
        %v559 = vld [vmem:[#allocation2 + $0x18f] sm:$0xff]
        %v560 = vld [vmem:[#allocation2 + $0x1a7] sm:$0xff]
        %v561 = vld [vmem:[#allocation2 + $0x1af] sm:$0xff]
        %v562 = vld [vmem:[#allocation2 + $0x1c7] sm:$0xff]
        %v563 = vld [vmem:[#allocation2 + $0x1cf] sm:$0xff]
        %v564 = vld [vmem:[#allocation2 + $0x1e7] sm:$0xff]
        %v565 = vld [vmem:[#allocation2 + $0x1ef] sm:$0xff]
        %v566 = vpack.c.bf16 %v535, %v534
        %v567 = vpack.c.bf16 %v537, %v536
        %v568 = vpack.c.bf16 %v539, %v538
        %v569 = vpack.c.bf16 %v541, %v540
        %v570 = vpack.c.bf16 %v543, %v542
        %v571 = vpack.c.bf16 %v545, %v544
        %v572 = vpack.c.bf16 %v547, %v546
        %v573 = vpack.c.bf16 %v549, %v548
        %v574 = vpack.c.bf16 %v551, %v550
        %v575 = vpack.c.bf16 %v553, %v552
        %v576 = vpack.c.bf16 %v555, %v554
        %v577 = vpack.c.bf16 %v557, %v556
        %v578 = vpack.c.bf16 %v559, %v558
        %v579 = vpack.c.bf16 %v561, %v560
        %v580 = vpack.c.bf16 %v563, %v562
        %v581 = vpack.c.bf16 %v565, %v564
        %v582 = vld [vmem:[#allocation2 + $0x8] sm:$0xff]
        %v583 = vld [vmem:[#allocation2 + $0x10] sm:$0xff]
        %v584 = vld [vmem:[#allocation2 + $0x28] sm:$0xff]
        %v585 = vld [vmem:[#allocation2 + $0x30] sm:$0xff]
        %v586 = vld [vmem:[#allocation2 + $0x48] sm:$0xff]
        %v587 = vld [vmem:[#allocation2 + $0x50] sm:$0xff]
        %v588 = vld [vmem:[#allocation2 + $0x68] sm:$0xff]
        %v589 = vld [vmem:[#allocation2 + $0x70] sm:$0xff]
        %v590 = vld [vmem:[#allocation2 + $0x88] sm:$0xff]
        %v591 = vld [vmem:[#allocation2 + $0x90] sm:$0xff]
        %v592 = vld [vmem:[#allocation2 + $0xa8] sm:$0xff]
        %v593 = vld [vmem:[#allocation2 + $0xb0] sm:$0xff]
        %v594 = vld [vmem:[#allocation2 + $0xc8] sm:$0xff]
        %v595 = vld [vmem:[#allocation2 + $0xd0] sm:$0xff]
        %v596 = vld [vmem:[#allocation2 + $0xe8] sm:$0xff]
        %v597 = vld [vmem:[#allocation2 + $0xf0] sm:$0xff]
        %v598 = vld [vmem:[#allocation2 + $0x108] sm:$0xff]
        %v599 = vld [vmem:[#allocation2 + $0x110] sm:$0xff]
        %v600 = vld [vmem:[#allocation2 + $0x128] sm:$0xff]
        %v601 = vld [vmem:[#allocation2 + $0x130] sm:$0xff]
        %v602 = vld [vmem:[#allocation2 + $0x148] sm:$0xff]
        %v603 = vld [vmem:[#allocation2 + $0x150] sm:$0xff]
        %v604 = vld [vmem:[#allocation2 + $0x168] sm:$0xff]
        %v605 = vld [vmem:[#allocation2 + $0x170] sm:$0xff]
        %v606 = vld [vmem:[#allocation2 + $0x188] sm:$0xff]
        %v607 = vld [vmem:[#allocation2 + $0x190] sm:$0xff]
        %v608 = vld [vmem:[#allocation2 + $0x1a8] sm:$0xff]
        %v609 = vld [vmem:[#allocation2 + $0x1b0] sm:$0xff]
        %v610 = vld [vmem:[#allocation2 + $0x1c8] sm:$0xff]
        %v611 = vld [vmem:[#allocation2 + $0x1d0] sm:$0xff]
        %v612 = vld [vmem:[#allocation2 + $0x1e8] sm:$0xff]
        %v613 = vld [vmem:[#allocation2 + $0x1f0] sm:$0xff]
        %v614 = vpack.c.bf16 %v583, %v582
        %v615 = vpack.c.bf16 %v585, %v584
        %v616 = vpack.c.bf16 %v587, %v586
        %v617 = vpack.c.bf16 %v589, %v588
        %v618 = vpack.c.bf16 %v591, %v590
        %v619 = vpack.c.bf16 %v593, %v592
        %v620 = vpack.c.bf16 %v595, %v594
        %v621 = vpack.c.bf16 %v597, %v596
        %v622 = vpack.c.bf16 %v599, %v598
        %v623 = vpack.c.bf16 %v601, %v600
        %v624 = vpack.c.bf16 %v603, %v602
        %v625 = vpack.c.bf16 %v605, %v604
        %v626 = vpack.c.bf16 %v607, %v606
        %v627 = vpack.c.bf16 %v609, %v608
        %v628 = vpack.c.bf16 %v611, %v610
        %v629 = vpack.c.bf16 %v613, %v612
        %v630 = vld [vmem:[#allocation2 + $0x9] sm:$0xff]
        %v631 = vld [vmem:[#allocation2 + $0x11] sm:$0xff]
        %v632 = vld [vmem:[#allocation2 + $0x29] sm:$0xff]
        %v633 = vld [vmem:[#allocation2 + $0x31] sm:$0xff]
        %v634 = vld [vmem:[#allocation2 + $0x49] sm:$0xff]
        %v635 = vld [vmem:[#allocation2 + $0x51] sm:$0xff]
        %v636 = vld [vmem:[#allocation2 + $0x69] sm:$0xff]
        %v637 = vld [vmem:[#allocation2 + $0x71] sm:$0xff]
        %v638 = vld [vmem:[#allocation2 + $0x89] sm:$0xff]
        %v639 = vld [vmem:[#allocation2 + $0x91] sm:$0xff]
        %v640 = vld [vmem:[#allocation2 + $0xa9] sm:$0xff]
        %v641 = vld [vmem:[#allocation2 + $0xb1] sm:$0xff]
        %v642 = vld [vmem:[#allocation2 + $0xc9] sm:$0xff]
        %v643 = vld [vmem:[#allocation2 + $0xd1] sm:$0xff]
        %v644 = vld [vmem:[#allocation2 + $0xe9] sm:$0xff]
        %v645 = vld [vmem:[#allocation2 + $0xf1] sm:$0xff]
        %v646 = vld [vmem:[#allocation2 + $0x109] sm:$0xff]
        %v647 = vld [vmem:[#allocation2 + $0x111] sm:$0xff]
        %v648 = vld [vmem:[#allocation2 + $0x129] sm:$0xff]
        %v649 = vld [vmem:[#allocation2 + $0x131] sm:$0xff]
        %v650 = vld [vmem:[#allocation2 + $0x149] sm:$0xff]
        %v651 = vld [vmem:[#allocation2 + $0x151] sm:$0xff]
        %v652 = vld [vmem:[#allocation2 + $0x169] sm:$0xff]
        %v653 = vld [vmem:[#allocation2 + $0x171] sm:$0xff]
        %v654 = vld [vmem:[#allocation2 + $0x189] sm:$0xff]
        %v655 = vld [vmem:[#allocation2 + $0x191] sm:$0xff]
        %v656 = vld [vmem:[#allocation2 + $0x1a9] sm:$0xff]
        %v657 = vld [vmem:[#allocation2 + $0x1b1] sm:$0xff]
        %v658 = vld [vmem:[#allocation2 + $0x1c9] sm:$0xff]
        %v659 = vld [vmem:[#allocation2 + $0x1d1] sm:$0xff]
        %v660 = vld [vmem:[#allocation2 + $0x1e9] sm:$0xff]
        %v661 = vld [vmem:[#allocation2 + $0x1f1] sm:$0xff]
        %v662 = vpack.c.bf16 %v631, %v630
        %v663 = vpack.c.bf16 %v633, %v632
        %v664 = vpack.c.bf16 %v635, %v634
        %v665 = vpack.c.bf16 %v637, %v636
        %v666 = vpack.c.bf16 %v639, %v638
        %v667 = vpack.c.bf16 %v641, %v640
        %v668 = vpack.c.bf16 %v643, %v642
        %v669 = vpack.c.bf16 %v645, %v644
        %v670 = vpack.c.bf16 %v647, %v646
        %v671 = vpack.c.bf16 %v649, %v648
        %v672 = vpack.c.bf16 %v651, %v650
        %v673 = vpack.c.bf16 %v653, %v652
        %v674 = vpack.c.bf16 %v655, %v654
        %v675 = vpack.c.bf16 %v657, %v656
        %v676 = vpack.c.bf16 %v659, %v658
        %v677 = vpack.c.bf16 %v661, %v660
        %v678 = vld [vmem:[%s501 + $0x7] sm:$0xff]
        %v679 = vld [vmem:[%s501 + $0xf] sm:$0xff]
        %v680 = vld [vmem:[%s501 + $0x27] sm:$0xff]
        %v681 = vld [vmem:[%s501 + $0x2f] sm:$0xff]
        %v682 = vld [vmem:[%s501 + $0x47] sm:$0xff]
        %v683 = vld [vmem:[%s501 + $0x4f] sm:$0xff]
        %v684 = vld [vmem:[%s501 + $0x67] sm:$0xff]
        %v685 = vld [vmem:[%s501 + $0x6f] sm:$0xff]
        %v686 = vld [vmem:[%s501 + $0x87] sm:$0xff]
        %v687 = vld [vmem:[%s501 + $0x8f] sm:$0xff]
        %v688 = vld [vmem:[%s501 + $0xa7] sm:$0xff]
        %v689 = vld [vmem:[%s501 + $0xaf] sm:$0xff]
        %v690 = vld [vmem:[%s501 + $0xc7] sm:$0xff]
        %v691 = vld [vmem:[%s501 + $0xcf] sm:$0xff]
        %v692 = vld [vmem:[%s501 + $0xe7] sm:$0xff]
        %v693 = vld [vmem:[%s501 + $0xef] sm:$0xff]
        %v694 = vld [vmem:[%s501 + $0x107] sm:$0xff]
        %v695 = vld [vmem:[%s501 + $0x10f] sm:$0xff]
        %v696 = vld [vmem:[%s501 + $0x127] sm:$0xff]
        %v697 = vld [vmem:[%s501 + $0x12f] sm:$0xff]
        %v698 = vld [vmem:[%s501 + $0x147] sm:$0xff]
        %v699 = vld [vmem:[%s501 + $0x14f] sm:$0xff]
        %v700 = vld [vmem:[%s501 + $0x167] sm:$0xff]
        %v701 = vld [vmem:[%s501 + $0x16f] sm:$0xff]
        %v702 = vld [vmem:[%s501 + $0x187] sm:$0xff]
        %v703 = vld [vmem:[%s501 + $0x18f] sm:$0xff]
        %v704 = vld [vmem:[%s501 + $0x1a7] sm:$0xff]
        %v705 = vld [vmem:[%s501 + $0x1af] sm:$0xff]
        %v706 = vld [vmem:[%s501 + $0x1c7] sm:$0xff]
        %v707 = vld [vmem:[%s501 + $0x1cf] sm:$0xff]
        %v708 = vld [vmem:[%s501 + $0x1e7] sm:$0xff]
        %v709 = vld [vmem:[%s501 + $0x1ef] sm:$0xff]
        %v710 = vpack.c.bf16 %v679, %v678
        %v711 = vpack.c.bf16 %v681, %v680
        %v712 = vpack.c.bf16 %v683, %v682
        %v713 = vpack.c.bf16 %v685, %v684
        %v714 = vpack.c.bf16 %v687, %v686
        %v715 = vpack.c.bf16 %v689, %v688
        %v716 = vpack.c.bf16 %v691, %v690
        %v717 = vpack.c.bf16 %v693, %v692
        %v718 = vpack.c.bf16 %v695, %v694
        %v719 = vpack.c.bf16 %v697, %v696
        %v720 = vpack.c.bf16 %v699, %v698
        %v721 = vpack.c.bf16 %v701, %v700
        %v722 = vpack.c.bf16 %v703, %v702
        %v723 = vpack.c.bf16 %v705, %v704
        %v724 = vpack.c.bf16 %v707, %v706
        %v725 = vpack.c.bf16 %v709, %v708
        %v726 = vld [vmem:[%s501 + $0x8] sm:$0xff]
        %v727 = vld [vmem:[%s501 + $0x10] sm:$0xff]
        %v728 = vld [vmem:[%s501 + $0x28] sm:$0xff]
        %v729 = vld [vmem:[%s501 + $0x30] sm:$0xff]
        %v730 = vld [vmem:[%s501 + $0x48] sm:$0xff]
        %v731 = vld [vmem:[%s501 + $0x50] sm:$0xff]
        %v732 = vld [vmem:[%s501 + $0x68] sm:$0xff]
        %v733 = vld [vmem:[%s501 + $0x70] sm:$0xff]
        %v734 = vld [vmem:[%s501 + $0x88] sm:$0xff]
        %v735 = vld [vmem:[%s501 + $0x90] sm:$0xff]
        %v736 = vld [vmem:[%s501 + $0xa8] sm:$0xff]
        %v737 = vld [vmem:[%s501 + $0xb0] sm:$0xff]
        %v738 = vld [vmem:[%s501 + $0xc8] sm:$0xff]
        %v739 = vld [vmem:[%s501 + $0xd0] sm:$0xff]
        %v740 = vld [vmem:[%s501 + $0xe8] sm:$0xff]
        %v741 = vld [vmem:[%s501 + $0xf0] sm:$0xff]
        %v742 = vld [vmem:[%s501 + $0x108] sm:$0xff]
        %v743 = vld [vmem:[%s501 + $0x110] sm:$0xff]
        %v744 = vld [vmem:[%s501 + $0x128] sm:$0xff]
        %v745 = vld [vmem:[%s501 + $0x130] sm:$0xff]
        %v746 = vld [vmem:[%s501 + $0x148] sm:$0xff]
        %v747 = vld [vmem:[%s501 + $0x150] sm:$0xff]
        %v748 = vld [vmem:[%s501 + $0x168] sm:$0xff]
        %v749 = vld [vmem:[%s501 + $0x170] sm:$0xff]
        %v750 = vld [vmem:[%s501 + $0x188] sm:$0xff]
        %v751 = vld [vmem:[%s501 + $0x190] sm:$0xff]
        %v752 = vld [vmem:[%s501 + $0x1a8] sm:$0xff]
        %v753 = vld [vmem:[%s501 + $0x1b0] sm:$0xff]
        %v754 = vld [vmem:[%s501 + $0x1c8] sm:$0xff]
        %v755 = vld [vmem:[%s501 + $0x1d0] sm:$0xff]
        %v756 = vld [vmem:[%s501 + $0x1e8] sm:$0xff]
        %v757 = vld [vmem:[%s501 + $0x1f0] sm:$0xff]
        %v758 = vpack.c.bf16 %v727, %v726
        %v759 = vpack.c.bf16 %v729, %v728
        %v760 = vpack.c.bf16 %v731, %v730
        %v761 = vpack.c.bf16 %v733, %v732
        %v762 = vpack.c.bf16 %v735, %v734
        %v763 = vpack.c.bf16 %v737, %v736
        %v764 = vpack.c.bf16 %v739, %v738
        %v765 = vpack.c.bf16 %v741, %v740
        %v766 = vpack.c.bf16 %v743, %v742
        %v767 = vpack.c.bf16 %v745, %v744
        %v768 = vpack.c.bf16 %v747, %v746
        %v769 = vpack.c.bf16 %v749, %v748
        %v770 = vpack.c.bf16 %v751, %v750
        %v771 = vpack.c.bf16 %v753, %v752
        %v772 = vpack.c.bf16 %v755, %v754
        %v773 = vpack.c.bf16 %v757, %v756
        %v774 = vld [vmem:[%s501 + $0x9] sm:$0xff]
        %v775 = vld [vmem:[%s501 + $0x11] sm:$0xff]
        %v776 = vld [vmem:[%s501 + $0x29] sm:$0xff]
        %v777 = vld [vmem:[%s501 + $0x31] sm:$0xff]
        %v778 = vld [vmem:[%s501 + $0x49] sm:$0xff]
        %v779 = vld [vmem:[%s501 + $0x51] sm:$0xff]
        %v780 = vld [vmem:[%s501 + $0x69] sm:$0xff]
        %v781 = vld [vmem:[%s501 + $0x71] sm:$0xff]
        %v782 = vld [vmem:[%s501 + $0x89] sm:$0xff]
        %v783 = vld [vmem:[%s501 + $0x91] sm:$0xff]
        %v784 = vld [vmem:[%s501 + $0xa9] sm:$0xff]
        %v785 = vld [vmem:[%s501 + $0xb1] sm:$0xff]
        %v786 = vld [vmem:[%s501 + $0xc9] sm:$0xff]
        %v787 = vld [vmem:[%s501 + $0xd1] sm:$0xff]
        %v788 = vld [vmem:[%s501 + $0xe9] sm:$0xff]
        %v789 = vld [vmem:[%s501 + $0xf1] sm:$0xff]
        %v790 = vld [vmem:[%s501 + $0x109] sm:$0xff]
        %v791 = vld [vmem:[%s501 + $0x111] sm:$0xff]
        %v792 = vld [vmem:[%s501 + $0x129] sm:$0xff]
        %v793 = vld [vmem:[%s501 + $0x131] sm:$0xff]
        %v794 = vld [vmem:[%s501 + $0x149] sm:$0xff]
        %v795 = vld [vmem:[%s501 + $0x151] sm:$0xff]
        %v796 = vld [vmem:[%s501 + $0x169] sm:$0xff]
        %v797 = vld [vmem:[%s501 + $0x171] sm:$0xff]
        %v798 = vld [vmem:[%s501 + $0x189] sm:$0xff]
        %v799 = vld [vmem:[%s501 + $0x191] sm:$0xff]
        %v800 = vld [vmem:[%s501 + $0x1a9] sm:$0xff]
        %v801 = vld [vmem:[%s501 + $0x1b1] sm:$0xff]
        %v802 = vld [vmem:[%s501 + $0x1c9] sm:$0xff]
        %v803 = vld [vmem:[%s501 + $0x1d1] sm:$0xff]
        %v804 = vld [vmem:[%s501 + $0x1e9] sm:$0xff]
        %v805 = vld [vmem:[%s501 + $0x1f1] sm:$0xff]
        %v806 = vpack.c.bf16 %v775, %v774
        %v807 = vpack.c.bf16 %v777, %v776
        %v808 = vpack.c.bf16 %v779, %v778
        %v809 = vpack.c.bf16 %v781, %v780
        %v810 = vpack.c.bf16 %v783, %v782
        %v811 = vpack.c.bf16 %v785, %v784
        %v812 = vpack.c.bf16 %v787, %v786
        %v813 = vpack.c.bf16 %v789, %v788
        %v814 = vpack.c.bf16 %v791, %v790
        %v815 = vpack.c.bf16 %v793, %v792
        %v816 = vpack.c.bf16 %v795, %v794
        %v817 = vpack.c.bf16 %v797, %v796
        %v818 = vpack.c.bf16 %v799, %v798
        %v819 = vpack.c.bf16 %v801, %v800
        %v820 = vpack.c.bf16 %v803, %v802
        %v821 = vpack.c.bf16 %v805, %v804
        %s822 = scalar_lea.vmem [#allocation2], 64
        %v823 = vld [vmem:[%s822 + $0x7] sm:$0xff]
        %v824 = vld [vmem:[%s822 + $0xf] sm:$0xff]
        %v825 = vld [vmem:[%s822 + $0x27] sm:$0xff]
        %v826 = vld [vmem:[%s822 + $0x2f] sm:$0xff]
        %v827 = vld [vmem:[%s822 + $0x47] sm:$0xff]
        %v828 = vld [vmem:[%s822 + $0x4f] sm:$0xff]
        %v829 = vld [vmem:[%s822 + $0x67] sm:$0xff]
        %v830 = vld [vmem:[%s822 + $0x6f] sm:$0xff]
        %v831 = vld [vmem:[%s822 + $0x87] sm:$0xff]
        %v832 = vld [vmem:[%s822 + $0x8f] sm:$0xff]
        %v833 = vld [vmem:[%s822 + $0xa7] sm:$0xff]
        %v834 = vld [vmem:[%s822 + $0xaf] sm:$0xff]
        %v835 = vld [vmem:[%s822 + $0xc7] sm:$0xff]
        %v836 = vld [vmem:[%s822 + $0xcf] sm:$0xff]
        %v837 = vld [vmem:[%s822 + $0xe7] sm:$0xff]
        %v838 = vld [vmem:[%s822 + $0xef] sm:$0xff]
        %v839 = vld [vmem:[%s822 + $0x107] sm:$0xff]
        %v840 = vld [vmem:[%s822 + $0x10f] sm:$0xff]
        %v841 = vld [vmem:[%s822 + $0x127] sm:$0xff]
        %v842 = vld [vmem:[%s822 + $0x12f] sm:$0xff]
        %v843 = vld [vmem:[%s822 + $0x147] sm:$0xff]
        %v844 = vld [vmem:[%s822 + $0x14f] sm:$0xff]
        %v845 = vld [vmem:[%s822 + $0x167] sm:$0xff]
        %v846 = vld [vmem:[%s822 + $0x16f] sm:$0xff]
        %v847 = vld [vmem:[%s822 + $0x187] sm:$0xff]
        %v848 = vld [vmem:[%s822 + $0x18f] sm:$0xff]
        %v849 = vld [vmem:[%s822 + $0x1a7] sm:$0xff]
        %v850 = vld [vmem:[%s822 + $0x1af] sm:$0xff]
        %v851 = vld [vmem:[%s822 + $0x1c7] sm:$0xff]
        %v852 = vld [vmem:[%s822 + $0x1cf] sm:$0xff]
        %v853 = vld [vmem:[%s822 + $0x1e7] sm:$0xff]
        %v854 = vld [vmem:[%s822 + $0x1ef] sm:$0xff]
        %v855 = vpack.c.bf16 %v824, %v823
        %v856 = vpack.c.bf16 %v826, %v825
        %v857 = vpack.c.bf16 %v828, %v827
        %v858 = vpack.c.bf16 %v830, %v829
        %v859 = vpack.c.bf16 %v832, %v831
        %v860 = vpack.c.bf16 %v834, %v833
        %v861 = vpack.c.bf16 %v836, %v835
        %v862 = vpack.c.bf16 %v838, %v837
        %v863 = vpack.c.bf16 %v840, %v839
        %v864 = vpack.c.bf16 %v842, %v841
        %v865 = vpack.c.bf16 %v844, %v843
        %v866 = vpack.c.bf16 %v846, %v845
        %v867 = vpack.c.bf16 %v848, %v847
        %v868 = vpack.c.bf16 %v850, %v849
        %v869 = vpack.c.bf16 %v852, %v851
        %v870 = vpack.c.bf16 %v854, %v853
        %v871 = vld [vmem:[%s822 + $0x8] sm:$0xff]
        %v872 = vld [vmem:[%s822 + $0x10] sm:$0xff]
        %v873 = vld [vmem:[%s822 + $0x28] sm:$0xff]
        %v874 = vld [vmem:[%s822 + $0x30] sm:$0xff]
        %v875 = vld [vmem:[%s822 + $0x48] sm:$0xff]
        %v876 = vld [vmem:[%s822 + $0x50] sm:$0xff]
        %v877 = vld [vmem:[%s822 + $0x68] sm:$0xff]
        %v878 = vld [vmem:[%s822 + $0x70] sm:$0xff]
        %v879 = vld [vmem:[%s822 + $0x88] sm:$0xff]
        %v880 = vld [vmem:[%s822 + $0x90] sm:$0xff]
        %v881 = vld [vmem:[%s822 + $0xa8] sm:$0xff]
        %v882 = vld [vmem:[%s822 + $0xb0] sm:$0xff]
        %v883 = vld [vmem:[%s822 + $0xc8] sm:$0xff]
        %v884 = vld [vmem:[%s822 + $0xd0] sm:$0xff]
        %v885 = vld [vmem:[%s822 + $0xe8] sm:$0xff]
        %v886 = vld [vmem:[%s822 + $0xf0] sm:$0xff]
        %v887 = vld [vmem:[%s822 + $0x108] sm:$0xff]
        %v888 = vld [vmem:[%s822 + $0x110] sm:$0xff]
        %v889 = vld [vmem:[%s822 + $0x128] sm:$0xff]
        %v890 = vld [vmem:[%s822 + $0x130] sm:$0xff]
        %v891 = vld [vmem:[%s822 + $0x148] sm:$0xff]
        %v892 = vld [vmem:[%s822 + $0x150] sm:$0xff]
        %v893 = vld [vmem:[%s822 + $0x168] sm:$0xff]
        %v894 = vld [vmem:[%s822 + $0x170] sm:$0xff]
        %v895 = vld [vmem:[%s822 + $0x188] sm:$0xff]
        %v896 = vld [vmem:[%s822 + $0x190] sm:$0xff]
        %v897 = vld [vmem:[%s822 + $0x1a8] sm:$0xff]
        %v898 = vld [vmem:[%s822 + $0x1b0] sm:$0xff]
        %v899 = vld [vmem:[%s822 + $0x1c8] sm:$0xff]
        %v900 = vld [vmem:[%s822 + $0x1d0] sm:$0xff]
        %v901 = vld [vmem:[%s822 + $0x1e8] sm:$0xff]
        %v902 = vld [vmem:[%s822 + $0x1f0] sm:$0xff]
        %v903 = vpack.c.bf16 %v872, %v871
        %v904 = vpack.c.bf16 %v874, %v873
        %v905 = vpack.c.bf16 %v876, %v875
        %v906 = vpack.c.bf16 %v878, %v877
        %v907 = vpack.c.bf16 %v880, %v879
        %v908 = vpack.c.bf16 %v882, %v881
        %v909 = vpack.c.bf16 %v884, %v883
        %v910 = vpack.c.bf16 %v886, %v885
        %v911 = vpack.c.bf16 %v888, %v887
        %v912 = vpack.c.bf16 %v890, %v889
        %v913 = vpack.c.bf16 %v892, %v891
        %v914 = vpack.c.bf16 %v894, %v893
        %v915 = vpack.c.bf16 %v896, %v895
        %v916 = vpack.c.bf16 %v898, %v897
        %v917 = vpack.c.bf16 %v900, %v899
        %v918 = vpack.c.bf16 %v902, %v901
        %v919 = vld [vmem:[%s822 + $0x9] sm:$0xff]
        %v920 = vld [vmem:[%s822 + $0x11] sm:$0xff]
        %v921 = vld [vmem:[%s822 + $0x29] sm:$0xff]
        %v922 = vld [vmem:[%s822 + $0x31] sm:$0xff]
        %v923 = vld [vmem:[%s822 + $0x49] sm:$0xff]
        %v924 = vld [vmem:[%s822 + $0x51] sm:$0xff]
        %v925 = vld [vmem:[%s822 + $0x69] sm:$0xff]
        %v926 = vld [vmem:[%s822 + $0x71] sm:$0xff]
        %v927 = vld [vmem:[%s822 + $0x89] sm:$0xff]
        %v928 = vld [vmem:[%s822 + $0x91] sm:$0xff]
        %v929 = vld [vmem:[%s822 + $0xa9] sm:$0xff]
        %v930 = vld [vmem:[%s822 + $0xb1] sm:$0xff]
        %v931 = vld [vmem:[%s822 + $0xc9] sm:$0xff]
        %v932 = vld [vmem:[%s822 + $0xd1] sm:$0xff]
        %v933 = vld [vmem:[%s822 + $0xe9] sm:$0xff]
        %v934 = vld [vmem:[%s822 + $0xf1] sm:$0xff]
        %v935 = vld [vmem:[%s822 + $0x109] sm:$0xff]
        %v936 = vld [vmem:[%s822 + $0x111] sm:$0xff]
        %v937 = vld [vmem:[%s822 + $0x129] sm:$0xff]
        %v938 = vld [vmem:[%s822 + $0x131] sm:$0xff]
        %v939 = vld [vmem:[%s822 + $0x149] sm:$0xff]
        %v940 = vld [vmem:[%s822 + $0x151] sm:$0xff]
        %v941 = vld [vmem:[%s822 + $0x169] sm:$0xff]
        %v942 = vld [vmem:[%s822 + $0x171] sm:$0xff]
        %v943 = vld [vmem:[%s822 + $0x189] sm:$0xff]
        %v944 = vld [vmem:[%s822 + $0x191] sm:$0xff]
        %v945 = vld [vmem:[%s822 + $0x1a9] sm:$0xff]
        %v946 = vld [vmem:[%s822 + $0x1b1] sm:$0xff]
        %v947 = vld [vmem:[%s822 + $0x1c9] sm:$0xff]
        %v948 = vld [vmem:[%s822 + $0x1d1] sm:$0xff]
        %v949 = vld [vmem:[%s822 + $0x1e9] sm:$0xff]
        %v950 = vld [vmem:[%s822 + $0x1f1] sm:$0xff]
        %v951 = vpack.c.bf16 %v920, %v919
        %v952 = vpack.c.bf16 %v922, %v921
        %v953 = vpack.c.bf16 %v924, %v923
        %v954 = vpack.c.bf16 %v926, %v925
        %v955 = vpack.c.bf16 %v928, %v927
        %v956 = vpack.c.bf16 %v930, %v929
        %v957 = vpack.c.bf16 %v932, %v931
        %v958 = vpack.c.bf16 %v934, %v933
        %v959 = vpack.c.bf16 %v936, %v935
        %v960 = vpack.c.bf16 %v938, %v937
        %v961 = vpack.c.bf16 %v940, %v939
        %v962 = vpack.c.bf16 %v942, %v941
        %v963 = vpack.c.bf16 %v944, %v943
        %v964 = vpack.c.bf16 %v946, %v945
        %v965 = vpack.c.bf16 %v948, %v947
        %v966 = vpack.c.bf16 %v950, %v949
        %v967 = vld [vmem:[#allocation4] sm:$0xf]
        %v968 = vld [vmem:[#allocation4 + $0x4] sm:$0xf]
        %v969 = vld [vmem:[#allocation4 + $0x8] sm:$0xf]
        %v970 = vld [vmem:[#allocation4 + $0xc] sm:$0xf]
        %v971 = vld [vmem:[#allocation4 + $0x10] sm:$0xf]
        %v972 = vld [vmem:[#allocation4 + $0x14] sm:$0xf]
        %v973 = vld [vmem:[#allocation4 + $0x18] sm:$0xf]
        %v974 = vld [vmem:[#allocation4 + $0x1c] sm:$0xf]
        %v975 = vld [vmem:[#allocation4 + $0x20] sm:$0xf]
        %v976 = vld [vmem:[#allocation4 + $0x24] sm:$0xf]
        %v977 = vld [vmem:[#allocation4 + $0x28] sm:$0xf]
        %v978 = vld [vmem:[#allocation4 + $0x2c] sm:$0xf]
        %v979 = vld [vmem:[#allocation4 + $0x30] sm:$0xf]
        %v980 = vld [vmem:[#allocation4 + $0x34] sm:$0xf]
        %v981 = vld [vmem:[#allocation4 + $0x38] sm:$0xf]
        %v982 = vld [vmem:[#allocation4 + $0x3c] sm:$0xf]
        %v983 = vld [vmem:[#allocation4 + $0x40] sm:$0xf]
        %v984 = vld [vmem:[#allocation4 + $0x44] sm:$0xf]
        %v985 = vld [vmem:[#allocation4 + $0x48] sm:$0xf]
        %v986 = vld [vmem:[#allocation4 + $0x4c] sm:$0xf]
        %v987 = vld [vmem:[#allocation4 + $0x50] sm:$0xf]
        %v988 = vld [vmem:[#allocation4 + $0x54] sm:$0xf]
        %v989 = vld [vmem:[#allocation4 + $0x58] sm:$0xf]
        %v990 = vld [vmem:[#allocation4 + $0x5c] sm:$0xf]
        %v991 = vld [vmem:[#allocation4 + $0x60] sm:$0xf]
        %v992 = vld [vmem:[#allocation4 + $0x64] sm:$0xf]
        %v993 = vld [vmem:[#allocation4 + $0x68] sm:$0xf]
        %v994 = vld [vmem:[#allocation4 + $0x6c] sm:$0xf]
        %v995 = vld [vmem:[#allocation4 + $0x70] sm:$0xf]
        %v996 = vld [vmem:[#allocation4 + $0x74] sm:$0xf]
        %v997 = vld [vmem:[#allocation4 + $0x78] sm:$0xf]
        %v998 = vld [vmem:[#allocation4 + $0x7c] sm:$0xf]
        %v999 = vld [vmem:[#allocation4 + $0x80] sm:$0xf]
        %v1000 = vld [vmem:[#allocation4 + $0x84] sm:$0xf]
        %v1001 = vld [vmem:[#allocation4 + $0x88] sm:$0xf]
        %v1002 = vld [vmem:[#allocation4 + $0x8c] sm:$0xf]
        %v1003 = vld [vmem:[#allocation4 + $0x90] sm:$0xf]
        %v1004 = vld [vmem:[#allocation4 + $0x94] sm:$0xf]
        %v1005 = vld [vmem:[#allocation4 + $0x98] sm:$0xf]
        %v1006 = vld [vmem:[#allocation4 + $0x9c] sm:$0xf]
        %v1007 = vld [vmem:[#allocation4 + $0xa0] sm:$0xf]
        %v1008 = vld [vmem:[#allocation4 + $0xa4] sm:$0xf]
        %v1009 = vld [vmem:[#allocation4 + $0xa8] sm:$0xf]
        %v1010 = vld [vmem:[#allocation4 + $0xac] sm:$0xf]
        %v1011 = vld [vmem:[#allocation4 + $0xb0] sm:$0xf]
        %v1012 = vld [vmem:[#allocation4 + $0xb4] sm:$0xf]
        %v1013 = vld [vmem:[#allocation4 + $0xb8] sm:$0xf]
        %v1014 = vld [vmem:[#allocation4 + $0xbc] sm:$0xf]
        %v1015 = vld [vmem:[#allocation4 + $0xc0] sm:$0xf]
        %v1016 = vld [vmem:[#allocation4 + $0xc4] sm:$0xf]
        %v1017 = vld [vmem:[#allocation4 + $0xc8] sm:$0xf]
        %v1018 = vld [vmem:[#allocation4 + $0xcc] sm:$0xf]
        %v1019 = vld [vmem:[#allocation4 + $0xd0] sm:$0xf]
        %v1020 = vld [vmem:[#allocation4 + $0xd4] sm:$0xf]
        %v1021 = vld [vmem:[#allocation4 + $0xd8] sm:$0xf]
        %v1022 = vld [vmem:[#allocation4 + $0xdc] sm:$0xf]
        %v1023 = vld [vmem:[#allocation4 + $0xe0] sm:$0xf]
        %v1024 = vld [vmem:[#allocation4 + $0xe4] sm:$0xf]
        %v1025 = vld [vmem:[#allocation4 + $0xe8] sm:$0xf]
        %v1026 = vld [vmem:[#allocation4 + $0xec] sm:$0xf]
        %v1027 = vld [vmem:[#allocation4 + $0xf0] sm:$0xf]
        %v1028 = vld [vmem:[#allocation4 + $0xf4] sm:$0xf]
        %v1029 = vld [vmem:[#allocation4 + $0xf8] sm:$0xf]
        %v1030 = vld [vmem:[#allocation4 + $0xfc] sm:$0xf]
        %v1031 = vld [vmem:[#allocation4 + $0x100] sm:$0xf]
        %v1032 = vld [vmem:[#allocation4 + $0x104] sm:$0xf]
        %v1033 = vld [vmem:[#allocation4 + $0x108] sm:$0xf]
        %v1034 = vld [vmem:[#allocation4 + $0x10c] sm:$0xf]
        %v1035 = vld [vmem:[#allocation4 + $0x110] sm:$0xf]
        %v1036 = vld [vmem:[#allocation4 + $0x114] sm:$0xf]
        %v1037 = vld [vmem:[#allocation4 + $0x118] sm:$0xf]
        %v1038 = vld [vmem:[#allocation4 + $0x11c] sm:$0xf]
        %v1039 = vld [vmem:[#allocation4 + $0x120] sm:$0xf]
        %v1040 = vld [vmem:[#allocation4 + $0x124] sm:$0xf]
        %v1041 = vld [vmem:[#allocation4 + $0x128] sm:$0xf]
        %v1042 = vld [vmem:[#allocation4 + $0x12c] sm:$0xf]
        %v1043 = vld [vmem:[#allocation4 + $0x130] sm:$0xf]
        %v1044 = vld [vmem:[#allocation4 + $0x134] sm:$0xf]
        %v1045 = vld [vmem:[#allocation4 + $0x138] sm:$0xf]
        %v1046 = vld [vmem:[#allocation4 + $0x13c] sm:$0xf]
        %v1047 = vld [vmem:[#allocation4 + $0x140] sm:$0xf]
        %v1048 = vld [vmem:[#allocation4 + $0x144] sm:$0xf]
        %v1049 = vld [vmem:[#allocation4 + $0x148] sm:$0xf]
        %v1050 = vld [vmem:[#allocation4 + $0x14c] sm:$0xf]
        %v1051 = vld [vmem:[#allocation4 + $0x150] sm:$0xf]
        %v1052 = vld [vmem:[#allocation4 + $0x154] sm:$0xf]
        %v1053 = vld [vmem:[#allocation4 + $0x158] sm:$0xf]
        %v1054 = vld [vmem:[#allocation4 + $0x15c] sm:$0xf]
        %v1055 = vld [vmem:[#allocation4 + $0x160] sm:$0xf]
        %v1056 = vld [vmem:[#allocation4 + $0x164] sm:$0xf]
        %v1057 = vld [vmem:[#allocation4 + $0x168] sm:$0xf]
        %v1058 = vld [vmem:[#allocation4 + $0x16c] sm:$0xf]
        %v1059 = vld [vmem:[#allocation4 + $0x170] sm:$0xf]
        %v1060 = vld [vmem:[#allocation4 + $0x174] sm:$0xf]
        %v1061 = vld [vmem:[#allocation4 + $0x178] sm:$0xf]
        %v1062 = vld [vmem:[#allocation4 + $0x17c] sm:$0xf]
        %v1063 = vld [vmem:[#allocation4 + $0x180] sm:$0xf]
        %v1064 = vld [vmem:[#allocation4 + $0x184] sm:$0xf]
        %v1065 = vld [vmem:[#allocation4 + $0x188] sm:$0xf]
        %v1066 = vld [vmem:[#allocation4 + $0x18c] sm:$0xf]
        %v1067 = vld [vmem:[#allocation4 + $0x190] sm:$0xf]
        %v1068 = vld [vmem:[#allocation4 + $0x194] sm:$0xf]
        %v1069 = vld [vmem:[#allocation4 + $0x198] sm:$0xf]
        %v1070 = vld [vmem:[#allocation4 + $0x19c] sm:$0xf]
        %v1071 = vld [vmem:[#allocation4 + $0x1a0] sm:$0xf]
        %v1072 = vld [vmem:[#allocation4 + $0x1a4] sm:$0xf]
        %v1073 = vld [vmem:[#allocation4 + $0x1a8] sm:$0xf]
        %v1074 = vld [vmem:[#allocation4 + $0x1ac] sm:$0xf]
        %v1075 = vld [vmem:[#allocation4 + $0x1b0] sm:$0xf]
        %v1076 = vld [vmem:[#allocation4 + $0x1b4] sm:$0xf]
        %v1077 = vld [vmem:[#allocation4 + $0x1b8] sm:$0xf]
        %v1078 = vld [vmem:[#allocation4 + $0x1bc] sm:$0xf]
        %v1079 = vld [vmem:[#allocation4 + $0x1c0] sm:$0xf]
        %v1080 = vld [vmem:[#allocation4 + $0x1c4] sm:$0xf]
        %v1081 = vld [vmem:[#allocation4 + $0x1c8] sm:$0xf]
        %v1082 = vld [vmem:[#allocation4 + $0x1cc] sm:$0xf]
        %v1083 = vld [vmem:[#allocation4 + $0x1d0] sm:$0xf]
        %v1084 = vld [vmem:[#allocation4 + $0x1d4] sm:$0xf]
        %v1085 = vld [vmem:[#allocation4 + $0x1d8] sm:$0xf]
        %v1086 = vld [vmem:[#allocation4 + $0x1dc] sm:$0xf]
        %v1087 = vld [vmem:[#allocation4 + $0x1e0] sm:$0xf]
        %v1088 = vld [vmem:[#allocation4 + $0x1e4] sm:$0xf]
        %v1089 = vld [vmem:[#allocation4 + $0x1e8] sm:$0xf]
        %v1090 = vld [vmem:[#allocation4 + $0x1ec] sm:$0xf]
        %v1091 = vld [vmem:[#allocation4 + $0x1f0] sm:$0xf]
        %v1092 = vld [vmem:[#allocation4 + $0x1f4] sm:$0xf]
        %v1093 = vld [vmem:[#allocation4 + $0x1f8] sm:$0xf]
        %v1094 = vld [vmem:[#allocation4 + $0x1fc] sm:$0xf]
        %v1095 = vld [vmem:[#allocation4 + $0x200] sm:$0xf]
        %v1096 = vld [vmem:[#allocation4 + $0x204] sm:$0xf]
        %v1097 = vld [vmem:[#allocation4 + $0x208] sm:$0xf]
        %v1098 = vld [vmem:[#allocation4 + $0x20c] sm:$0xf]
        %v1099 = vld [vmem:[#allocation4 + $0x210] sm:$0xf]
        %v1100 = vld [vmem:[#allocation4 + $0x214] sm:$0xf]
        %v1101 = vld [vmem:[#allocation4 + $0x218] sm:$0xf]
        %v1102 = vld [vmem:[#allocation4 + $0x21c] sm:$0xf]
        %v1103 = vld [vmem:[#allocation4 + $0x220] sm:$0xf]
        %v1104 = vld [vmem:[#allocation4 + $0x224] sm:$0xf]
        %v1105 = vld [vmem:[#allocation4 + $0x228] sm:$0xf]
        %v1106 = vld [vmem:[#allocation4 + $0x22c] sm:$0xf]
        %v1107 = vld [vmem:[#allocation4 + $0x230] sm:$0xf]
        %v1108 = vld [vmem:[#allocation4 + $0x234] sm:$0xf]
        %v1109 = vld [vmem:[#allocation4 + $0x238] sm:$0xf]
        %v1110 = vld [vmem:[#allocation4 + $0x23c] sm:$0xf]
        %v1255 = vunpack.c.l.b16 %v967
        %v1256 = vunpack.c.l.b16 %v968
        %v1257 = vunpack.c.l.b16 %v969
        %v1258 = vunpack.c.l.b16 %v970
        %v1259 = vunpack.c.l.b16 %v971
        %v1260 = vunpack.c.l.b16 %v972
        %v1261 = vunpack.c.l.b16 %v973
        %v1262 = vunpack.c.l.b16 %v974
        %v1263 = vunpack.c.l.b16 %v975
        %v1264 = vunpack.c.l.b16 %v976
        %v1265 = vunpack.c.l.b16 %v977
        %v1266 = vunpack.c.l.b16 %v978
        %v1267 = vunpack.c.l.b16 %v979
        %v1268 = vunpack.c.l.b16 %v980
        %v1269 = vunpack.c.l.b16 %v981
        %v1270 = vunpack.c.l.b16 %v982
        %v1271 = vunpack.c.l.b16 %v983
        %v1272 = vunpack.c.l.b16 %v984
        %v1273 = vunpack.c.l.b16 %v985
        %v1274 = vunpack.c.l.b16 %v986
        %v1275 = vunpack.c.l.b16 %v987
        %v1276 = vunpack.c.l.b16 %v988
        %v1277 = vunpack.c.l.b16 %v989
        %v1278 = vunpack.c.l.b16 %v990
        %v1279 = vunpack.c.l.b16 %v991
        %v1280 = vunpack.c.l.b16 %v992
        %v1281 = vunpack.c.l.b16 %v993
        %v1282 = vunpack.c.l.b16 %v994
        %v1283 = vunpack.c.l.b16 %v995
        %v1284 = vunpack.c.l.b16 %v996
        %v1285 = vunpack.c.l.b16 %v997
        %v1286 = vunpack.c.l.b16 %v998
        %v1287 = vunpack.c.l.b16 %v999
        %v1288 = vunpack.c.l.b16 %v1000
        %v1289 = vunpack.c.l.b16 %v1001
        %v1290 = vunpack.c.l.b16 %v1002
        %v1291 = vunpack.c.l.b16 %v1003
        %v1292 = vunpack.c.l.b16 %v1004
        %v1293 = vunpack.c.l.b16 %v1005
        %v1294 = vunpack.c.l.b16 %v1006
        %v1295 = vunpack.c.l.b16 %v1007
        %v1296 = vunpack.c.l.b16 %v1008
        %v1297 = vunpack.c.l.b16 %v1009
        %v1298 = vunpack.c.l.b16 %v1010
        %v1299 = vunpack.c.l.b16 %v1011
        %v1300 = vunpack.c.l.b16 %v1012
        %v1301 = vunpack.c.l.b16 %v1013
        %v1302 = vunpack.c.l.b16 %v1014
        %v1303 = vunpack.c.l.b16 %v1015
        %v1304 = vunpack.c.l.b16 %v1016
        %v1305 = vunpack.c.l.b16 %v1017
        %v1306 = vunpack.c.l.b16 %v1018
        %v1307 = vunpack.c.l.b16 %v1019
        %v1308 = vunpack.c.l.b16 %v1020
        %v1309 = vunpack.c.l.b16 %v1021
        %v1310 = vunpack.c.l.b16 %v1022
        %v1311 = vunpack.c.l.b16 %v1023
        %v1312 = vunpack.c.l.b16 %v1024
        %v1313 = vunpack.c.l.b16 %v1025
        %v1314 = vunpack.c.l.b16 %v1026
        %v1315 = vunpack.c.l.b16 %v1027
        %v1316 = vunpack.c.l.b16 %v1028
        %v1317 = vunpack.c.l.b16 %v1029
        %v1318 = vunpack.c.l.b16 %v1030
        %v1319 = vunpack.c.l.b16 %v1031
        %v1320 = vunpack.c.l.b16 %v1032
        %v1321 = vunpack.c.l.b16 %v1033
        %v1322 = vunpack.c.l.b16 %v1034
        %v1323 = vunpack.c.l.b16 %v1035
        %v1324 = vunpack.c.l.b16 %v1036
        %v1325 = vunpack.c.l.b16 %v1037
        %v1326 = vunpack.c.l.b16 %v1038
        %v1327 = vunpack.c.l.b16 %v1039
        %v1328 = vunpack.c.l.b16 %v1040
        %v1329 = vunpack.c.l.b16 %v1041
        %v1330 = vunpack.c.l.b16 %v1042
        %v1331 = vunpack.c.l.b16 %v1043
        %v1332 = vunpack.c.l.b16 %v1044
        %v1333 = vunpack.c.l.b16 %v1045
        %v1334 = vunpack.c.l.b16 %v1046
        %v1335 = vunpack.c.l.b16 %v1047
        %v1336 = vunpack.c.l.b16 %v1048
        %v1337 = vunpack.c.l.b16 %v1049
        %v1338 = vunpack.c.l.b16 %v1050
        %v1339 = vunpack.c.l.b16 %v1051
        %v1340 = vunpack.c.l.b16 %v1052
        %v1341 = vunpack.c.l.b16 %v1053
        %v1342 = vunpack.c.l.b16 %v1054
        %v1343 = vunpack.c.l.b16 %v1055
        %v1344 = vunpack.c.l.b16 %v1056
        %v1345 = vunpack.c.l.b16 %v1057
        %v1346 = vunpack.c.l.b16 %v1058
        %v1347 = vunpack.c.l.b16 %v1059
        %v1348 = vunpack.c.l.b16 %v1060
        %v1349 = vunpack.c.l.b16 %v1061
        %v1350 = vunpack.c.l.b16 %v1062
        %v1351 = vunpack.c.l.b16 %v1063
        %v1352 = vunpack.c.l.b16 %v1064
        %v1353 = vunpack.c.l.b16 %v1065
        %v1354 = vunpack.c.l.b16 %v1066
        %v1355 = vunpack.c.l.b16 %v1067
        %v1356 = vunpack.c.l.b16 %v1068
        %v1357 = vunpack.c.l.b16 %v1069
        %v1358 = vunpack.c.l.b16 %v1070
        %v1359 = vunpack.c.l.b16 %v1071
        %v1360 = vunpack.c.l.b16 %v1072
        %v1361 = vunpack.c.l.b16 %v1073
        %v1362 = vunpack.c.l.b16 %v1074
        %v1363 = vunpack.c.l.b16 %v1075
        %v1364 = vunpack.c.l.b16 %v1076
        %v1365 = vunpack.c.l.b16 %v1077
        %v1366 = vunpack.c.l.b16 %v1078
        %v1367 = vunpack.c.l.b16 %v1079
        %v1368 = vunpack.c.l.b16 %v1080
        %v1369 = vunpack.c.l.b16 %v1081
        %v1370 = vunpack.c.l.b16 %v1082
        %v1371 = vunpack.c.l.b16 %v1083
        %v1372 = vunpack.c.l.b16 %v1084
        %v1373 = vunpack.c.l.b16 %v1085
        %v1374 = vunpack.c.l.b16 %v1086
        %v1375 = vunpack.c.l.b16 %v1087
        %v1376 = vunpack.c.l.b16 %v1088
        %v1377 = vunpack.c.l.b16 %v1089
        %v1378 = vunpack.c.l.b16 %v1090
        %v1379 = vunpack.c.l.b16 %v1091
        %v1380 = vunpack.c.l.b16 %v1092
        %v1381 = vunpack.c.l.b16 %v1093
        %v1382 = vunpack.c.l.b16 %v1094
        %v1383 = vunpack.c.l.b16 %v1095
        %v1384 = vunpack.c.l.b16 %v1096
        %v1385 = vunpack.c.l.b16 %v1097
        %v1386 = vunpack.c.l.b16 %v1098
        %v1387 = vunpack.c.l.b16 %v1099
        %v1388 = vunpack.c.l.b16 %v1100
        %v1389 = vunpack.c.l.b16 %v1101
        %v1390 = vunpack.c.l.b16 %v1102
        %v1391 = vunpack.c.l.b16 %v1103
        %v1392 = vunpack.c.l.b16 %v1104
        %v1393 = vunpack.c.l.b16 %v1105
        %v1394 = vunpack.c.l.b16 %v1106
        %v1395 = vunpack.c.l.b16 %v1107
        %v1396 = vunpack.c.l.b16 %v1108
        %v1397 = vunpack.c.l.b16 %v1109
        %v1398 = vunpack.c.l.b16 %v1110
        %v1399 = vpack.c.b16 %v1256, %v1255
        %v1400 = vpack.c.b16 %v1258, %v1257
        %v1401 = vpack.c.b16 %v1260, %v1259
        %v1402 = vpack.c.b16 %v1262, %v1261
        %v1403 = vpack.c.b16 %v1264, %v1263
        %v1404 = vpack.c.b16 %v1266, %v1265
        %v1405 = vpack.c.b16 %v1268, %v1267
        %v1406 = vpack.c.b16 %v1270, %v1269
        %v1407 = vpack.c.b16 %v1272, %v1271
        %v1408 = vpack.c.b16 %v1274, %v1273
        %v1409 = vpack.c.b16 %v1276, %v1275
        %v1410 = vpack.c.b16 %v1278, %v1277
        %v1411 = vpack.c.b16 %v1280, %v1279
        %v1412 = vpack.c.b16 %v1282, %v1281
        %v1413 = vpack.c.b16 %v1284, %v1283
        %v1414 = vpack.c.b16 %v1286, %v1285
        %v1415 = vpack.c.b16 %v1288, %v1287
        %v1416 = vpack.c.b16 %v1290, %v1289
        %v1417 = vpack.c.b16 %v1292, %v1291
        %v1418 = vpack.c.b16 %v1294, %v1293
        %v1419 = vpack.c.b16 %v1296, %v1295
        %v1420 = vpack.c.b16 %v1298, %v1297
        %v1421 = vpack.c.b16 %v1300, %v1299
        %v1422 = vpack.c.b16 %v1302, %v1301
        %v1423 = vpack.c.b16 %v1304, %v1303
        %v1424 = vpack.c.b16 %v1306, %v1305
        %v1425 = vpack.c.b16 %v1308, %v1307
        %v1426 = vpack.c.b16 %v1310, %v1309
        %v1427 = vpack.c.b16 %v1312, %v1311
        %v1428 = vpack.c.b16 %v1314, %v1313
        %v1429 = vpack.c.b16 %v1316, %v1315
        %v1430 = vpack.c.b16 %v1318, %v1317
        %v1431 = vpack.c.b16 %v1320, %v1319
        %v1432 = vpack.c.b16 %v1322, %v1321
        %v1433 = vpack.c.b16 %v1324, %v1323
        %v1434 = vpack.c.b16 %v1326, %v1325
        %v1435 = vpack.c.b16 %v1328, %v1327
        %v1436 = vpack.c.b16 %v1330, %v1329
        %v1437 = vpack.c.b16 %v1332, %v1331
        %v1438 = vpack.c.b16 %v1334, %v1333
        %v1439 = vpack.c.b16 %v1336, %v1335
        %v1440 = vpack.c.b16 %v1338, %v1337
        %v1441 = vpack.c.b16 %v1340, %v1339
        %v1442 = vpack.c.b16 %v1342, %v1341
        %v1443 = vpack.c.b16 %v1344, %v1343
        %v1444 = vpack.c.b16 %v1346, %v1345
        %v1445 = vpack.c.b16 %v1348, %v1347
        %v1446 = vpack.c.b16 %v1350, %v1349
        %v1447 = vpack.c.b16 %v1352, %v1351
        %v1448 = vpack.c.b16 %v1354, %v1353
        %v1449 = vpack.c.b16 %v1356, %v1355
        %v1450 = vpack.c.b16 %v1358, %v1357
        %v1451 = vpack.c.b16 %v1360, %v1359
        %v1452 = vpack.c.b16 %v1362, %v1361
        %v1453 = vpack.c.b16 %v1364, %v1363
        %v1454 = vpack.c.b16 %v1366, %v1365
        %v1455 = vpack.c.b16 %v1368, %v1367
        %v1456 = vpack.c.b16 %v1370, %v1369
        %v1457 = vpack.c.b16 %v1372, %v1371
        %v1458 = vpack.c.b16 %v1374, %v1373
        %v1459 = vpack.c.b16 %v1376, %v1375
        %v1460 = vpack.c.b16 %v1378, %v1377
        %v1461 = vpack.c.b16 %v1380, %v1379
        %v1462 = vpack.c.b16 %v1382, %v1381
        %v1463 = vpack.c.b16 %v1384, %v1383
        %v1464 = vpack.c.b16 %v1386, %v1385
        %v1465 = vpack.c.b16 %v1388, %v1387
        %v1466 = vpack.c.b16 %v1390, %v1389
        %v1467 = vpack.c.b16 %v1392, %v1391
        %v1468 = vpack.c.b16 %v1394, %v1393
        %v1469 = vpack.c.b16 %v1396, %v1395
        %v1470 = vpack.c.b16 %v1398, %v1397
        %1543 = vmatprep.subr.bf16.mxu0 0
        %1544 = vmatpush1.bf16.msra.mxu0 %v1406
        %1545 = vmatprep.subr.bf16.mxu0 0
        %1546 = vmatpush1.bf16.msra.mxu0 %v1405
        %1547 = vmatprep.subr.bf16.mxu0 0
        %1548 = vmatpush1.bf16.msra.mxu0 %v1404
        %1549 = vmatprep.subr.bf16.mxu0 0
        %1550 = vmatpush1.bf16.msra.mxu0 %v1403
        %1551 = vmatprep.subr.bf16.mxu0 0
        %1552 = vmatpush1.bf16.msra.mxu0 %v1402
        %1553 = vmatprep.subr.bf16.mxu0 0
        %1554 = vmatpush1.bf16.msra.mxu0 %v1401
        %1555 = vmatprep.subr.bf16.mxu0 0
        %1556 = vmatpush1.bf16.msra.mxu0 %v1400
        %1557 = vmatprep.subr.bf16.mxu0 0
        %1558 = vmatpush1.bf16.msra.mxu0 %v1399
        %1559 = vmatprep.subr.bf16.mxu0 0
        %1560 = vmatpush2.bf16.msra.mxu0 %v1414
        %1561 = vmatprep.subr.bf16.mxu0 0
        %1562 = vmatpush2.bf16.msra.mxu0 %v1413
        %1563 = vmatprep.subr.bf16.mxu0 0
        %1564 = vmatpush2.bf16.msra.mxu0 %v1412
        %1565 = vmatprep.subr.bf16.mxu0 0
        %1566 = vmatpush2.bf16.msra.mxu0 %v1411
        %1567 = vmatprep.subr.bf16.mxu0 0
        %1568 = vmatpush2.bf16.msra.mxu0 %v1410
        %1569 = vmatprep.subr.bf16.mxu0 0
        %1570 = vmatpush2.bf16.msra.mxu0 %v1409
        %1571 = vmatprep.subr.bf16.mxu0 0
        %1572 = vmatpush2.bf16.msra.mxu0 %v1408
        %1573 = vmatprep.subr.bf16.mxu0 0
        %1574 = vmatpush2.bf16.msra.mxu0 %v1407
        %1575 = vmatprep.mubr.bf16.mxu0 %v614
        %1576 = vmatmul.mubr.bf16.gmra.mxu0 %v566
        %v1577 = vpop.f32.mrf.mxu0
        %v1578 = vadd.f32 0.0, %v1577
        %v1579 = vpop.f32.mrf.mxu0
        %v1580 = vpop.f32.mrf.mxu0
        %v1581 = vadd.f32 0.0, %v1580
        %v1582 = vpop.f32.mrf.mxu0
        %1583 = vmatprep.mubr.bf16.mxu0 %v615
        %1584 = vmatmul.mubr.bf16.gmra.mxu0 %v567
        %v1585 = vpop.f32.mrf.mxu0
        %v1586 = vadd.f32 0.0, %v1585
        %v1587 = vpop.f32.mrf.mxu0
        %v1588 = vpop.f32.mrf.mxu0
        %v1589 = vadd.f32 0.0, %v1588
        %v1590 = vpop.f32.mrf.mxu0
        %1591 = vmatprep.mubr.bf16.mxu0 %v616
        %1592 = vmatmul.mubr.bf16.gmra.mxu0 %v568
        %v1593 = vpop.f32.mrf.mxu0
        %v1594 = vadd.f32 0.0, %v1593
        %v1595 = vpop.f32.mrf.mxu0
        %v1596 = vpop.f32.mrf.mxu0
        %v1597 = vadd.f32 0.0, %v1596
        %v1598 = vpop.f32.mrf.mxu0
        %1599 = vmatprep.mubr.bf16.mxu0 %v617
        %1600 = vmatmul.mubr.bf16.gmra.mxu0 %v569
        %v1601 = vpop.f32.mrf.mxu0
        %v1602 = vadd.f32 0.0, %v1601
        %v1603 = vpop.f32.mrf.mxu0
        %v1604 = vpop.f32.mrf.mxu0
        %v1605 = vadd.f32 0.0, %v1604
        %v1606 = vpop.f32.mrf.mxu0
        %1607 = vmatprep.mubr.bf16.mxu0 %v618
        %1608 = vmatmul.mubr.bf16.gmra.mxu0 %v570
        %v1609 = vpop.f32.mrf.mxu0
        %v1610 = vadd.f32 0.0, %v1609
        %v1611 = vpop.f32.mrf.mxu0
        %v1612 = vpop.f32.mrf.mxu0
        %v1613 = vadd.f32 0.0, %v1612
        %v1614 = vpop.f32.mrf.mxu0
        %1615 = vmatprep.mubr.bf16.mxu0 %v619
        %1616 = vmatmul.mubr.bf16.gmra.mxu0 %v571
        %v1617 = vpop.f32.mrf.mxu0
        %v1618 = vadd.f32 0.0, %v1617
        %v1619 = vpop.f32.mrf.mxu0
        %v1620 = vpop.f32.mrf.mxu0
        %v1621 = vadd.f32 0.0, %v1620
        %v1622 = vpop.f32.mrf.mxu0
        %1623 = vmatprep.mubr.bf16.mxu0 %v620
        %1624 = vmatmul.mubr.bf16.gmra.mxu0 %v572
        %v1625 = vpop.f32.mrf.mxu0
        %v1626 = vadd.f32 0.0, %v1625
        %v1627 = vpop.f32.mrf.mxu0
        %v1628 = vpop.f32.mrf.mxu0
        %v1629 = vadd.f32 0.0, %v1628
        %v1630 = vpop.f32.mrf.mxu0
        %1631 = vmatprep.mubr.bf16.mxu0 %v621
        %1632 = vmatmul.mubr.bf16.gmra.mxu0 %v573
        %v1633 = vpop.f32.mrf.mxu0
        %v1634 = vadd.f32 0.0, %v1633
        %v1635 = vpop.f32.mrf.mxu0
        %v1636 = vpop.f32.mrf.mxu0
        %v1637 = vadd.f32 0.0, %v1636
        %v1638 = vpop.f32.mrf.mxu0
        %1639 = vmatprep.mubr.bf16.mxu0 %v622
        %1640 = vmatmul.mubr.bf16.gmra.mxu0 %v574
        %v1641 = vpop.f32.mrf.mxu0
        %v1642 = vadd.f32 0.0, %v1641
        %v1643 = vpop.f32.mrf.mxu0
        %v1644 = vpop.f32.mrf.mxu0
        %v1645 = vadd.f32 0.0, %v1644
        %v1646 = vpop.f32.mrf.mxu0
        %1647 = vmatprep.mubr.bf16.mxu0 %v623
        %1648 = vmatmul.mubr.bf16.gmra.mxu0 %v575
        %v1649 = vpop.f32.mrf.mxu0
        %v1650 = vadd.f32 0.0, %v1649
        %v1651 = vpop.f32.mrf.mxu0
        %v1652 = vpop.f32.mrf.mxu0
        %v1653 = vadd.f32 0.0, %v1652
        %v1654 = vpop.f32.mrf.mxu0
        %1655 = vmatprep.mubr.bf16.mxu0 %v624
        %1656 = vmatmul.mubr.bf16.gmra.mxu0 %v576
        %v1657 = vpop.f32.mrf.mxu0
        %v1658 = vadd.f32 0.0, %v1657
        %v1659 = vpop.f32.mrf.mxu0
        %v1660 = vpop.f32.mrf.mxu0
        %v1661 = vadd.f32 0.0, %v1660
        %v1662 = vpop.f32.mrf.mxu0
        %1663 = vmatprep.mubr.bf16.mxu0 %v625
        %1664 = vmatmul.mubr.bf16.gmra.mxu0 %v577
        %v1665 = vpop.f32.mrf.mxu0
        %v1666 = vadd.f32 0.0, %v1665
        %v1667 = vpop.f32.mrf.mxu0
        %v1668 = vpop.f32.mrf.mxu0
        %v1669 = vadd.f32 0.0, %v1668
        %v1670 = vpop.f32.mrf.mxu0
        %1671 = vmatprep.mubr.bf16.mxu0 %v626
        %1672 = vmatmul.mubr.bf16.gmra.mxu0 %v578
        %v1673 = vpop.f32.mrf.mxu0
        %v1674 = vadd.f32 0.0, %v1673
        %v1675 = vpop.f32.mrf.mxu0
        %v1676 = vpop.f32.mrf.mxu0
        %v1677 = vadd.f32 0.0, %v1676
        %v1678 = vpop.f32.mrf.mxu0
        %1679 = vmatprep.mubr.bf16.mxu0 %v627
        %1680 = vmatmul.mubr.bf16.gmra.mxu0 %v579
        %v1681 = vpop.f32.mrf.mxu0
        %v1682 = vadd.f32 0.0, %v1681
        %v1683 = vpop.f32.mrf.mxu0
        %v1684 = vpop.f32.mrf.mxu0
        %v1685 = vadd.f32 0.0, %v1684
        %v1686 = vpop.f32.mrf.mxu0
        %1687 = vmatprep.mubr.bf16.mxu0 %v628
        %1688 = vmatmul.mubr.bf16.gmra.mxu0 %v580
        %v1689 = vpop.f32.mrf.mxu0
        %v1690 = vadd.f32 0.0, %v1689
        %v1691 = vpop.f32.mrf.mxu0
        %v1692 = vpop.f32.mrf.mxu0
        %v1693 = vadd.f32 0.0, %v1692
        %v1694 = vpop.f32.mrf.mxu0
        %1695 = vmatprep.mubr.bf16.mxu0 %v629
        %1696 = vmatmul.mubr.bf16.gmra.mxu0 %v581
        %v1697 = vpop.f32.mrf.mxu0
        %v1698 = vadd.f32 0.0, %v1697
        %v1699 = vpop.f32.mrf.mxu0
        %v1700 = vpop.f32.mrf.mxu0
        %v1701 = vadd.f32 0.0, %v1700
        %v1702 = vpop.f32.mrf.mxu0
        %1703 = vdwg.mxu0
        %1704 = vmatprep.subr.bf16.mxu0 0
        %1705 = vmatpush1.bf16.msra.mxu0 %v1422
        %1706 = vmatprep.subr.bf16.mxu0 0
        %1707 = vmatpush1.bf16.msra.mxu0 %v1421
        %1708 = vmatprep.subr.bf16.mxu0 0
        %1709 = vmatpush1.bf16.msra.mxu0 %v1420
        %1710 = vmatprep.subr.bf16.mxu0 0
        %1711 = vmatpush1.bf16.msra.mxu0 %v1419
        %1712 = vmatprep.subr.bf16.mxu0 0
        %1713 = vmatpush1.bf16.msra.mxu0 %v1418
        %1714 = vmatprep.subr.bf16.mxu0 0
        %1715 = vmatpush1.bf16.msra.mxu0 %v1417
        %1716 = vmatprep.subr.bf16.mxu0 0
        %1717 = vmatpush1.bf16.msra.mxu0 %v1416
        %1718 = vmatprep.subr.bf16.mxu0 0
        %1719 = vmatpush1.bf16.msra.mxu0 %v1415
        %1720 = vmatprep.subr.bf16.mxu0 0
        %1721 = vmatpush2.bf16.msra.mxu0 %v1430
        %1722 = vmatprep.subr.bf16.mxu0 0
        %1723 = vmatpush2.bf16.msra.mxu0 %v1429
        %1724 = vmatprep.subr.bf16.mxu0 0
        %1725 = vmatpush2.bf16.msra.mxu0 %v1428
        %1726 = vmatprep.subr.bf16.mxu0 0
        %1727 = vmatpush2.bf16.msra.mxu0 %v1427
        %1728 = vmatprep.subr.bf16.mxu0 0
        %1729 = vmatpush2.bf16.msra.mxu0 %v1426
        %1730 = vmatprep.subr.bf16.mxu0 0
        %1731 = vmatpush2.bf16.msra.mxu0 %v1425
        %1732 = vmatprep.subr.bf16.mxu0 0
        %1733 = vmatpush2.bf16.msra.mxu0 %v1424
        %1734 = vmatprep.subr.bf16.mxu0 0
        %1735 = vmatpush2.bf16.msra.mxu0 %v1423
        %1736 = vmatprep.mubr.bf16.mxu0 %v710
        %1737 = vmatmul.mubr.bf16.gmra.mxu0 %v662
        %v1738 = vpop.f32.mrf.mxu0
        %v1739 = vadd.f32 %v1578, %v1738
        %v1740 = vpop.f32.mrf.mxu0
        %v1741 = vpop.f32.mrf.mxu0
        %v1742 = vadd.f32 %v1581, %v1741
        %v1743 = vpop.f32.mrf.mxu0
        %1744 = vmatprep.mubr.bf16.mxu0 %v711
        %1745 = vmatmul.mubr.bf16.gmra.mxu0 %v663
        %v1746 = vpop.f32.mrf.mxu0
        %v1747 = vadd.f32 %v1586, %v1746
        %v1748 = vpop.f32.mrf.mxu0
        %v1749 = vpop.f32.mrf.mxu0
        %v1750 = vadd.f32 %v1589, %v1749
        %v1751 = vpop.f32.mrf.mxu0
        %1752 = vmatprep.mubr.bf16.mxu0 %v712
        %1753 = vmatmul.mubr.bf16.gmra.mxu0 %v664
        %v1754 = vpop.f32.mrf.mxu0
        %v1755 = vadd.f32 %v1594, %v1754
        %v1756 = vpop.f32.mrf.mxu0
        %v1757 = vpop.f32.mrf.mxu0
        %v1758 = vadd.f32 %v1597, %v1757
        %v1759 = vpop.f32.mrf.mxu0
        %1760 = vmatprep.mubr.bf16.mxu0 %v713
        %1761 = vmatmul.mubr.bf16.gmra.mxu0 %v665
        %v1762 = vpop.f32.mrf.mxu0
        %v1763 = vadd.f32 %v1602, %v1762
        %v1764 = vpop.f32.mrf.mxu0
        %v1765 = vpop.f32.mrf.mxu0
        %v1766 = vadd.f32 %v1605, %v1765
        %v1767 = vpop.f32.mrf.mxu0
        %1768 = vmatprep.mubr.bf16.mxu0 %v714
        %1769 = vmatmul.mubr.bf16.gmra.mxu0 %v666
        %v1770 = vpop.f32.mrf.mxu0
        %v1771 = vadd.f32 %v1610, %v1770
        %v1772 = vpop.f32.mrf.mxu0
        %v1773 = vpop.f32.mrf.mxu0
        %v1774 = vadd.f32 %v1613, %v1773
        %v1775 = vpop.f32.mrf.mxu0
        %1776 = vmatprep.mubr.bf16.mxu0 %v715
        %1777 = vmatmul.mubr.bf16.gmra.mxu0 %v667
        %v1778 = vpop.f32.mrf.mxu0
        %v1779 = vadd.f32 %v1618, %v1778
        %v1780 = vpop.f32.mrf.mxu0
        %v1781 = vpop.f32.mrf.mxu0
        %v1782 = vadd.f32 %v1621, %v1781
        %v1783 = vpop.f32.mrf.mxu0
        %1784 = vmatprep.mubr.bf16.mxu0 %v716
        %1785 = vmatmul.mubr.bf16.gmra.mxu0 %v668
        %v1786 = vpop.f32.mrf.mxu0
        %v1787 = vadd.f32 %v1626, %v1786
        %v1788 = vpop.f32.mrf.mxu0
        %v1789 = vpop.f32.mrf.mxu0
        %v1790 = vadd.f32 %v1629, %v1789
        %v1791 = vpop.f32.mrf.mxu0
        %1792 = vmatprep.mubr.bf16.mxu0 %v717
        %1793 = vmatmul.mubr.bf16.gmra.mxu0 %v669
        %v1794 = vpop.f32.mrf.mxu0
        %v1795 = vadd.f32 %v1634, %v1794
        %v1796 = vpop.f32.mrf.mxu0
        %v1797 = vpop.f32.mrf.mxu0
        %v1798 = vadd.f32 %v1637, %v1797
        %v1799 = vpop.f32.mrf.mxu0
        %1800 = vmatprep.mubr.bf16.mxu0 %v718
        %1801 = vmatmul.mubr.bf16.gmra.mxu0 %v670
        %v1802 = vpop.f32.mrf.mxu0
        %v1803 = vadd.f32 %v1642, %v1802
        %v1804 = vpop.f32.mrf.mxu0
        %v1805 = vpop.f32.mrf.mxu0
        %v1806 = vadd.f32 %v1645, %v1805
        %v1807 = vpop.f32.mrf.mxu0
        %1808 = vmatprep.mubr.bf16.mxu0 %v719
        %1809 = vmatmul.mubr.bf16.gmra.mxu0 %v671
        %v1810 = vpop.f32.mrf.mxu0
        %v1811 = vadd.f32 %v1650, %v1810
        %v1812 = vpop.f32.mrf.mxu0
        %v1813 = vpop.f32.mrf.mxu0
        %v1814 = vadd.f32 %v1653, %v1813
        %v1815 = vpop.f32.mrf.mxu0
        %1816 = vmatprep.mubr.bf16.mxu0 %v720
        %1817 = vmatmul.mubr.bf16.gmra.mxu0 %v672
        %v1818 = vpop.f32.mrf.mxu0
        %v1819 = vadd.f32 %v1658, %v1818
        %v1820 = vpop.f32.mrf.mxu0
        %v1821 = vpop.f32.mrf.mxu0
        %v1822 = vadd.f32 %v1661, %v1821
        %v1823 = vpop.f32.mrf.mxu0
        %1824 = vmatprep.mubr.bf16.mxu0 %v721
        %1825 = vmatmul.mubr.bf16.gmra.mxu0 %v673
        %v1826 = vpop.f32.mrf.mxu0
        %v1827 = vadd.f32 %v1666, %v1826
        %v1828 = vpop.f32.mrf.mxu0
        %v1829 = vpop.f32.mrf.mxu0
        %v1830 = vadd.f32 %v1669, %v1829
        %v1831 = vpop.f32.mrf.mxu0
        %1832 = vmatprep.mubr.bf16.mxu0 %v722
        %1833 = vmatmul.mubr.bf16.gmra.mxu0 %v674
        %v1834 = vpop.f32.mrf.mxu0
        %v1835 = vadd.f32 %v1674, %v1834
        %v1836 = vpop.f32.mrf.mxu0
        %v1837 = vpop.f32.mrf.mxu0
        %v1838 = vadd.f32 %v1677, %v1837
        %v1839 = vpop.f32.mrf.mxu0
        %1840 = vmatprep.mubr.bf16.mxu0 %v723
        %1841 = vmatmul.mubr.bf16.gmra.mxu0 %v675
        %v1842 = vpop.f32.mrf.mxu0
        %v1843 = vadd.f32 %v1682, %v1842
        %v1844 = vpop.f32.mrf.mxu0
        %v1845 = vpop.f32.mrf.mxu0
        %v1846 = vadd.f32 %v1685, %v1845
        %v1847 = vpop.f32.mrf.mxu0
        %1848 = vmatprep.mubr.bf16.mxu0 %v724
        %1849 = vmatmul.mubr.bf16.gmra.mxu0 %v676
        %v1850 = vpop.f32.mrf.mxu0
        %v1851 = vadd.f32 %v1690, %v1850
        %v1852 = vpop.f32.mrf.mxu0
        %v1853 = vpop.f32.mrf.mxu0
        %v1854 = vadd.f32 %v1693, %v1853
        %v1855 = vpop.f32.mrf.mxu0
        %1856 = vmatprep.mubr.bf16.mxu0 %v725
        %1857 = vmatmul.mubr.bf16.gmra.mxu0 %v677
        %v1858 = vpop.f32.mrf.mxu0
        %v1859 = vadd.f32 %v1698, %v1858
        %v1860 = vpop.f32.mrf.mxu0
        %v1861 = vpop.f32.mrf.mxu0
        %v1862 = vadd.f32 %v1701, %v1861
        %v1863 = vpop.f32.mrf.mxu0
        %1864 = vdwg.mxu0
        %1865 = vmatprep.subr.bf16.mxu0 0
        %1866 = vmatpush1.bf16.msra.mxu0 %v1438
        %1867 = vmatprep.subr.bf16.mxu0 0
        %1868 = vmatpush1.bf16.msra.mxu0 %v1437
        %1869 = vmatprep.subr.bf16.mxu0 0
        %1870 = vmatpush1.bf16.msra.mxu0 %v1436
        %1871 = vmatprep.subr.bf16.mxu0 0
        %1872 = vmatpush1.bf16.msra.mxu0 %v1435
        %1873 = vmatprep.subr.bf16.mxu0 0
        %1874 = vmatpush1.bf16.msra.mxu0 %v1434
        %1875 = vmatprep.subr.bf16.mxu0 0
        %1876 = vmatpush1.bf16.msra.mxu0 %v1433
        %1877 = vmatprep.subr.bf16.mxu0 0
        %1878 = vmatpush1.bf16.msra.mxu0 %v1432
        %1879 = vmatprep.subr.bf16.mxu0 0
        %1880 = vmatpush1.bf16.msra.mxu0 %v1431
        %1881 = vmatprep.subr.bf16.mxu0 0
        %1882 = vmatpush2.bf16.msra.mxu0 %v1446
        %1883 = vmatprep.subr.bf16.mxu0 0
        %1884 = vmatpush2.bf16.msra.mxu0 %v1445
        %1885 = vmatprep.subr.bf16.mxu0 0
        %1886 = vmatpush2.bf16.msra.mxu0 %v1444
        %1887 = vmatprep.subr.bf16.mxu0 0
        %1888 = vmatpush2.bf16.msra.mxu0 %v1443
        %1889 = vmatprep.subr.bf16.mxu0 0
        %1890 = vmatpush2.bf16.msra.mxu0 %v1442
        %1891 = vmatprep.subr.bf16.mxu0 0
        %1892 = vmatpush2.bf16.msra.mxu0 %v1441
        %1893 = vmatprep.subr.bf16.mxu0 0
        %1894 = vmatpush2.bf16.msra.mxu0 %v1440
        %1895 = vmatprep.subr.bf16.mxu0 0
        %1896 = vmatpush2.bf16.msra.mxu0 %v1439
        %1897 = vmatprep.mubr.bf16.mxu0 %v806
        %1898 = vmatmul.mubr.bf16.gmra.mxu0 %v758
        %v1899 = vpop.f32.mrf.mxu0
        %v1900 = vadd.f32 %v1739, %v1899
        %v1901 = vpop.f32.mrf.mxu0
        %v1902 = vpop.f32.mrf.mxu0
        %v1903 = vadd.f32 %v1742, %v1902
        %v1904 = vpop.f32.mrf.mxu0
        %1905 = vmatprep.mubr.bf16.mxu0 %v807
        %1906 = vmatmul.mubr.bf16.gmra.mxu0 %v759
        %v1907 = vpop.f32.mrf.mxu0
        %v1908 = vadd.f32 %v1747, %v1907
        %v1909 = vpop.f32.mrf.mxu0
        %v1910 = vpop.f32.mrf.mxu0
        %v1911 = vadd.f32 %v1750, %v1910
        %v1912 = vpop.f32.mrf.mxu0
        %1913 = vmatprep.mubr.bf16.mxu0 %v808
        %1914 = vmatmul.mubr.bf16.gmra.mxu0 %v760
        %v1915 = vpop.f32.mrf.mxu0
        %v1916 = vadd.f32 %v1755, %v1915
        %v1917 = vpop.f32.mrf.mxu0
        %v1918 = vpop.f32.mrf.mxu0
        %v1919 = vadd.f32 %v1758, %v1918
        %v1920 = vpop.f32.mrf.mxu0
        %1921 = vmatprep.mubr.bf16.mxu0 %v809
        %1922 = vmatmul.mubr.bf16.gmra.mxu0 %v761
        %v1923 = vpop.f32.mrf.mxu0
        %v1924 = vadd.f32 %v1763, %v1923
        %v1925 = vpop.f32.mrf.mxu0
        %v1926 = vpop.f32.mrf.mxu0
        %v1927 = vadd.f32 %v1766, %v1926
        %v1928 = vpop.f32.mrf.mxu0
        %1929 = vmatprep.mubr.bf16.mxu0 %v810
        %1930 = vmatmul.mubr.bf16.gmra.mxu0 %v762
        %v1931 = vpop.f32.mrf.mxu0
        %v1932 = vadd.f32 %v1771, %v1931
        %v1933 = vpop.f32.mrf.mxu0
        %v1934 = vpop.f32.mrf.mxu0
        %v1935 = vadd.f32 %v1774, %v1934
        %v1936 = vpop.f32.mrf.mxu0
        %1937 = vmatprep.mubr.bf16.mxu0 %v811
        %1938 = vmatmul.mubr.bf16.gmra.mxu0 %v763
        %v1939 = vpop.f32.mrf.mxu0
        %v1940 = vadd.f32 %v1779, %v1939
        %v1941 = vpop.f32.mrf.mxu0
        %v1942 = vpop.f32.mrf.mxu0
        %v1943 = vadd.f32 %v1782, %v1942
        %v1944 = vpop.f32.mrf.mxu0
        %1945 = vmatprep.mubr.bf16.mxu0 %v812
        %1946 = vmatmul.mubr.bf16.gmra.mxu0 %v764
        %v1947 = vpop.f32.mrf.mxu0
        %v1948 = vadd.f32 %v1787, %v1947
        %v1949 = vpop.f32.mrf.mxu0
        %v1950 = vpop.f32.mrf.mxu0
        %v1951 = vadd.f32 %v1790, %v1950
        %v1952 = vpop.f32.mrf.mxu0
        %1953 = vmatprep.mubr.bf16.mxu0 %v813
        %1954 = vmatmul.mubr.bf16.gmra.mxu0 %v765
        %v1955 = vpop.f32.mrf.mxu0
        %v1956 = vadd.f32 %v1795, %v1955
        %v1957 = vpop.f32.mrf.mxu0
        %v1958 = vpop.f32.mrf.mxu0
        %v1959 = vadd.f32 %v1798, %v1958
        %v1960 = vpop.f32.mrf.mxu0
        %1961 = vmatprep.mubr.bf16.mxu0 %v814
        %1962 = vmatmul.mubr.bf16.gmra.mxu0 %v766
        %v1963 = vpop.f32.mrf.mxu0
        %v1964 = vadd.f32 %v1803, %v1963
        %v1965 = vpop.f32.mrf.mxu0
        %v1966 = vpop.f32.mrf.mxu0
        %v1967 = vadd.f32 %v1806, %v1966
        %v1968 = vpop.f32.mrf.mxu0
        %1969 = vmatprep.mubr.bf16.mxu0 %v815
        %1970 = vmatmul.mubr.bf16.gmra.mxu0 %v767
        %v1971 = vpop.f32.mrf.mxu0
        %v1972 = vadd.f32 %v1811, %v1971
        %v1973 = vpop.f32.mrf.mxu0
        %v1974 = vpop.f32.mrf.mxu0
        %v1975 = vadd.f32 %v1814, %v1974
        %v1976 = vpop.f32.mrf.mxu0
        %1977 = vmatprep.mubr.bf16.mxu0 %v816
        %1978 = vmatmul.mubr.bf16.gmra.mxu0 %v768
        %v1979 = vpop.f32.mrf.mxu0
        %v1980 = vadd.f32 %v1819, %v1979
        %v1981 = vpop.f32.mrf.mxu0
        %v1982 = vpop.f32.mrf.mxu0
        %v1983 = vadd.f32 %v1822, %v1982
        %v1984 = vpop.f32.mrf.mxu0
        %1985 = vmatprep.mubr.bf16.mxu0 %v817
        %1986 = vmatmul.mubr.bf16.gmra.mxu0 %v769
        %v1987 = vpop.f32.mrf.mxu0
        %v1988 = vadd.f32 %v1827, %v1987
        %v1989 = vpop.f32.mrf.mxu0
        %v1990 = vpop.f32.mrf.mxu0
        %v1991 = vadd.f32 %v1830, %v1990
        %v1992 = vpop.f32.mrf.mxu0
        %1993 = vmatprep.mubr.bf16.mxu0 %v818
        %1994 = vmatmul.mubr.bf16.gmra.mxu0 %v770
        %v1995 = vpop.f32.mrf.mxu0
        %v1996 = vadd.f32 %v1835, %v1995
        %v1997 = vpop.f32.mrf.mxu0
        %v1998 = vpop.f32.mrf.mxu0
        %v1999 = vadd.f32 %v1838, %v1998
        %v2000 = vpop.f32.mrf.mxu0
        %2001 = vmatprep.mubr.bf16.mxu0 %v819
        %2002 = vmatmul.mubr.bf16.gmra.mxu0 %v771
        %v2003 = vpop.f32.mrf.mxu0
        %v2004 = vadd.f32 %v1843, %v2003
        %v2005 = vpop.f32.mrf.mxu0
        %v2006 = vpop.f32.mrf.mxu0
        %v2007 = vadd.f32 %v1846, %v2006
        %v2008 = vpop.f32.mrf.mxu0
        %2009 = vmatprep.mubr.bf16.mxu0 %v820
        %2010 = vmatmul.mubr.bf16.gmra.mxu0 %v772
        %v2011 = vpop.f32.mrf.mxu0
        %v2012 = vadd.f32 %v1851, %v2011
        %v2013 = vpop.f32.mrf.mxu0
        %v2014 = vpop.f32.mrf.mxu0
        %v2015 = vadd.f32 %v1854, %v2014
        %v2016 = vpop.f32.mrf.mxu0
        %2017 = vmatprep.mubr.bf16.mxu0 %v821
        %2018 = vmatmul.mubr.bf16.gmra.mxu0 %v773
        %v2019 = vpop.f32.mrf.mxu0
        %v2020 = vadd.f32 %v1859, %v2019
        %v2021 = vpop.f32.mrf.mxu0
        %v2022 = vpop.f32.mrf.mxu0
        %v2023 = vadd.f32 %v1862, %v2022
        %v2024 = vpop.f32.mrf.mxu0
        %2025 = vdwg.mxu0
        %2026 = vmatprep.subr.bf16.mxu0 0
        %2027 = vmatpush1.bf16.msra.mxu0 %v1454
        %2028 = vmatprep.subr.bf16.mxu0 0
        %2029 = vmatpush1.bf16.msra.mxu0 %v1453
        %2030 = vmatprep.subr.bf16.mxu0 0
        %2031 = vmatpush1.bf16.msra.mxu0 %v1452
        %2032 = vmatprep.subr.bf16.mxu0 0
        %2033 = vmatpush1.bf16.msra.mxu0 %v1451
        %2034 = vmatprep.subr.bf16.mxu0 0
        %2035 = vmatpush1.bf16.msra.mxu0 %v1450
        %2036 = vmatprep.subr.bf16.mxu0 0
        %2037 = vmatpush1.bf16.msra.mxu0 %v1449
        %2038 = vmatprep.subr.bf16.mxu0 0
        %2039 = vmatpush1.bf16.msra.mxu0 %v1448
        %2040 = vmatprep.subr.bf16.mxu0 0
        %2041 = vmatpush1.bf16.msra.mxu0 %v1447
        %2042 = vmatprep.subr.bf16.mxu0 0
        %2043 = vmatpush2.bf16.msra.mxu0 %v1462
        %2044 = vmatprep.subr.bf16.mxu0 0
        %2045 = vmatpush2.bf16.msra.mxu0 %v1461
        %2046 = vmatprep.subr.bf16.mxu0 0
        %2047 = vmatpush2.bf16.msra.mxu0 %v1460
        %2048 = vmatprep.subr.bf16.mxu0 0
        %2049 = vmatpush2.bf16.msra.mxu0 %v1459
        %2050 = vmatprep.subr.bf16.mxu0 0
        %2051 = vmatpush2.bf16.msra.mxu0 %v1458
        %2052 = vmatprep.subr.bf16.mxu0 0
        %2053 = vmatpush2.bf16.msra.mxu0 %v1457
        %2054 = vmatprep.subr.bf16.mxu0 0
        %2055 = vmatpush2.bf16.msra.mxu0 %v1456
        %2056 = vmatprep.subr.bf16.mxu0 0
        %2057 = vmatpush2.bf16.msra.mxu0 %v1455
        %2058 = vmatprep.mubr.bf16.mxu0 %v903
        %2059 = vmatmul.mubr.bf16.gmra.mxu0 %v855
        %v2060 = vpop.f32.mrf.mxu0
        %v2061 = vadd.f32 %v1900, %v2060
        %v2062 = vpop.f32.mrf.mxu0
        %v2063 = vpop.f32.mrf.mxu0
        %v2064 = vadd.f32 %v1903, %v2063
        %v2065 = vpop.f32.mrf.mxu0
        %2066 = vmatprep.mubr.bf16.mxu0 %v904
        %2067 = vmatmul.mubr.bf16.gmra.mxu0 %v856
        %v2068 = vpop.f32.mrf.mxu0
        %v2069 = vadd.f32 %v1908, %v2068
        %v2070 = vpop.f32.mrf.mxu0
        %v2071 = vpop.f32.mrf.mxu0
        %v2072 = vadd.f32 %v1911, %v2071
        %v2073 = vpop.f32.mrf.mxu0
        %2074 = vmatprep.mubr.bf16.mxu0 %v905
        %2075 = vmatmul.mubr.bf16.gmra.mxu0 %v857
        %v2076 = vpop.f32.mrf.mxu0
        %v2077 = vadd.f32 %v1916, %v2076
        %v2078 = vpop.f32.mrf.mxu0
        %v2079 = vpop.f32.mrf.mxu0
        %v2080 = vadd.f32 %v1919, %v2079
        %v2081 = vpop.f32.mrf.mxu0
        %2082 = vmatprep.mubr.bf16.mxu0 %v906
        %2083 = vmatmul.mubr.bf16.gmra.mxu0 %v858
        %v2084 = vpop.f32.mrf.mxu0
        %v2085 = vadd.f32 %v1924, %v2084
        %v2086 = vpop.f32.mrf.mxu0
        %v2087 = vpop.f32.mrf.mxu0
        %v2088 = vadd.f32 %v1927, %v2087
        %v2089 = vpop.f32.mrf.mxu0
        %2090 = vmatprep.mubr.bf16.mxu0 %v907
        %2091 = vmatmul.mubr.bf16.gmra.mxu0 %v859
        %v2092 = vpop.f32.mrf.mxu0
        %v2093 = vadd.f32 %v1932, %v2092
        %v2094 = vpop.f32.mrf.mxu0
        %v2095 = vpop.f32.mrf.mxu0
        %v2096 = vadd.f32 %v1935, %v2095
        %v2097 = vpop.f32.mrf.mxu0
        %2098 = vmatprep.mubr.bf16.mxu0 %v908
        %2099 = vmatmul.mubr.bf16.gmra.mxu0 %v860
        %v2100 = vpop.f32.mrf.mxu0
        %v2101 = vadd.f32 %v1940, %v2100
        %v2102 = vpop.f32.mrf.mxu0
        %v2103 = vpop.f32.mrf.mxu0
        %v2104 = vadd.f32 %v1943, %v2103
        %v2105 = vpop.f32.mrf.mxu0
        %2106 = vmatprep.mubr.bf16.mxu0 %v909
        %2107 = vmatmul.mubr.bf16.gmra.mxu0 %v861
        %v2108 = vpop.f32.mrf.mxu0
        %v2109 = vadd.f32 %v1948, %v2108
        %v2110 = vpop.f32.mrf.mxu0
        %v2111 = vpop.f32.mrf.mxu0
        %v2112 = vadd.f32 %v1951, %v2111
        %v2113 = vpop.f32.mrf.mxu0
        %2114 = vmatprep.mubr.bf16.mxu0 %v910
        %2115 = vmatmul.mubr.bf16.gmra.mxu0 %v862
        %v2116 = vpop.f32.mrf.mxu0
        %v2117 = vadd.f32 %v1956, %v2116
        %v2118 = vpop.f32.mrf.mxu0
        %v2119 = vpop.f32.mrf.mxu0
        %v2120 = vadd.f32 %v1959, %v2119
        %v2121 = vpop.f32.mrf.mxu0
        %2122 = vmatprep.mubr.bf16.mxu0 %v911
        %2123 = vmatmul.mubr.bf16.gmra.mxu0 %v863
        %v2124 = vpop.f32.mrf.mxu0
        %v2125 = vadd.f32 %v1964, %v2124
        %v2126 = vpop.f32.mrf.mxu0
        %v2127 = vpop.f32.mrf.mxu0
        %v2128 = vadd.f32 %v1967, %v2127
        %v2129 = vpop.f32.mrf.mxu0
        %2130 = vmatprep.mubr.bf16.mxu0 %v912
        %2131 = vmatmul.mubr.bf16.gmra.mxu0 %v864
        %v2132 = vpop.f32.mrf.mxu0
        %v2133 = vadd.f32 %v1972, %v2132
        %v2134 = vpop.f32.mrf.mxu0
        %v2135 = vpop.f32.mrf.mxu0
        %v2136 = vadd.f32 %v1975, %v2135
        %v2137 = vpop.f32.mrf.mxu0
        %2138 = vmatprep.mubr.bf16.mxu0 %v913
        %2139 = vmatmul.mubr.bf16.gmra.mxu0 %v865
        %v2140 = vpop.f32.mrf.mxu0
        %v2141 = vadd.f32 %v1980, %v2140
        %v2142 = vpop.f32.mrf.mxu0
        %v2143 = vpop.f32.mrf.mxu0
        %v2144 = vadd.f32 %v1983, %v2143
        %v2145 = vpop.f32.mrf.mxu0
        %2146 = vmatprep.mubr.bf16.mxu0 %v914
        %2147 = vmatmul.mubr.bf16.gmra.mxu0 %v866
        %v2148 = vpop.f32.mrf.mxu0
        %v2149 = vadd.f32 %v1988, %v2148
        %v2150 = vpop.f32.mrf.mxu0
        %v2151 = vpop.f32.mrf.mxu0
        %v2152 = vadd.f32 %v1991, %v2151
        %v2153 = vpop.f32.mrf.mxu0
        %2154 = vmatprep.mubr.bf16.mxu0 %v915
        %2155 = vmatmul.mubr.bf16.gmra.mxu0 %v867
        %v2156 = vpop.f32.mrf.mxu0
        %v2157 = vadd.f32 %v1996, %v2156
        %v2158 = vpop.f32.mrf.mxu0
        %v2159 = vpop.f32.mrf.mxu0
        %v2160 = vadd.f32 %v1999, %v2159
        %v2161 = vpop.f32.mrf.mxu0
        %2162 = vmatprep.mubr.bf16.mxu0 %v916
        %2163 = vmatmul.mubr.bf16.gmra.mxu0 %v868
        %v2164 = vpop.f32.mrf.mxu0
        %v2165 = vadd.f32 %v2004, %v2164
        %v2166 = vpop.f32.mrf.mxu0
        %v2167 = vpop.f32.mrf.mxu0
        %v2168 = vadd.f32 %v2007, %v2167
        %v2169 = vpop.f32.mrf.mxu0
        %2170 = vmatprep.mubr.bf16.mxu0 %v917
        %2171 = vmatmul.mubr.bf16.gmra.mxu0 %v869
        %v2172 = vpop.f32.mrf.mxu0
        %v2173 = vadd.f32 %v2012, %v2172
        %v2174 = vpop.f32.mrf.mxu0
        %v2175 = vpop.f32.mrf.mxu0
        %v2176 = vadd.f32 %v2015, %v2175
        %v2177 = vpop.f32.mrf.mxu0
        %2178 = vmatprep.mubr.bf16.mxu0 %v918
        %2179 = vmatmul.mubr.bf16.gmra.mxu0 %v870
        %v2180 = vpop.f32.mrf.mxu0
        %v2181 = vadd.f32 %v2020, %v2180
        %v2182 = vpop.f32.mrf.mxu0
        %v2183 = vpop.f32.mrf.mxu0
        %v2184 = vadd.f32 %v2023, %v2183
        %v2185 = vpop.f32.mrf.mxu0
        %2186 = vdwg.mxu0
        %2187 = vmatprep.subr.bf16.mxu0 0
        %2188 = vmatpush1.bf16.msra.mxu0 %v1470
        %2189 = vmatprep.subr.bf16.mxu0 0
        %2190 = vmatpush1.bf16.msra.mxu0 %v1469
        %2191 = vmatprep.subr.bf16.mxu0 0
        %2192 = vmatpush1.bf16.msra.mxu0 %v1468
        %2193 = vmatprep.subr.bf16.mxu0 0
        %2194 = vmatpush1.bf16.msra.mxu0 %v1467
        %2195 = vmatprep.subr.bf16.mxu0 0
        %2196 = vmatpush1.bf16.msra.mxu0 %v1466
        %2197 = vmatprep.subr.bf16.mxu0 0
        %2198 = vmatpush1.bf16.msra.mxu0 %v1465
        %2199 = vmatprep.subr.bf16.mxu0 0
        %2200 = vmatpush1.bf16.msra.mxu0 %v1464
        %2201 = vmatprep.subr.bf16.mxu0 0
        %2202 = vmatpush1.bf16.msra.mxu0 %v1463
        %2203 = vmatprep.subr.bf16.mxu0 0
        %2204 = vmatpush2.bf16.msra.mxu0 0
        %2205 = vmatprep.subr.bf16.mxu0 0
        %2206 = vmatpush2.bf16.msra.mxu0 0
        %2207 = vmatprep.subr.bf16.mxu0 0
        %2208 = vmatpush2.bf16.msra.mxu0 0
        %2209 = vmatprep.subr.bf16.mxu0 0
        %2210 = vmatpush2.bf16.msra.mxu0 0
        %2211 = vmatprep.subr.bf16.mxu0 0
        %2212 = vmatpush2.bf16.msra.mxu0 0
        %2213 = vmatprep.subr.bf16.mxu0 0
        %2214 = vmatpush2.bf16.msra.mxu0 0
        %2215 = vmatprep.subr.bf16.mxu0 0
        %2216 = vmatpush2.bf16.msra.mxu0 0
        %2217 = vmatprep.subr.bf16.mxu0 0
        %2218 = vmatpush2.bf16.msra.mxu0 0
        %2219 = vmatprep.mubr.bf16.mxu0 0
        %2220 = vmatmul.mubr.bf16.gmra.mxu0 %v951
        %v2221 = vpop.f32.mrf.mxu0
        %v2222 = vadd.f32 %v2061, %v2221
        %v2223 = vpop.f32.mrf.mxu0
        %v2224 = vpop.f32.mrf.mxu0
        %v2225 = vadd.f32 %v2064, %v2224
        %v2226 = vpop.f32.mrf.mxu0
        %2227 = vmatprep.mubr.bf16.mxu0 0
        %2228 = vmatmul.mubr.bf16.gmra.mxu0 %v952
        %v2229 = vpop.f32.mrf.mxu0
        %v2230 = vadd.f32 %v2069, %v2229
        %v2231 = vpop.f32.mrf.mxu0
        %v2232 = vpop.f32.mrf.mxu0
        %v2233 = vadd.f32 %v2072, %v2232
        %v2234 = vpop.f32.mrf.mxu0
        %2235 = vmatprep.mubr.bf16.mxu0 0
        %2236 = vmatmul.mubr.bf16.gmra.mxu0 %v953
        %v2237 = vpop.f32.mrf.mxu0
        %v2238 = vadd.f32 %v2077, %v2237
        %v2239 = vpop.f32.mrf.mxu0
        %v2240 = vpop.f32.mrf.mxu0
        %v2241 = vadd.f32 %v2080, %v2240
        %v2242 = vpop.f32.mrf.mxu0
        %2243 = vmatprep.mubr.bf16.mxu0 0
        %2244 = vmatmul.mubr.bf16.gmra.mxu0 %v954
        %v2245 = vpop.f32.mrf.mxu0
        %v2246 = vadd.f32 %v2085, %v2245
        %v2247 = vpop.f32.mrf.mxu0
        %v2248 = vpop.f32.mrf.mxu0
        %v2249 = vadd.f32 %v2088, %v2248
        %v2250 = vpop.f32.mrf.mxu0
        %2251 = vmatprep.mubr.bf16.mxu0 0
        %2252 = vmatmul.mubr.bf16.gmra.mxu0 %v955
        %v2253 = vpop.f32.mrf.mxu0
        %v2254 = vadd.f32 %v2093, %v2253
        %v2255 = vpop.f32.mrf.mxu0
        %v2256 = vpop.f32.mrf.mxu0
        %v2257 = vadd.f32 %v2096, %v2256
        %v2258 = vpop.f32.mrf.mxu0
        %2259 = vmatprep.mubr.bf16.mxu0 0
        %2260 = vmatmul.mubr.bf16.gmra.mxu0 %v956
        %v2261 = vpop.f32.mrf.mxu0
        %v2262 = vadd.f32 %v2101, %v2261
        %v2263 = vpop.f32.mrf.mxu0
        %v2264 = vpop.f32.mrf.mxu0
        %v2265 = vadd.f32 %v2104, %v2264
        %v2266 = vpop.f32.mrf.mxu0
        %2267 = vmatprep.mubr.bf16.mxu0 0
        %2268 = vmatmul.mubr.bf16.gmra.mxu0 %v957
        %v2269 = vpop.f32.mrf.mxu0
        %v2270 = vadd.f32 %v2109, %v2269
        %v2271 = vpop.f32.mrf.mxu0
        %v2272 = vpop.f32.mrf.mxu0
        %v2273 = vadd.f32 %v2112, %v2272
        %v2274 = vpop.f32.mrf.mxu0
        %2275 = vmatprep.mubr.bf16.mxu0 0
        %2276 = vmatmul.mubr.bf16.gmra.mxu0 %v958
        %v2277 = vpop.f32.mrf.mxu0
        %v2278 = vadd.f32 %v2117, %v2277
        %v2279 = vpop.f32.mrf.mxu0
        %v2280 = vpop.f32.mrf.mxu0
        %v2281 = vadd.f32 %v2120, %v2280
        %v2282 = vpop.f32.mrf.mxu0
        %2283 = vmatprep.mubr.bf16.mxu0 0
        %2284 = vmatmul.mubr.bf16.gmra.mxu0 %v959
        %v2285 = vpop.f32.mrf.mxu0
        %v2286 = vadd.f32 %v2125, %v2285
        %v2287 = vpop.f32.mrf.mxu0
        %v2288 = vpop.f32.mrf.mxu0
        %v2289 = vadd.f32 %v2128, %v2288
        %v2290 = vpop.f32.mrf.mxu0
        %2291 = vmatprep.mubr.bf16.mxu0 0
        %2292 = vmatmul.mubr.bf16.gmra.mxu0 %v960
        %v2293 = vpop.f32.mrf.mxu0
        %v2294 = vadd.f32 %v2133, %v2293
        %v2295 = vpop.f32.mrf.mxu0
        %v2296 = vpop.f32.mrf.mxu0
        %v2297 = vadd.f32 %v2136, %v2296
        %v2298 = vpop.f32.mrf.mxu0
        %2299 = vmatprep.mubr.bf16.mxu0 0
        %2300 = vmatmul.mubr.bf16.gmra.mxu0 %v961
        %v2301 = vpop.f32.mrf.mxu0
        %v2302 = vadd.f32 %v2141, %v2301
        %v2303 = vpop.f32.mrf.mxu0
        %v2304 = vpop.f32.mrf.mxu0
        %v2305 = vadd.f32 %v2144, %v2304
        %v2306 = vpop.f32.mrf.mxu0
        %2307 = vmatprep.mubr.bf16.mxu0 0
        %2308 = vmatmul.mubr.bf16.gmra.mxu0 %v962
        %v2309 = vpop.f32.mrf.mxu0
        %v2310 = vadd.f32 %v2149, %v2309
        %v2311 = vpop.f32.mrf.mxu0
        %v2312 = vpop.f32.mrf.mxu0
        %v2313 = vadd.f32 %v2152, %v2312
        %v2314 = vpop.f32.mrf.mxu0
        %2315 = vmatprep.mubr.bf16.mxu0 0
        %2316 = vmatmul.mubr.bf16.gmra.mxu0 %v963
        %v2317 = vpop.f32.mrf.mxu0
        %v2318 = vadd.f32 %v2157, %v2317
        %v2319 = vpop.f32.mrf.mxu0
        %v2320 = vpop.f32.mrf.mxu0
        %v2321 = vadd.f32 %v2160, %v2320
        %v2322 = vpop.f32.mrf.mxu0
        %2323 = vmatprep.mubr.bf16.mxu0 0
        %2324 = vmatmul.mubr.bf16.gmra.mxu0 %v964
        %v2325 = vpop.f32.mrf.mxu0
        %v2326 = vadd.f32 %v2165, %v2325
        %v2327 = vpop.f32.mrf.mxu0
        %v2328 = vpop.f32.mrf.mxu0
        %v2329 = vadd.f32 %v2168, %v2328
        %v2330 = vpop.f32.mrf.mxu0
        %2331 = vmatprep.mubr.bf16.mxu0 0
        %2332 = vmatmul.mubr.bf16.gmra.mxu0 %v965
        %v2333 = vpop.f32.mrf.mxu0
        %v2334 = vadd.f32 %v2173, %v2333
        %v2335 = vpop.f32.mrf.mxu0
        %v2336 = vpop.f32.mrf.mxu0
        %v2337 = vadd.f32 %v2176, %v2336
        %v2338 = vpop.f32.mrf.mxu0
        %2339 = vmatprep.mubr.bf16.mxu0 0
        %2340 = vmatmul.mubr.bf16.gmra.mxu0 %v966
        %v2341 = vpop.f32.mrf.mxu0
        %v2342 = vadd.f32 %v2181, %v2341
        %v2343 = vpop.f32.mrf.mxu0
        %v2344 = vpop.f32.mrf.mxu0
        %v2345 = vadd.f32 %v2184, %v2344
        %v2346 = vpop.f32.mrf.mxu0
        %2347 = vdwg.mxu0
        %v2348 = vld [vmem:[%s3] sm:$0x1]
        %v2350 = vlaneseq
        %v2351 = vshrl.u32 %v2350, 7
        %v2352 = vsub.s32 0, %v2351
        %v2353 = vrot.slane %v2348, %v2352
        %v2355 = vmul.f32 %v2222, %v2353
        %v2356 = vmul.f32 %v2225, %v2353
        %v2357 = vmul.f32 %v2230, %v2353
        %v2358 = vmul.f32 %v2233, %v2353
        %v2359 = vmul.f32 %v2238, %v2353
        %v2360 = vmul.f32 %v2241, %v2353
        %v2361 = vmul.f32 %v2246, %v2353
        %v2362 = vmul.f32 %v2249, %v2353
        %v2363 = vmul.f32 %v2254, %v2353
        %v2364 = vmul.f32 %v2257, %v2353
        %v2365 = vmul.f32 %v2262, %v2353
        %v2366 = vmul.f32 %v2265, %v2353
        %v2367 = vmul.f32 %v2270, %v2353
        %v2368 = vmul.f32 %v2273, %v2353
        %v2369 = vmul.f32 %v2278, %v2353
        %v2370 = vmul.f32 %v2281, %v2353
        %v2371 = vmul.f32 %v2286, %v2353
        %v2372 = vmul.f32 %v2289, %v2353
        %v2373 = vmul.f32 %v2294, %v2353
        %v2374 = vmul.f32 %v2297, %v2353
        %v2375 = vmul.f32 %v2302, %v2353
        %v2376 = vmul.f32 %v2305, %v2353
        %v2377 = vmul.f32 %v2310, %v2353
        %v2378 = vmul.f32 %v2313, %v2353
        %v2379 = vmul.f32 %v2318, %v2353
        %v2380 = vmul.f32 %v2321, %v2353
        %v2381 = vmul.f32 %v2326, %v2353
        %v2382 = vmul.f32 %v2329, %v2353
        %v2383 = vmul.f32 %v2334, %v2353
        %v2384 = vmul.f32 %v2337, %v2353
        %v2385 = vmul.f32 %v2342, %v2353
        %v2386 = vmul.f32 %v2345, %v2353
        %v2387 = vld [vmem:[%s4] sm:$0x1]
        %v2389 = vlaneseq
        %v2390 = vshrl.u32 %v2389, 7
        %v2391 = vsub.s32 0, %v2390
        %v2392 = vrot.slane %v2387, %v2391
        %v2394 = vadd.f32 %v2355, %v2392
        %v2395 = vadd.f32 %v2356, %v2392
        %v2396 = vadd.f32 %v2357, %v2392
        %v2397 = vadd.f32 %v2358, %v2392
        %v2398 = vadd.f32 %v2359, %v2392
        %v2399 = vadd.f32 %v2360, %v2392
        %v2400 = vadd.f32 %v2361, %v2392
        %v2401 = vadd.f32 %v2362, %v2392
        %v2402 = vadd.f32 %v2363, %v2392
        %v2403 = vadd.f32 %v2364, %v2392
        %v2404 = vadd.f32 %v2365, %v2392
        %v2405 = vadd.f32 %v2366, %v2392
        %v2406 = vadd.f32 %v2367, %v2392
        %v2407 = vadd.f32 %v2368, %v2392
        %v2408 = vadd.f32 %v2369, %v2392
        %v2409 = vadd.f32 %v2370, %v2392
        %v2410 = vadd.f32 %v2371, %v2392
        %v2411 = vadd.f32 %v2372, %v2392
        %v2412 = vadd.f32 %v2373, %v2392
        %v2413 = vadd.f32 %v2374, %v2392
        %v2414 = vadd.f32 %v2375, %v2392
        %v2415 = vadd.f32 %v2376, %v2392
        %v2416 = vadd.f32 %v2377, %v2392
        %v2417 = vadd.f32 %v2378, %v2392
        %v2418 = vadd.f32 %v2379, %v2392
        %v2419 = vadd.f32 %v2380, %v2392
        %v2420 = vadd.f32 %v2381, %v2392
        %v2421 = vadd.f32 %v2382, %v2392
        %v2422 = vadd.f32 %v2383, %v2392
        %v2423 = vadd.f32 %v2384, %v2392
        %v2424 = vadd.f32 %v2385, %v2392
        %v2425 = vadd.f32 %v2386, %v2392
        %v2426 = vmax.f32 %v2394, 0.0
        %v2427 = vmax.f32 %v2395, 0.0
        %v2428 = vmax.f32 %v2396, 0.0
        %v2429 = vmax.f32 %v2397, 0.0
        %v2430 = vmax.f32 %v2398, 0.0
        %v2431 = vmax.f32 %v2399, 0.0
        %v2432 = vmax.f32 %v2400, 0.0
        %v2433 = vmax.f32 %v2401, 0.0
        %v2434 = vmax.f32 %v2402, 0.0
        %v2435 = vmax.f32 %v2403, 0.0
        %v2436 = vmax.f32 %v2404, 0.0
        %v2437 = vmax.f32 %v2405, 0.0
        %v2438 = vmax.f32 %v2406, 0.0
        %v2439 = vmax.f32 %v2407, 0.0
        %v2440 = vmax.f32 %v2408, 0.0
        %v2441 = vmax.f32 %v2409, 0.0
        %v2442 = vmax.f32 %v2410, 0.0
        %v2443 = vmax.f32 %v2411, 0.0
        %v2444 = vmax.f32 %v2412, 0.0
        %v2445 = vmax.f32 %v2413, 0.0
        %v2446 = vmax.f32 %v2414, 0.0
        %v2447 = vmax.f32 %v2415, 0.0
        %v2448 = vmax.f32 %v2416, 0.0
        %v2449 = vmax.f32 %v2417, 0.0
        %v2450 = vmax.f32 %v2418, 0.0
        %v2451 = vmax.f32 %v2419, 0.0
        %v2452 = vmax.f32 %v2420, 0.0
        %v2453 = vmax.f32 %v2421, 0.0
        %v2454 = vmax.f32 %v2422, 0.0
        %v2455 = vmax.f32 %v2423, 0.0
        %v2456 = vmax.f32 %v2424, 0.0
        %v2457 = vmax.f32 %v2425, 0.0
        %s2458 = scalar_lea.vmem [#allocation3], 32
        %2459 = vst [vmem:[%s2458 + $0x8] sm:$0xff] %v2426
        %2460 = vst [vmem:[%s2458 + $0x10] sm:$0xff] %v2427
        %2461 = vst [vmem:[%s2458 + $0x28] sm:$0xff] %v2428
        %2462 = vst [vmem:[%s2458 + $0x30] sm:$0xff] %v2429
        %2463 = vst [vmem:[%s2458 + $0x48] sm:$0xff] %v2430
        %2464 = vst [vmem:[%s2458 + $0x50] sm:$0xff] %v2431
        %2465 = vst [vmem:[%s2458 + $0x68] sm:$0xff] %v2432
        %2466 = vst [vmem:[%s2458 + $0x70] sm:$0xff] %v2433
        %2467 = vst [vmem:[%s2458 + $0x88] sm:$0xff] %v2434
        %2468 = vst [vmem:[%s2458 + $0x90] sm:$0xff] %v2435
        %2469 = vst [vmem:[%s2458 + $0xa8] sm:$0xff] %v2436
        %2470 = vst [vmem:[%s2458 + $0xb0] sm:$0xff] %v2437
        %2471 = vst [vmem:[%s2458 + $0xc8] sm:$0xff] %v2438
        %2472 = vst [vmem:[%s2458 + $0xd0] sm:$0xff] %v2439
        %2473 = vst [vmem:[%s2458 + $0xe8] sm:$0xff] %v2440
        %2474 = vst [vmem:[%s2458 + $0xf0] sm:$0xff] %v2441
        %2475 = vst [vmem:[%s2458 + $0x108] sm:$0xff] %v2442
        %2476 = vst [vmem:[%s2458 + $0x110] sm:$0xff] %v2443
        %2477 = vst [vmem:[%s2458 + $0x128] sm:$0xff] %v2444
        %2478 = vst [vmem:[%s2458 + $0x130] sm:$0xff] %v2445
        %2479 = vst [vmem:[%s2458 + $0x148] sm:$0xff] %v2446
        %2480 = vst [vmem:[%s2458 + $0x150] sm:$0xff] %v2447
        %2481 = vst [vmem:[%s2458 + $0x168] sm:$0xff] %v2448
        %2482 = vst [vmem:[%s2458 + $0x170] sm:$0xff] %v2449
        %2483 = vst [vmem:[%s2458 + $0x188] sm:$0xff] %v2450
        %2484 = vst [vmem:[%s2458 + $0x190] sm:$0xff] %v2451
        %2485 = vst [vmem:[%s2458 + $0x1a8] sm:$0xff] %v2452
        %2486 = vst [vmem:[%s2458 + $0x1b0] sm:$0xff] %v2453
        %2487 = vst [vmem:[%s2458 + $0x1c8] sm:$0xff] %v2454
        %2488 = vst [vmem:[%s2458 + $0x1d0] sm:$0xff] %v2455
        %2489 = vst [vmem:[%s2458 + $0x1e8] sm:$0xff] %v2456
        %2490 = vst [vmem:[%s2458 + $0x1f0] sm:$0xff] %v2457
        %v2491 = vld [vmem:[#allocation3 + $0x7] sm:$0xff]
        %v2492 = vld [vmem:[#allocation3 + $0xf] sm:$0xff]
        %v2493 = vld [vmem:[#allocation3 + $0x27] sm:$0xff]
        %v2494 = vld [vmem:[#allocation3 + $0x2f] sm:$0xff]
        %v2495 = vld [vmem:[#allocation3 + $0x47] sm:$0xff]
        %v2496 = vld [vmem:[#allocation3 + $0x4f] sm:$0xff]
        %v2497 = vld [vmem:[#allocation3 + $0x67] sm:$0xff]
        %v2498 = vld [vmem:[#allocation3 + $0x6f] sm:$0xff]
        %v2499 = vld [vmem:[#allocation3 + $0x87] sm:$0xff]
        %v2500 = vld [vmem:[#allocation3 + $0x8f] sm:$0xff]
        %v2501 = vld [vmem:[#allocation3 + $0xa7] sm:$0xff]
        %v2502 = vld [vmem:[#allocation3 + $0xaf] sm:$0xff]
        %v2503 = vld [vmem:[#allocation3 + $0xc7] sm:$0xff]
        %v2504 = vld [vmem:[#allocation3 + $0xcf] sm:$0xff]
        %v2505 = vld [vmem:[#allocation3 + $0xe7] sm:$0xff]
        %v2506 = vld [vmem:[#allocation3 + $0xef] sm:$0xff]
        %v2507 = vld [vmem:[#allocation3 + $0x107] sm:$0xff]
        %v2508 = vld [vmem:[#allocation3 + $0x10f] sm:$0xff]
        %v2509 = vld [vmem:[#allocation3 + $0x127] sm:$0xff]
        %v2510 = vld [vmem:[#allocation3 + $0x12f] sm:$0xff]
        %v2511 = vld [vmem:[#allocation3 + $0x147] sm:$0xff]
        %v2512 = vld [vmem:[#allocation3 + $0x14f] sm:$0xff]
        %v2513 = vld [vmem:[#allocation3 + $0x167] sm:$0xff]
        %v2514 = vld [vmem:[#allocation3 + $0x16f] sm:$0xff]
        %v2515 = vld [vmem:[#allocation3 + $0x187] sm:$0xff]
        %v2516 = vld [vmem:[#allocation3 + $0x18f] sm:$0xff]
        %v2517 = vld [vmem:[#allocation3 + $0x1a7] sm:$0xff]
        %v2518 = vld [vmem:[#allocation3 + $0x1af] sm:$0xff]
        %v2519 = vld [vmem:[#allocation3 + $0x1c7] sm:$0xff]
        %v2520 = vld [vmem:[#allocation3 + $0x1cf] sm:$0xff]
        %v2521 = vld [vmem:[#allocation3 + $0x1e7] sm:$0xff]
        %v2522 = vld [vmem:[#allocation3 + $0x1ef] sm:$0xff]
        %v2523 = vpack.c.bf16 %v2492, %v2491
        %v2524 = vpack.c.bf16 %v2494, %v2493
        %v2525 = vpack.c.bf16 %v2496, %v2495
        %v2526 = vpack.c.bf16 %v2498, %v2497
        %v2527 = vpack.c.bf16 %v2500, %v2499
        %v2528 = vpack.c.bf16 %v2502, %v2501
        %v2529 = vpack.c.bf16 %v2504, %v2503
        %v2530 = vpack.c.bf16 %v2506, %v2505
        %v2531 = vpack.c.bf16 %v2508, %v2507
        %v2532 = vpack.c.bf16 %v2510, %v2509
        %v2533 = vpack.c.bf16 %v2512, %v2511
        %v2534 = vpack.c.bf16 %v2514, %v2513
        %v2535 = vpack.c.bf16 %v2516, %v2515
        %v2536 = vpack.c.bf16 %v2518, %v2517
        %v2537 = vpack.c.bf16 %v2520, %v2519
        %v2538 = vpack.c.bf16 %v2522, %v2521
        %v2539 = vld [vmem:[#allocation3 + $0x8] sm:$0xff]
        %v2540 = vld [vmem:[#allocation3 + $0x10] sm:$0xff]
        %v2541 = vld [vmem:[#allocation3 + $0x28] sm:$0xff]
        %v2542 = vld [vmem:[#allocation3 + $0x30] sm:$0xff]
        %v2543 = vld [vmem:[#allocation3 + $0x48] sm:$0xff]
        %v2544 = vld [vmem:[#allocation3 + $0x50] sm:$0xff]
        %v2545 = vld [vmem:[#allocation3 + $0x68] sm:$0xff]
        %v2546 = vld [vmem:[#allocation3 + $0x70] sm:$0xff]
        %v2547 = vld [vmem:[#allocation3 + $0x88] sm:$0xff]
        %v2548 = vld [vmem:[#allocation3 + $0x90] sm:$0xff]
        %v2549 = vld [vmem:[#allocation3 + $0xa8] sm:$0xff]
        %v2550 = vld [vmem:[#allocation3 + $0xb0] sm:$0xff]
        %v2551 = vld [vmem:[#allocation3 + $0xc8] sm:$0xff]
        %v2552 = vld [vmem:[#allocation3 + $0xd0] sm:$0xff]
        %v2553 = vld [vmem:[#allocation3 + $0xe8] sm:$0xff]
        %v2554 = vld [vmem:[#allocation3 + $0xf0] sm:$0xff]
        %v2555 = vld [vmem:[#allocation3 + $0x108] sm:$0xff]
        %v2556 = vld [vmem:[#allocation3 + $0x110] sm:$0xff]
        %v2557 = vld [vmem:[#allocation3 + $0x128] sm:$0xff]
        %v2558 = vld [vmem:[#allocation3 + $0x130] sm:$0xff]
        %v2559 = vld [vmem:[#allocation3 + $0x148] sm:$0xff]
        %v2560 = vld [vmem:[#allocation3 + $0x150] sm:$0xff]
        %v2561 = vld [vmem:[#allocation3 + $0x168] sm:$0xff]
        %v2562 = vld [vmem:[#allocation3 + $0x170] sm:$0xff]
        %v2563 = vld [vmem:[#allocation3 + $0x188] sm:$0xff]
        %v2564 = vld [vmem:[#allocation3 + $0x190] sm:$0xff]
        %v2565 = vld [vmem:[#allocation3 + $0x1a8] sm:$0xff]
        %v2566 = vld [vmem:[#allocation3 + $0x1b0] sm:$0xff]
        %v2567 = vld [vmem:[#allocation3 + $0x1c8] sm:$0xff]
        %v2568 = vld [vmem:[#allocation3 + $0x1d0] sm:$0xff]
        %v2569 = vld [vmem:[#allocation3 + $0x1e8] sm:$0xff]
        %v2570 = vld [vmem:[#allocation3 + $0x1f0] sm:$0xff]
        %v2571 = vpack.c.bf16 %v2540, %v2539
        %v2572 = vpack.c.bf16 %v2542, %v2541
        %v2573 = vpack.c.bf16 %v2544, %v2543
        %v2574 = vpack.c.bf16 %v2546, %v2545
        %v2575 = vpack.c.bf16 %v2548, %v2547
        %v2576 = vpack.c.bf16 %v2550, %v2549
        %v2577 = vpack.c.bf16 %v2552, %v2551
        %v2578 = vpack.c.bf16 %v2554, %v2553
        %v2579 = vpack.c.bf16 %v2556, %v2555
        %v2580 = vpack.c.bf16 %v2558, %v2557
        %v2581 = vpack.c.bf16 %v2560, %v2559
        %v2582 = vpack.c.bf16 %v2562, %v2561
        %v2583 = vpack.c.bf16 %v2564, %v2563
        %v2584 = vpack.c.bf16 %v2566, %v2565
        %v2585 = vpack.c.bf16 %v2568, %v2567
        %v2586 = vpack.c.bf16 %v2570, %v2569
        %v2587 = vld [vmem:[#allocation3 + $0x9] sm:$0xff]
        %v2588 = vld [vmem:[#allocation3 + $0x11] sm:$0xff]
        %v2589 = vld [vmem:[#allocation3 + $0x29] sm:$0xff]
        %v2590 = vld [vmem:[#allocation3 + $0x31] sm:$0xff]
        %v2591 = vld [vmem:[#allocation3 + $0x49] sm:$0xff]
        %v2592 = vld [vmem:[#allocation3 + $0x51] sm:$0xff]
        %v2593 = vld [vmem:[#allocation3 + $0x69] sm:$0xff]
        %v2594 = vld [vmem:[#allocation3 + $0x71] sm:$0xff]
        %v2595 = vld [vmem:[#allocation3 + $0x89] sm:$0xff]
        %v2596 = vld [vmem:[#allocation3 + $0x91] sm:$0xff]
        %v2597 = vld [vmem:[#allocation3 + $0xa9] sm:$0xff]
        %v2598 = vld [vmem:[#allocation3 + $0xb1] sm:$0xff]
        %v2599 = vld [vmem:[#allocation3 + $0xc9] sm:$0xff]
        %v2600 = vld [vmem:[#allocation3 + $0xd1] sm:$0xff]
        %v2601 = vld [vmem:[#allocation3 + $0xe9] sm:$0xff]
        %v2602 = vld [vmem:[#allocation3 + $0xf1] sm:$0xff]
        %v2603 = vld [vmem:[#allocation3 + $0x109] sm:$0xff]
        %v2604 = vld [vmem:[#allocation3 + $0x111] sm:$0xff]
        %v2605 = vld [vmem:[#allocation3 + $0x129] sm:$0xff]
        %v2606 = vld [vmem:[#allocation3 + $0x131] sm:$0xff]
        %v2607 = vld [vmem:[#allocation3 + $0x149] sm:$0xff]
        %v2608 = vld [vmem:[#allocation3 + $0x151] sm:$0xff]
        %v2609 = vld [vmem:[#allocation3 + $0x169] sm:$0xff]
        %v2610 = vld [vmem:[#allocation3 + $0x171] sm:$0xff]
        %v2611 = vld [vmem:[#allocation3 + $0x189] sm:$0xff]
        %v2612 = vld [vmem:[#allocation3 + $0x191] sm:$0xff]
        %v2613 = vld [vmem:[#allocation3 + $0x1a9] sm:$0xff]
        %v2614 = vld [vmem:[#allocation3 + $0x1b1] sm:$0xff]
        %v2615 = vld [vmem:[#allocation3 + $0x1c9] sm:$0xff]
        %v2616 = vld [vmem:[#allocation3 + $0x1d1] sm:$0xff]
        %v2617 = vld [vmem:[#allocation3 + $0x1e9] sm:$0xff]
        %v2618 = vld [vmem:[#allocation3 + $0x1f1] sm:$0xff]
        %v2619 = vpack.c.bf16 %v2588, %v2587
        %v2620 = vpack.c.bf16 %v2590, %v2589
        %v2621 = vpack.c.bf16 %v2592, %v2591
        %v2622 = vpack.c.bf16 %v2594, %v2593
        %v2623 = vpack.c.bf16 %v2596, %v2595
        %v2624 = vpack.c.bf16 %v2598, %v2597
        %v2625 = vpack.c.bf16 %v2600, %v2599
        %v2626 = vpack.c.bf16 %v2602, %v2601
        %v2627 = vpack.c.bf16 %v2604, %v2603
        %v2628 = vpack.c.bf16 %v2606, %v2605
        %v2629 = vpack.c.bf16 %v2608, %v2607
        %v2630 = vpack.c.bf16 %v2610, %v2609
        %v2631 = vpack.c.bf16 %v2612, %v2611
        %v2632 = vpack.c.bf16 %v2614, %v2613
        %v2633 = vpack.c.bf16 %v2616, %v2615
        %v2634 = vpack.c.bf16 %v2618, %v2617
        %v2635 = vld [vmem:[%s2458 + $0x7] sm:$0xff]
        %v2636 = vld [vmem:[%s2458 + $0xf] sm:$0xff]
        %v2637 = vld [vmem:[%s2458 + $0x27] sm:$0xff]
        %v2638 = vld [vmem:[%s2458 + $0x2f] sm:$0xff]
        %v2639 = vld [vmem:[%s2458 + $0x47] sm:$0xff]
        %v2640 = vld [vmem:[%s2458 + $0x4f] sm:$0xff]
        %v2641 = vld [vmem:[%s2458 + $0x67] sm:$0xff]
        %v2642 = vld [vmem:[%s2458 + $0x6f] sm:$0xff]
        %v2643 = vld [vmem:[%s2458 + $0x87] sm:$0xff]
        %v2644 = vld [vmem:[%s2458 + $0x8f] sm:$0xff]
        %v2645 = vld [vmem:[%s2458 + $0xa7] sm:$0xff]
        %v2646 = vld [vmem:[%s2458 + $0xaf] sm:$0xff]
        %v2647 = vld [vmem:[%s2458 + $0xc7] sm:$0xff]
        %v2648 = vld [vmem:[%s2458 + $0xcf] sm:$0xff]
        %v2649 = vld [vmem:[%s2458 + $0xe7] sm:$0xff]
        %v2650 = vld [vmem:[%s2458 + $0xef] sm:$0xff]
        %v2651 = vld [vmem:[%s2458 + $0x107] sm:$0xff]
        %v2652 = vld [vmem:[%s2458 + $0x10f] sm:$0xff]
        %v2653 = vld [vmem:[%s2458 + $0x127] sm:$0xff]
        %v2654 = vld [vmem:[%s2458 + $0x12f] sm:$0xff]
        %v2655 = vld [vmem:[%s2458 + $0x147] sm:$0xff]
        %v2656 = vld [vmem:[%s2458 + $0x14f] sm:$0xff]
        %v2657 = vld [vmem:[%s2458 + $0x167] sm:$0xff]
        %v2658 = vld [vmem:[%s2458 + $0x16f] sm:$0xff]
        %v2659 = vld [vmem:[%s2458 + $0x187] sm:$0xff]
        %v2660 = vld [vmem:[%s2458 + $0x18f] sm:$0xff]
        %v2661 = vld [vmem:[%s2458 + $0x1a7] sm:$0xff]
        %v2662 = vld [vmem:[%s2458 + $0x1af] sm:$0xff]
        %v2663 = vld [vmem:[%s2458 + $0x1c7] sm:$0xff]
        %v2664 = vld [vmem:[%s2458 + $0x1cf] sm:$0xff]
        %v2665 = vld [vmem:[%s2458 + $0x1e7] sm:$0xff]
        %v2666 = vld [vmem:[%s2458 + $0x1ef] sm:$0xff]
        %v2667 = vpack.c.bf16 %v2636, %v2635
        %v2668 = vpack.c.bf16 %v2638, %v2637
        %v2669 = vpack.c.bf16 %v2640, %v2639
        %v2670 = vpack.c.bf16 %v2642, %v2641
        %v2671 = vpack.c.bf16 %v2644, %v2643
        %v2672 = vpack.c.bf16 %v2646, %v2645
        %v2673 = vpack.c.bf16 %v2648, %v2647
        %v2674 = vpack.c.bf16 %v2650, %v2649
        %v2675 = vpack.c.bf16 %v2652, %v2651
        %v2676 = vpack.c.bf16 %v2654, %v2653
        %v2677 = vpack.c.bf16 %v2656, %v2655
        %v2678 = vpack.c.bf16 %v2658, %v2657
        %v2679 = vpack.c.bf16 %v2660, %v2659
        %v2680 = vpack.c.bf16 %v2662, %v2661
        %v2681 = vpack.c.bf16 %v2664, %v2663
        %v2682 = vpack.c.bf16 %v2666, %v2665
        %v2683 = vld [vmem:[%s2458 + $0x8] sm:$0xff]
        %v2684 = vld [vmem:[%s2458 + $0x10] sm:$0xff]
        %v2685 = vld [vmem:[%s2458 + $0x28] sm:$0xff]
        %v2686 = vld [vmem:[%s2458 + $0x30] sm:$0xff]
        %v2687 = vld [vmem:[%s2458 + $0x48] sm:$0xff]
        %v2688 = vld [vmem:[%s2458 + $0x50] sm:$0xff]
        %v2689 = vld [vmem:[%s2458 + $0x68] sm:$0xff]
        %v2690 = vld [vmem:[%s2458 + $0x70] sm:$0xff]
        %v2691 = vld [vmem:[%s2458 + $0x88] sm:$0xff]
        %v2692 = vld [vmem:[%s2458 + $0x90] sm:$0xff]
        %v2693 = vld [vmem:[%s2458 + $0xa8] sm:$0xff]
        %v2694 = vld [vmem:[%s2458 + $0xb0] sm:$0xff]
        %v2695 = vld [vmem:[%s2458 + $0xc8] sm:$0xff]
        %v2696 = vld [vmem:[%s2458 + $0xd0] sm:$0xff]
        %v2697 = vld [vmem:[%s2458 + $0xe8] sm:$0xff]
        %v2698 = vld [vmem:[%s2458 + $0xf0] sm:$0xff]
        %v2699 = vld [vmem:[%s2458 + $0x108] sm:$0xff]
        %v2700 = vld [vmem:[%s2458 + $0x110] sm:$0xff]
        %v2701 = vld [vmem:[%s2458 + $0x128] sm:$0xff]
        %v2702 = vld [vmem:[%s2458 + $0x130] sm:$0xff]
        %v2703 = vld [vmem:[%s2458 + $0x148] sm:$0xff]
        %v2704 = vld [vmem:[%s2458 + $0x150] sm:$0xff]
        %v2705 = vld [vmem:[%s2458 + $0x168] sm:$0xff]
        %v2706 = vld [vmem:[%s2458 + $0x170] sm:$0xff]
        %v2707 = vld [vmem:[%s2458 + $0x188] sm:$0xff]
        %v2708 = vld [vmem:[%s2458 + $0x190] sm:$0xff]
        %v2709 = vld [vmem:[%s2458 + $0x1a8] sm:$0xff]
        %v2710 = vld [vmem:[%s2458 + $0x1b0] sm:$0xff]
        %v2711 = vld [vmem:[%s2458 + $0x1c8] sm:$0xff]
        %v2712 = vld [vmem:[%s2458 + $0x1d0] sm:$0xff]
        %v2713 = vld [vmem:[%s2458 + $0x1e8] sm:$0xff]
        %v2714 = vld [vmem:[%s2458 + $0x1f0] sm:$0xff]
        %v2715 = vpack.c.bf16 %v2684, %v2683
        %v2716 = vpack.c.bf16 %v2686, %v2685
        %v2717 = vpack.c.bf16 %v2688, %v2687
        %v2718 = vpack.c.bf16 %v2690, %v2689
        %v2719 = vpack.c.bf16 %v2692, %v2691
        %v2720 = vpack.c.bf16 %v2694, %v2693
        %v2721 = vpack.c.bf16 %v2696, %v2695
        %v2722 = vpack.c.bf16 %v2698, %v2697
        %v2723 = vpack.c.bf16 %v2700, %v2699
        %v2724 = vpack.c.bf16 %v2702, %v2701
        %v2725 = vpack.c.bf16 %v2704, %v2703
        %v2726 = vpack.c.bf16 %v2706, %v2705
        %v2727 = vpack.c.bf16 %v2708, %v2707
        %v2728 = vpack.c.bf16 %v2710, %v2709
        %v2729 = vpack.c.bf16 %v2712, %v2711
        %v2730 = vpack.c.bf16 %v2714, %v2713
        %v2731 = vld [vmem:[%s2458 + $0x9] sm:$0xff]
        %v2732 = vld [vmem:[%s2458 + $0x11] sm:$0xff]
        %v2733 = vld [vmem:[%s2458 + $0x29] sm:$0xff]
        %v2734 = vld [vmem:[%s2458 + $0x31] sm:$0xff]
        %v2735 = vld [vmem:[%s2458 + $0x49] sm:$0xff]
        %v2736 = vld [vmem:[%s2458 + $0x51] sm:$0xff]
        %v2737 = vld [vmem:[%s2458 + $0x69] sm:$0xff]
        %v2738 = vld [vmem:[%s2458 + $0x71] sm:$0xff]
        %v2739 = vld [vmem:[%s2458 + $0x89] sm:$0xff]
        %v2740 = vld [vmem:[%s2458 + $0x91] sm:$0xff]
        %v2741 = vld [vmem:[%s2458 + $0xa9] sm:$0xff]
        %v2742 = vld [vmem:[%s2458 + $0xb1] sm:$0xff]
        %v2743 = vld [vmem:[%s2458 + $0xc9] sm:$0xff]
        %v2744 = vld [vmem:[%s2458 + $0xd1] sm:$0xff]
        %v2745 = vld [vmem:[%s2458 + $0xe9] sm:$0xff]
        %v2746 = vld [vmem:[%s2458 + $0xf1] sm:$0xff]
        %v2747 = vld [vmem:[%s2458 + $0x109] sm:$0xff]
        %v2748 = vld [vmem:[%s2458 + $0x111] sm:$0xff]
        %v2749 = vld [vmem:[%s2458 + $0x129] sm:$0xff]
        %v2750 = vld [vmem:[%s2458 + $0x131] sm:$0xff]
        %v2751 = vld [vmem:[%s2458 + $0x149] sm:$0xff]
        %v2752 = vld [vmem:[%s2458 + $0x151] sm:$0xff]
        %v2753 = vld [vmem:[%s2458 + $0x169] sm:$0xff]
        %v2754 = vld [vmem:[%s2458 + $0x171] sm:$0xff]
        %v2755 = vld [vmem:[%s2458 + $0x189] sm:$0xff]
        %v2756 = vld [vmem:[%s2458 + $0x191] sm:$0xff]
        %v2757 = vld [vmem:[%s2458 + $0x1a9] sm:$0xff]
        %v2758 = vld [vmem:[%s2458 + $0x1b1] sm:$0xff]
        %v2759 = vld [vmem:[%s2458 + $0x1c9] sm:$0xff]
        %v2760 = vld [vmem:[%s2458 + $0x1d1] sm:$0xff]
        %v2761 = vld [vmem:[%s2458 + $0x1e9] sm:$0xff]
        %v2762 = vld [vmem:[%s2458 + $0x1f1] sm:$0xff]
        %v2763 = vpack.c.bf16 %v2732, %v2731
        %v2764 = vpack.c.bf16 %v2734, %v2733
        %v2765 = vpack.c.bf16 %v2736, %v2735
        %v2766 = vpack.c.bf16 %v2738, %v2737
        %v2767 = vpack.c.bf16 %v2740, %v2739
        %v2768 = vpack.c.bf16 %v2742, %v2741
        %v2769 = vpack.c.bf16 %v2744, %v2743
        %v2770 = vpack.c.bf16 %v2746, %v2745
        %v2771 = vpack.c.bf16 %v2748, %v2747
        %v2772 = vpack.c.bf16 %v2750, %v2749
        %v2773 = vpack.c.bf16 %v2752, %v2751
        %v2774 = vpack.c.bf16 %v2754, %v2753
        %v2775 = vpack.c.bf16 %v2756, %v2755
        %v2776 = vpack.c.bf16 %v2758, %v2757
        %v2777 = vpack.c.bf16 %v2760, %v2759
        %v2778 = vpack.c.bf16 %v2762, %v2761
        %s2779 = scalar_lea.vmem [#allocation3], 64
        %v2780 = vld [vmem:[%s2779 + $0x7] sm:$0xff]
        %v2781 = vld [vmem:[%s2779 + $0xf] sm:$0xff]
        %v2782 = vld [vmem:[%s2779 + $0x27] sm:$0xff]
        %v2783 = vld [vmem:[%s2779 + $0x2f] sm:$0xff]
        %v2784 = vld [vmem:[%s2779 + $0x47] sm:$0xff]
        %v2785 = vld [vmem:[%s2779 + $0x4f] sm:$0xff]
        %v2786 = vld [vmem:[%s2779 + $0x67] sm:$0xff]
        %v2787 = vld [vmem:[%s2779 + $0x6f] sm:$0xff]
        %v2788 = vld [vmem:[%s2779 + $0x87] sm:$0xff]
        %v2789 = vld [vmem:[%s2779 + $0x8f] sm:$0xff]
        %v2790 = vld [vmem:[%s2779 + $0xa7] sm:$0xff]
        %v2791 = vld [vmem:[%s2779 + $0xaf] sm:$0xff]
        %v2792 = vld [vmem:[%s2779 + $0xc7] sm:$0xff]
        %v2793 = vld [vmem:[%s2779 + $0xcf] sm:$0xff]
        %v2794 = vld [vmem:[%s2779 + $0xe7] sm:$0xff]
        %v2795 = vld [vmem:[%s2779 + $0xef] sm:$0xff]
        %v2796 = vld [vmem:[%s2779 + $0x107] sm:$0xff]
        %v2797 = vld [vmem:[%s2779 + $0x10f] sm:$0xff]
        %v2798 = vld [vmem:[%s2779 + $0x127] sm:$0xff]
        %v2799 = vld [vmem:[%s2779 + $0x12f] sm:$0xff]
        %v2800 = vld [vmem:[%s2779 + $0x147] sm:$0xff]
        %v2801 = vld [vmem:[%s2779 + $0x14f] sm:$0xff]
        %v2802 = vld [vmem:[%s2779 + $0x167] sm:$0xff]
        %v2803 = vld [vmem:[%s2779 + $0x16f] sm:$0xff]
        %v2804 = vld [vmem:[%s2779 + $0x187] sm:$0xff]
        %v2805 = vld [vmem:[%s2779 + $0x18f] sm:$0xff]
        %v2806 = vld [vmem:[%s2779 + $0x1a7] sm:$0xff]
        %v2807 = vld [vmem:[%s2779 + $0x1af] sm:$0xff]
        %v2808 = vld [vmem:[%s2779 + $0x1c7] sm:$0xff]
        %v2809 = vld [vmem:[%s2779 + $0x1cf] sm:$0xff]
        %v2810 = vld [vmem:[%s2779 + $0x1e7] sm:$0xff]
        %v2811 = vld [vmem:[%s2779 + $0x1ef] sm:$0xff]
        %v2812 = vpack.c.bf16 %v2781, %v2780
        %v2813 = vpack.c.bf16 %v2783, %v2782
        %v2814 = vpack.c.bf16 %v2785, %v2784
        %v2815 = vpack.c.bf16 %v2787, %v2786
        %v2816 = vpack.c.bf16 %v2789, %v2788
        %v2817 = vpack.c.bf16 %v2791, %v2790
        %v2818 = vpack.c.bf16 %v2793, %v2792
        %v2819 = vpack.c.bf16 %v2795, %v2794
        %v2820 = vpack.c.bf16 %v2797, %v2796
        %v2821 = vpack.c.bf16 %v2799, %v2798
        %v2822 = vpack.c.bf16 %v2801, %v2800
        %v2823 = vpack.c.bf16 %v2803, %v2802
        %v2824 = vpack.c.bf16 %v2805, %v2804
        %v2825 = vpack.c.bf16 %v2807, %v2806
        %v2826 = vpack.c.bf16 %v2809, %v2808
        %v2827 = vpack.c.bf16 %v2811, %v2810
        %v2828 = vld [vmem:[%s2779 + $0x8] sm:$0xff]
        %v2829 = vld [vmem:[%s2779 + $0x10] sm:$0xff]
        %v2830 = vld [vmem:[%s2779 + $0x28] sm:$0xff]
        %v2831 = vld [vmem:[%s2779 + $0x30] sm:$0xff]
        %v2832 = vld [vmem:[%s2779 + $0x48] sm:$0xff]
        %v2833 = vld [vmem:[%s2779 + $0x50] sm:$0xff]
        %v2834 = vld [vmem:[%s2779 + $0x68] sm:$0xff]
        %v2835 = vld [vmem:[%s2779 + $0x70] sm:$0xff]
        %v2836 = vld [vmem:[%s2779 + $0x88] sm:$0xff]
        %v2837 = vld [vmem:[%s2779 + $0x90] sm:$0xff]
        %v2838 = vld [vmem:[%s2779 + $0xa8] sm:$0xff]
        %v2839 = vld [vmem:[%s2779 + $0xb0] sm:$0xff]
        %v2840 = vld [vmem:[%s2779 + $0xc8] sm:$0xff]
        %v2841 = vld [vmem:[%s2779 + $0xd0] sm:$0xff]
        %v2842 = vld [vmem:[%s2779 + $0xe8] sm:$0xff]
        %v2843 = vld [vmem:[%s2779 + $0xf0] sm:$0xff]
        %v2844 = vld [vmem:[%s2779 + $0x108] sm:$0xff]
        %v2845 = vld [vmem:[%s2779 + $0x110] sm:$0xff]
        %v2846 = vld [vmem:[%s2779 + $0x128] sm:$0xff]
        %v2847 = vld [vmem:[%s2779 + $0x130] sm:$0xff]
        %v2848 = vld [vmem:[%s2779 + $0x148] sm:$0xff]
        %v2849 = vld [vmem:[%s2779 + $0x150] sm:$0xff]
        %v2850 = vld [vmem:[%s2779 + $0x168] sm:$0xff]
        %v2851 = vld [vmem:[%s2779 + $0x170] sm:$0xff]
        %v2852 = vld [vmem:[%s2779 + $0x188] sm:$0xff]
        %v2853 = vld [vmem:[%s2779 + $0x190] sm:$0xff]
        %v2854 = vld [vmem:[%s2779 + $0x1a8] sm:$0xff]
        %v2855 = vld [vmem:[%s2779 + $0x1b0] sm:$0xff]
        %v2856 = vld [vmem:[%s2779 + $0x1c8] sm:$0xff]
        %v2857 = vld [vmem:[%s2779 + $0x1d0] sm:$0xff]
        %v2858 = vld [vmem:[%s2779 + $0x1e8] sm:$0xff]
        %v2859 = vld [vmem:[%s2779 + $0x1f0] sm:$0xff]
        %v2860 = vpack.c.bf16 %v2829, %v2828
        %v2861 = vpack.c.bf16 %v2831, %v2830
        %v2862 = vpack.c.bf16 %v2833, %v2832
        %v2863 = vpack.c.bf16 %v2835, %v2834
        %v2864 = vpack.c.bf16 %v2837, %v2836
        %v2865 = vpack.c.bf16 %v2839, %v2838
        %v2866 = vpack.c.bf16 %v2841, %v2840
        %v2867 = vpack.c.bf16 %v2843, %v2842
        %v2868 = vpack.c.bf16 %v2845, %v2844
        %v2869 = vpack.c.bf16 %v2847, %v2846
        %v2870 = vpack.c.bf16 %v2849, %v2848
        %v2871 = vpack.c.bf16 %v2851, %v2850
        %v2872 = vpack.c.bf16 %v2853, %v2852
        %v2873 = vpack.c.bf16 %v2855, %v2854
        %v2874 = vpack.c.bf16 %v2857, %v2856
        %v2875 = vpack.c.bf16 %v2859, %v2858
        %v2876 = vld [vmem:[%s2779 + $0x9] sm:$0xff]
        %v2877 = vld [vmem:[%s2779 + $0x11] sm:$0xff]
        %v2878 = vld [vmem:[%s2779 + $0x29] sm:$0xff]
        %v2879 = vld [vmem:[%s2779 + $0x31] sm:$0xff]
        %v2880 = vld [vmem:[%s2779 + $0x49] sm:$0xff]
        %v2881 = vld [vmem:[%s2779 + $0x51] sm:$0xff]
        %v2882 = vld [vmem:[%s2779 + $0x69] sm:$0xff]
        %v2883 = vld [vmem:[%s2779 + $0x71] sm:$0xff]
        %v2884 = vld [vmem:[%s2779 + $0x89] sm:$0xff]
        %v2885 = vld [vmem:[%s2779 + $0x91] sm:$0xff]
        %v2886 = vld [vmem:[%s2779 + $0xa9] sm:$0xff]
        %v2887 = vld [vmem:[%s2779 + $0xb1] sm:$0xff]
        %v2888 = vld [vmem:[%s2779 + $0xc9] sm:$0xff]
        %v2889 = vld [vmem:[%s2779 + $0xd1] sm:$0xff]
        %v2890 = vld [vmem:[%s2779 + $0xe9] sm:$0xff]
        %v2891 = vld [vmem:[%s2779 + $0xf1] sm:$0xff]
        %v2892 = vld [vmem:[%s2779 + $0x109] sm:$0xff]
        %v2893 = vld [vmem:[%s2779 + $0x111] sm:$0xff]
        %v2894 = vld [vmem:[%s2779 + $0x129] sm:$0xff]
        %v2895 = vld [vmem:[%s2779 + $0x131] sm:$0xff]
        %v2896 = vld [vmem:[%s2779 + $0x149] sm:$0xff]
        %v2897 = vld [vmem:[%s2779 + $0x151] sm:$0xff]
        %v2898 = vld [vmem:[%s2779 + $0x169] sm:$0xff]
        %v2899 = vld [vmem:[%s2779 + $0x171] sm:$0xff]
        %v2900 = vld [vmem:[%s2779 + $0x189] sm:$0xff]
        %v2901 = vld [vmem:[%s2779 + $0x191] sm:$0xff]
        %v2902 = vld [vmem:[%s2779 + $0x1a9] sm:$0xff]
        %v2903 = vld [vmem:[%s2779 + $0x1b1] sm:$0xff]
        %v2904 = vld [vmem:[%s2779 + $0x1c9] sm:$0xff]
        %v2905 = vld [vmem:[%s2779 + $0x1d1] sm:$0xff]
        %v2906 = vld [vmem:[%s2779 + $0x1e9] sm:$0xff]
        %v2907 = vld [vmem:[%s2779 + $0x1f1] sm:$0xff]
        %v2908 = vpack.c.bf16 %v2877, %v2876
        %v2909 = vpack.c.bf16 %v2879, %v2878
        %v2910 = vpack.c.bf16 %v2881, %v2880
        %v2911 = vpack.c.bf16 %v2883, %v2882
        %v2912 = vpack.c.bf16 %v2885, %v2884
        %v2913 = vpack.c.bf16 %v2887, %v2886
        %v2914 = vpack.c.bf16 %v2889, %v2888
        %v2915 = vpack.c.bf16 %v2891, %v2890
        %v2916 = vpack.c.bf16 %v2893, %v2892
        %v2917 = vpack.c.bf16 %v2895, %v2894
        %v2918 = vpack.c.bf16 %v2897, %v2896
        %v2919 = vpack.c.bf16 %v2899, %v2898
        %v2920 = vpack.c.bf16 %v2901, %v2900
        %v2921 = vpack.c.bf16 %v2903, %v2902
        %v2922 = vpack.c.bf16 %v2905, %v2904
        %v2923 = vpack.c.bf16 %v2907, %v2906
        %v2924 = vld [vmem:[%s2] sm:$0xf]
        %v2925 = vld [vmem:[%s2 + $0x4] sm:$0xf]
        %v2926 = vld [vmem:[%s2 + $0x8] sm:$0xf]
        %v2927 = vld [vmem:[%s2 + $0xc] sm:$0xf]
        %v2928 = vld [vmem:[%s2 + $0x10] sm:$0xf]
        %v2929 = vld [vmem:[%s2 + $0x14] sm:$0xf]
        %v2930 = vld [vmem:[%s2 + $0x18] sm:$0xf]
        %v2931 = vld [vmem:[%s2 + $0x1c] sm:$0xf]
        %v2932 = vld [vmem:[%s2 + $0x20] sm:$0xf]
        %v2933 = vld [vmem:[%s2 + $0x24] sm:$0xf]
        %v2934 = vld [vmem:[%s2 + $0x28] sm:$0xf]
        %v2935 = vld [vmem:[%s2 + $0x2c] sm:$0xf]
        %v2936 = vld [vmem:[%s2 + $0x30] sm:$0xf]
        %v2937 = vld [vmem:[%s2 + $0x34] sm:$0xf]
        %v2938 = vld [vmem:[%s2 + $0x38] sm:$0xf]
        %v2939 = vld [vmem:[%s2 + $0x3c] sm:$0xf]
        %v2940 = vld [vmem:[%s2 + $0x40] sm:$0xf]
        %v2941 = vld [vmem:[%s2 + $0x44] sm:$0xf]
        %v2942 = vld [vmem:[%s2 + $0x48] sm:$0xf]
        %v2943 = vld [vmem:[%s2 + $0x4c] sm:$0xf]
        %v2944 = vld [vmem:[%s2 + $0x50] sm:$0xf]
        %v2945 = vld [vmem:[%s2 + $0x54] sm:$0xf]
        %v2946 = vld [vmem:[%s2 + $0x58] sm:$0xf]
        %v2947 = vld [vmem:[%s2 + $0x5c] sm:$0xf]
        %v2948 = vld [vmem:[%s2 + $0x60] sm:$0xf]
        %v2949 = vld [vmem:[%s2 + $0x64] sm:$0xf]
        %v2950 = vld [vmem:[%s2 + $0x68] sm:$0xf]
        %v2951 = vld [vmem:[%s2 + $0x6c] sm:$0xf]
        %v2952 = vld [vmem:[%s2 + $0x70] sm:$0xf]
        %v2953 = vld [vmem:[%s2 + $0x74] sm:$0xf]
        %v2954 = vld [vmem:[%s2 + $0x78] sm:$0xf]
        %v2955 = vld [vmem:[%s2 + $0x7c] sm:$0xf]
        %v2956 = vld [vmem:[%s2 + $0x80] sm:$0xf]
        %v2957 = vld [vmem:[%s2 + $0x84] sm:$0xf]
        %v2958 = vld [vmem:[%s2 + $0x88] sm:$0xf]
        %v2959 = vld [vmem:[%s2 + $0x8c] sm:$0xf]
        %v2960 = vld [vmem:[%s2 + $0x90] sm:$0xf]
        %v2961 = vld [vmem:[%s2 + $0x94] sm:$0xf]
        %v2962 = vld [vmem:[%s2 + $0x98] sm:$0xf]
        %v2963 = vld [vmem:[%s2 + $0x9c] sm:$0xf]
        %v2964 = vld [vmem:[%s2 + $0xa0] sm:$0xf]
        %v2965 = vld [vmem:[%s2 + $0xa4] sm:$0xf]
        %v2966 = vld [vmem:[%s2 + $0xa8] sm:$0xf]
        %v2967 = vld [vmem:[%s2 + $0xac] sm:$0xf]
        %v2968 = vld [vmem:[%s2 + $0xb0] sm:$0xf]
        %v2969 = vld [vmem:[%s2 + $0xb4] sm:$0xf]
        %v2970 = vld [vmem:[%s2 + $0xb8] sm:$0xf]
        %v2971 = vld [vmem:[%s2 + $0xbc] sm:$0xf]
        %v2972 = vld [vmem:[%s2 + $0xc0] sm:$0xf]
        %v2973 = vld [vmem:[%s2 + $0xc4] sm:$0xf]
        %v2974 = vld [vmem:[%s2 + $0xc8] sm:$0xf]
        %v2975 = vld [vmem:[%s2 + $0xcc] sm:$0xf]
        %v2976 = vld [vmem:[%s2 + $0xd0] sm:$0xf]
        %v2977 = vld [vmem:[%s2 + $0xd4] sm:$0xf]
        %v2978 = vld [vmem:[%s2 + $0xd8] sm:$0xf]
        %v2979 = vld [vmem:[%s2 + $0xdc] sm:$0xf]
        %v2980 = vld [vmem:[%s2 + $0xe0] sm:$0xf]
        %v2981 = vld [vmem:[%s2 + $0xe4] sm:$0xf]
        %v2982 = vld [vmem:[%s2 + $0xe8] sm:$0xf]
        %v2983 = vld [vmem:[%s2 + $0xec] sm:$0xf]
        %v2984 = vld [vmem:[%s2 + $0xf0] sm:$0xf]
        %v2985 = vld [vmem:[%s2 + $0xf4] sm:$0xf]
        %v2986 = vld [vmem:[%s2 + $0xf8] sm:$0xf]
        %v2987 = vld [vmem:[%s2 + $0xfc] sm:$0xf]
        %v2988 = vld [vmem:[%s2 + $0x100] sm:$0xf]
        %v2989 = vld [vmem:[%s2 + $0x104] sm:$0xf]
        %v2990 = vld [vmem:[%s2 + $0x108] sm:$0xf]
        %v2991 = vld [vmem:[%s2 + $0x10c] sm:$0xf]
        %v2992 = vld [vmem:[%s2 + $0x110] sm:$0xf]
        %v2993 = vld [vmem:[%s2 + $0x114] sm:$0xf]
        %v2994 = vld [vmem:[%s2 + $0x118] sm:$0xf]
        %v2995 = vld [vmem:[%s2 + $0x11c] sm:$0xf]
        %v2996 = vld [vmem:[%s2 + $0x120] sm:$0xf]
        %v2997 = vld [vmem:[%s2 + $0x124] sm:$0xf]
        %v2998 = vld [vmem:[%s2 + $0x128] sm:$0xf]
        %v2999 = vld [vmem:[%s2 + $0x12c] sm:$0xf]
        %v3000 = vld [vmem:[%s2 + $0x130] sm:$0xf]
        %v3001 = vld [vmem:[%s2 + $0x134] sm:$0xf]
        %v3002 = vld [vmem:[%s2 + $0x138] sm:$0xf]
        %v3003 = vld [vmem:[%s2 + $0x13c] sm:$0xf]
        %v3004 = vld [vmem:[%s2 + $0x140] sm:$0xf]
        %v3005 = vld [vmem:[%s2 + $0x144] sm:$0xf]
        %v3006 = vld [vmem:[%s2 + $0x148] sm:$0xf]
        %v3007 = vld [vmem:[%s2 + $0x14c] sm:$0xf]
        %v3008 = vld [vmem:[%s2 + $0x150] sm:$0xf]
        %v3009 = vld [vmem:[%s2 + $0x154] sm:$0xf]
        %v3010 = vld [vmem:[%s2 + $0x158] sm:$0xf]
        %v3011 = vld [vmem:[%s2 + $0x15c] sm:$0xf]
        %v3012 = vld [vmem:[%s2 + $0x160] sm:$0xf]
        %v3013 = vld [vmem:[%s2 + $0x164] sm:$0xf]
        %v3014 = vld [vmem:[%s2 + $0x168] sm:$0xf]
        %v3015 = vld [vmem:[%s2 + $0x16c] sm:$0xf]
        %v3016 = vld [vmem:[%s2 + $0x170] sm:$0xf]
        %v3017 = vld [vmem:[%s2 + $0x174] sm:$0xf]
        %v3018 = vld [vmem:[%s2 + $0x178] sm:$0xf]
        %v3019 = vld [vmem:[%s2 + $0x17c] sm:$0xf]
        %v3020 = vld [vmem:[%s2 + $0x180] sm:$0xf]
        %v3021 = vld [vmem:[%s2 + $0x184] sm:$0xf]
        %v3022 = vld [vmem:[%s2 + $0x188] sm:$0xf]
        %v3023 = vld [vmem:[%s2 + $0x18c] sm:$0xf]
        %v3024 = vld [vmem:[%s2 + $0x190] sm:$0xf]
        %v3025 = vld [vmem:[%s2 + $0x194] sm:$0xf]
        %v3026 = vld [vmem:[%s2 + $0x198] sm:$0xf]
        %v3027 = vld [vmem:[%s2 + $0x19c] sm:$0xf]
        %v3028 = vld [vmem:[%s2 + $0x1a0] sm:$0xf]
        %v3029 = vld [vmem:[%s2 + $0x1a4] sm:$0xf]
        %v3030 = vld [vmem:[%s2 + $0x1a8] sm:$0xf]
        %v3031 = vld [vmem:[%s2 + $0x1ac] sm:$0xf]
        %v3032 = vld [vmem:[%s2 + $0x1b0] sm:$0xf]
        %v3033 = vld [vmem:[%s2 + $0x1b4] sm:$0xf]
        %v3034 = vld [vmem:[%s2 + $0x1b8] sm:$0xf]
        %v3035 = vld [vmem:[%s2 + $0x1bc] sm:$0xf]
        %v3036 = vld [vmem:[%s2 + $0x1c0] sm:$0xf]
        %v3037 = vld [vmem:[%s2 + $0x1c4] sm:$0xf]
        %v3038 = vld [vmem:[%s2 + $0x1c8] sm:$0xf]
        %v3039 = vld [vmem:[%s2 + $0x1cc] sm:$0xf]
        %v3040 = vld [vmem:[%s2 + $0x1d0] sm:$0xf]
        %v3041 = vld [vmem:[%s2 + $0x1d4] sm:$0xf]
        %v3042 = vld [vmem:[%s2 + $0x1d8] sm:$0xf]
        %v3043 = vld [vmem:[%s2 + $0x1dc] sm:$0xf]
        %v3044 = vld [vmem:[%s2 + $0x1e0] sm:$0xf]
        %v3045 = vld [vmem:[%s2 + $0x1e4] sm:$0xf]
        %v3046 = vld [vmem:[%s2 + $0x1e8] sm:$0xf]
        %v3047 = vld [vmem:[%s2 + $0x1ec] sm:$0xf]
        %v3048 = vld [vmem:[%s2 + $0x1f0] sm:$0xf]
        %v3049 = vld [vmem:[%s2 + $0x1f4] sm:$0xf]
        %v3050 = vld [vmem:[%s2 + $0x1f8] sm:$0xf]
        %v3051 = vld [vmem:[%s2 + $0x1fc] sm:$0xf]
        %v3052 = vld [vmem:[%s2 + $0x200] sm:$0xf]
        %v3053 = vld [vmem:[%s2 + $0x204] sm:$0xf]
        %v3054 = vld [vmem:[%s2 + $0x208] sm:$0xf]
        %v3055 = vld [vmem:[%s2 + $0x20c] sm:$0xf]
        %v3056 = vld [vmem:[%s2 + $0x210] sm:$0xf]
        %v3057 = vld [vmem:[%s2 + $0x214] sm:$0xf]
        %v3058 = vld [vmem:[%s2 + $0x218] sm:$0xf]
        %v3059 = vld [vmem:[%s2 + $0x21c] sm:$0xf]
        %v3060 = vld [vmem:[%s2 + $0x220] sm:$0xf]
        %v3061 = vld [vmem:[%s2 + $0x224] sm:$0xf]
        %v3062 = vld [vmem:[%s2 + $0x228] sm:$0xf]
        %v3063 = vld [vmem:[%s2 + $0x22c] sm:$0xf]
        %v3064 = vld [vmem:[%s2 + $0x230] sm:$0xf]
        %v3065 = vld [vmem:[%s2 + $0x234] sm:$0xf]
        %v3066 = vld [vmem:[%s2 + $0x238] sm:$0xf]
        %v3067 = vld [vmem:[%s2 + $0x23c] sm:$0xf]
        %v3212 = vunpack.c.l.b16 %v2924
        %v3213 = vunpack.c.l.b16 %v2925
        %v3214 = vunpack.c.l.b16 %v2926
        %v3215 = vunpack.c.l.b16 %v2927
        %v3216 = vunpack.c.l.b16 %v2928
        %v3217 = vunpack.c.l.b16 %v2929
        %v3218 = vunpack.c.l.b16 %v2930
        %v3219 = vunpack.c.l.b16 %v2931
        %v3220 = vunpack.c.l.b16 %v2932
        %v3221 = vunpack.c.l.b16 %v2933
        %v3222 = vunpack.c.l.b16 %v2934
        %v3223 = vunpack.c.l.b16 %v2935
        %v3224 = vunpack.c.l.b16 %v2936
        %v3225 = vunpack.c.l.b16 %v2937
        %v3226 = vunpack.c.l.b16 %v2938
        %v3227 = vunpack.c.l.b16 %v2939
        %v3228 = vunpack.c.l.b16 %v2940
        %v3229 = vunpack.c.l.b16 %v2941
        %v3230 = vunpack.c.l.b16 %v2942
        %v3231 = vunpack.c.l.b16 %v2943
        %v3232 = vunpack.c.l.b16 %v2944
        %v3233 = vunpack.c.l.b16 %v2945
        %v3234 = vunpack.c.l.b16 %v2946
        %v3235 = vunpack.c.l.b16 %v2947
        %v3236 = vunpack.c.l.b16 %v2948
        %v3237 = vunpack.c.l.b16 %v2949
        %v3238 = vunpack.c.l.b16 %v2950
        %v3239 = vunpack.c.l.b16 %v2951
        %v3240 = vunpack.c.l.b16 %v2952
        %v3241 = vunpack.c.l.b16 %v2953
        %v3242 = vunpack.c.l.b16 %v2954
        %v3243 = vunpack.c.l.b16 %v2955
        %v3244 = vunpack.c.l.b16 %v2956
        %v3245 = vunpack.c.l.b16 %v2957
        %v3246 = vunpack.c.l.b16 %v2958
        %v3247 = vunpack.c.l.b16 %v2959
        %v3248 = vunpack.c.l.b16 %v2960
        %v3249 = vunpack.c.l.b16 %v2961
        %v3250 = vunpack.c.l.b16 %v2962
        %v3251 = vunpack.c.l.b16 %v2963
        %v3252 = vunpack.c.l.b16 %v2964
        %v3253 = vunpack.c.l.b16 %v2965
        %v3254 = vunpack.c.l.b16 %v2966
        %v3255 = vunpack.c.l.b16 %v2967
        %v3256 = vunpack.c.l.b16 %v2968
        %v3257 = vunpack.c.l.b16 %v2969
        %v3258 = vunpack.c.l.b16 %v2970
        %v3259 = vunpack.c.l.b16 %v2971
        %v3260 = vunpack.c.l.b16 %v2972
        %v3261 = vunpack.c.l.b16 %v2973
        %v3262 = vunpack.c.l.b16 %v2974
        %v3263 = vunpack.c.l.b16 %v2975
        %v3264 = vunpack.c.l.b16 %v2976
        %v3265 = vunpack.c.l.b16 %v2977
        %v3266 = vunpack.c.l.b16 %v2978
        %v3267 = vunpack.c.l.b16 %v2979
        %v3268 = vunpack.c.l.b16 %v2980
        %v3269 = vunpack.c.l.b16 %v2981
        %v3270 = vunpack.c.l.b16 %v2982
        %v3271 = vunpack.c.l.b16 %v2983
        %v3272 = vunpack.c.l.b16 %v2984
        %v3273 = vunpack.c.l.b16 %v2985
        %v3274 = vunpack.c.l.b16 %v2986
        %v3275 = vunpack.c.l.b16 %v2987
        %v3276 = vunpack.c.l.b16 %v2988
        %v3277 = vunpack.c.l.b16 %v2989
        %v3278 = vunpack.c.l.b16 %v2990
        %v3279 = vunpack.c.l.b16 %v2991
        %v3280 = vunpack.c.l.b16 %v2992
        %v3281 = vunpack.c.l.b16 %v2993
        %v3282 = vunpack.c.l.b16 %v2994
        %v3283 = vunpack.c.l.b16 %v2995
        %v3284 = vunpack.c.l.b16 %v2996
        %v3285 = vunpack.c.l.b16 %v2997
        %v3286 = vunpack.c.l.b16 %v2998
        %v3287 = vunpack.c.l.b16 %v2999
        %v3288 = vunpack.c.l.b16 %v3000
        %v3289 = vunpack.c.l.b16 %v3001
        %v3290 = vunpack.c.l.b16 %v3002
        %v3291 = vunpack.c.l.b16 %v3003
        %v3292 = vunpack.c.l.b16 %v3004
        %v3293 = vunpack.c.l.b16 %v3005
        %v3294 = vunpack.c.l.b16 %v3006
        %v3295 = vunpack.c.l.b16 %v3007
        %v3296 = vunpack.c.l.b16 %v3008
        %v3297 = vunpack.c.l.b16 %v3009
        %v3298 = vunpack.c.l.b16 %v3010
        %v3299 = vunpack.c.l.b16 %v3011
        %v3300 = vunpack.c.l.b16 %v3012
        %v3301 = vunpack.c.l.b16 %v3013
        %v3302 = vunpack.c.l.b16 %v3014
        %v3303 = vunpack.c.l.b16 %v3015
        %v3304 = vunpack.c.l.b16 %v3016
        %v3305 = vunpack.c.l.b16 %v3017
        %v3306 = vunpack.c.l.b16 %v3018
        %v3307 = vunpack.c.l.b16 %v3019
        %v3308 = vunpack.c.l.b16 %v3020
        %v3309 = vunpack.c.l.b16 %v3021
        %v3310 = vunpack.c.l.b16 %v3022
        %v3311 = vunpack.c.l.b16 %v3023
        %v3312 = vunpack.c.l.b16 %v3024
        %v3313 = vunpack.c.l.b16 %v3025
        %v3314 = vunpack.c.l.b16 %v3026
        %v3315 = vunpack.c.l.b16 %v3027
        %v3316 = vunpack.c.l.b16 %v3028
        %v3317 = vunpack.c.l.b16 %v3029
        %v3318 = vunpack.c.l.b16 %v3030
        %v3319 = vunpack.c.l.b16 %v3031
        %v3320 = vunpack.c.l.b16 %v3032
        %v3321 = vunpack.c.l.b16 %v3033
        %v3322 = vunpack.c.l.b16 %v3034
        %v3323 = vunpack.c.l.b16 %v3035
        %v3324 = vunpack.c.l.b16 %v3036
        %v3325 = vunpack.c.l.b16 %v3037
        %v3326 = vunpack.c.l.b16 %v3038
        %v3327 = vunpack.c.l.b16 %v3039
        %v3328 = vunpack.c.l.b16 %v3040
        %v3329 = vunpack.c.l.b16 %v3041
        %v3330 = vunpack.c.l.b16 %v3042
        %v3331 = vunpack.c.l.b16 %v3043
        %v3332 = vunpack.c.l.b16 %v3044
        %v3333 = vunpack.c.l.b16 %v3045
        %v3334 = vunpack.c.l.b16 %v3046
        %v3335 = vunpack.c.l.b16 %v3047
        %v3336 = vunpack.c.l.b16 %v3048
        %v3337 = vunpack.c.l.b16 %v3049
        %v3338 = vunpack.c.l.b16 %v3050
        %v3339 = vunpack.c.l.b16 %v3051
        %v3340 = vunpack.c.l.b16 %v3052
        %v3341 = vunpack.c.l.b16 %v3053
        %v3342 = vunpack.c.l.b16 %v3054
        %v3343 = vunpack.c.l.b16 %v3055
        %v3344 = vunpack.c.l.b16 %v3056
        %v3345 = vunpack.c.l.b16 %v3057
        %v3346 = vunpack.c.l.b16 %v3058
        %v3347 = vunpack.c.l.b16 %v3059
        %v3348 = vunpack.c.l.b16 %v3060
        %v3349 = vunpack.c.l.b16 %v3061
        %v3350 = vunpack.c.l.b16 %v3062
        %v3351 = vunpack.c.l.b16 %v3063
        %v3352 = vunpack.c.l.b16 %v3064
        %v3353 = vunpack.c.l.b16 %v3065
        %v3354 = vunpack.c.l.b16 %v3066
        %v3355 = vunpack.c.l.b16 %v3067
        %v3356 = vpack.c.b16 %v3213, %v3212
        %v3357 = vpack.c.b16 %v3215, %v3214
        %v3358 = vpack.c.b16 %v3217, %v3216
        %v3359 = vpack.c.b16 %v3219, %v3218
        %v3360 = vpack.c.b16 %v3221, %v3220
        %v3361 = vpack.c.b16 %v3223, %v3222
        %v3362 = vpack.c.b16 %v3225, %v3224
        %v3363 = vpack.c.b16 %v3227, %v3226
        %v3364 = vpack.c.b16 %v3229, %v3228
        %v3365 = vpack.c.b16 %v3231, %v3230
        %v3366 = vpack.c.b16 %v3233, %v3232
        %v3367 = vpack.c.b16 %v3235, %v3234
        %v3368 = vpack.c.b16 %v3237, %v3236
        %v3369 = vpack.c.b16 %v3239, %v3238
        %v3370 = vpack.c.b16 %v3241, %v3240
        %v3371 = vpack.c.b16 %v3243, %v3242
        %v3372 = vpack.c.b16 %v3245, %v3244
        %v3373 = vpack.c.b16 %v3247, %v3246
        %v3374 = vpack.c.b16 %v3249, %v3248
        %v3375 = vpack.c.b16 %v3251, %v3250
        %v3376 = vpack.c.b16 %v3253, %v3252
        %v3377 = vpack.c.b16 %v3255, %v3254
        %v3378 = vpack.c.b16 %v3257, %v3256
        %v3379 = vpack.c.b16 %v3259, %v3258
        %v3380 = vpack.c.b16 %v3261, %v3260
        %v3381 = vpack.c.b16 %v3263, %v3262
        %v3382 = vpack.c.b16 %v3265, %v3264
        %v3383 = vpack.c.b16 %v3267, %v3266
        %v3384 = vpack.c.b16 %v3269, %v3268
        %v3385 = vpack.c.b16 %v3271, %v3270
        %v3386 = vpack.c.b16 %v3273, %v3272
        %v3387 = vpack.c.b16 %v3275, %v3274
        %v3388 = vpack.c.b16 %v3277, %v3276
        %v3389 = vpack.c.b16 %v3279, %v3278
        %v3390 = vpack.c.b16 %v3281, %v3280
        %v3391 = vpack.c.b16 %v3283, %v3282
        %v3392 = vpack.c.b16 %v3285, %v3284
        %v3393 = vpack.c.b16 %v3287, %v3286
        %v3394 = vpack.c.b16 %v3289, %v3288
        %v3395 = vpack.c.b16 %v3291, %v3290
        %v3396 = vpack.c.b16 %v3293, %v3292
        %v3397 = vpack.c.b16 %v3295, %v3294
        %v3398 = vpack.c.b16 %v3297, %v3296
        %v3399 = vpack.c.b16 %v3299, %v3298
        %v3400 = vpack.c.b16 %v3301, %v3300
        %v3401 = vpack.c.b16 %v3303, %v3302
        %v3402 = vpack.c.b16 %v3305, %v3304
        %v3403 = vpack.c.b16 %v3307, %v3306
        %v3404 = vpack.c.b16 %v3309, %v3308
        %v3405 = vpack.c.b16 %v3311, %v3310
        %v3406 = vpack.c.b16 %v3313, %v3312
        %v3407 = vpack.c.b16 %v3315, %v3314
        %v3408 = vpack.c.b16 %v3317, %v3316
        %v3409 = vpack.c.b16 %v3319, %v3318
        %v3410 = vpack.c.b16 %v3321, %v3320
        %v3411 = vpack.c.b16 %v3323, %v3322
        %v3412 = vpack.c.b16 %v3325, %v3324
        %v3413 = vpack.c.b16 %v3327, %v3326
        %v3414 = vpack.c.b16 %v3329, %v3328
        %v3415 = vpack.c.b16 %v3331, %v3330
        %v3416 = vpack.c.b16 %v3333, %v3332
        %v3417 = vpack.c.b16 %v3335, %v3334
        %v3418 = vpack.c.b16 %v3337, %v3336
        %v3419 = vpack.c.b16 %v3339, %v3338
        %v3420 = vpack.c.b16 %v3341, %v3340
        %v3421 = vpack.c.b16 %v3343, %v3342
        %v3422 = vpack.c.b16 %v3345, %v3344
        %v3423 = vpack.c.b16 %v3347, %v3346
        %v3424 = vpack.c.b16 %v3349, %v3348
        %v3425 = vpack.c.b16 %v3351, %v3350
        %v3426 = vpack.c.b16 %v3353, %v3352
        %v3427 = vpack.c.b16 %v3355, %v3354
        %3500 = vmatprep.subr.bf16.mxu0 0
        %3501 = vmatpush1.bf16.msra.mxu0 %v3363
        %3502 = vmatprep.subr.bf16.mxu0 0
        %3503 = vmatpush1.bf16.msra.mxu0 %v3362
        %3504 = vmatprep.subr.bf16.mxu0 0
        %3505 = vmatpush1.bf16.msra.mxu0 %v3361
        %3506 = vmatprep.subr.bf16.mxu0 0
        %3507 = vmatpush1.bf16.msra.mxu0 %v3360
        %3508 = vmatprep.subr.bf16.mxu0 0
        %3509 = vmatpush1.bf16.msra.mxu0 %v3359
        %3510 = vmatprep.subr.bf16.mxu0 0
        %3511 = vmatpush1.bf16.msra.mxu0 %v3358
        %3512 = vmatprep.subr.bf16.mxu0 0
        %3513 = vmatpush1.bf16.msra.mxu0 %v3357
        %3514 = vmatprep.subr.bf16.mxu0 0
        %3515 = vmatpush1.bf16.msra.mxu0 %v3356
        %3516 = vmatprep.subr.bf16.mxu0 0
        %3517 = vmatpush2.bf16.msra.mxu0 %v3371
        %3518 = vmatprep.subr.bf16.mxu0 0
        %3519 = vmatpush2.bf16.msra.mxu0 %v3370
        %3520 = vmatprep.subr.bf16.mxu0 0
        %3521 = vmatpush2.bf16.msra.mxu0 %v3369
        %3522 = vmatprep.subr.bf16.mxu0 0
        %3523 = vmatpush2.bf16.msra.mxu0 %v3368
        %3524 = vmatprep.subr.bf16.mxu0 0
        %3525 = vmatpush2.bf16.msra.mxu0 %v3367
        %3526 = vmatprep.subr.bf16.mxu0 0
        %3527 = vmatpush2.bf16.msra.mxu0 %v3366
        %3528 = vmatprep.subr.bf16.mxu0 0
        %3529 = vmatpush2.bf16.msra.mxu0 %v3365
        %3530 = vmatprep.subr.bf16.mxu0 0
        %3531 = vmatpush2.bf16.msra.mxu0 %v3364
        %3532 = vmatprep.mubr.bf16.mxu0 %v2571
        %3533 = vmatmul.mubr.bf16.gmra.mxu0 %v2523
        %v3534 = vpop.f32.mrf.mxu0
        %v3535 = vadd.f32 0.0, %v3534
        %v3536 = vpop.f32.mrf.mxu0
        %v3537 = vpop.f32.mrf.mxu0
        %v3538 = vadd.f32 0.0, %v3537
        %v3539 = vpop.f32.mrf.mxu0
        %3540 = vmatprep.mubr.bf16.mxu0 %v2572
        %3541 = vmatmul.mubr.bf16.gmra.mxu0 %v2524
        %v3542 = vpop.f32.mrf.mxu0
        %v3543 = vadd.f32 0.0, %v3542
        %v3544 = vpop.f32.mrf.mxu0
        %v3545 = vpop.f32.mrf.mxu0
        %v3546 = vadd.f32 0.0, %v3545
        %v3547 = vpop.f32.mrf.mxu0
        %3548 = vmatprep.mubr.bf16.mxu0 %v2573
        %3549 = vmatmul.mubr.bf16.gmra.mxu0 %v2525
        %v3550 = vpop.f32.mrf.mxu0
        %v3551 = vadd.f32 0.0, %v3550
        %v3552 = vpop.f32.mrf.mxu0
        %v3553 = vpop.f32.mrf.mxu0
        %v3554 = vadd.f32 0.0, %v3553
        %v3555 = vpop.f32.mrf.mxu0
        %3556 = vmatprep.mubr.bf16.mxu0 %v2574
        %3557 = vmatmul.mubr.bf16.gmra.mxu0 %v2526
        %v3558 = vpop.f32.mrf.mxu0
        %v3559 = vadd.f32 0.0, %v3558
        %v3560 = vpop.f32.mrf.mxu0
        %v3561 = vpop.f32.mrf.mxu0
        %v3562 = vadd.f32 0.0, %v3561
        %v3563 = vpop.f32.mrf.mxu0
        %3564 = vmatprep.mubr.bf16.mxu0 %v2575
        %3565 = vmatmul.mubr.bf16.gmra.mxu0 %v2527
        %v3566 = vpop.f32.mrf.mxu0
        %v3567 = vadd.f32 0.0, %v3566
        %v3568 = vpop.f32.mrf.mxu0
        %v3569 = vpop.f32.mrf.mxu0
        %v3570 = vadd.f32 0.0, %v3569
        %v3571 = vpop.f32.mrf.mxu0
        %3572 = vmatprep.mubr.bf16.mxu0 %v2576
        %3573 = vmatmul.mubr.bf16.gmra.mxu0 %v2528
        %v3574 = vpop.f32.mrf.mxu0
        %v3575 = vadd.f32 0.0, %v3574
        %v3576 = vpop.f32.mrf.mxu0
        %v3577 = vpop.f32.mrf.mxu0
        %v3578 = vadd.f32 0.0, %v3577
        %v3579 = vpop.f32.mrf.mxu0
        %3580 = vmatprep.mubr.bf16.mxu0 %v2577
        %3581 = vmatmul.mubr.bf16.gmra.mxu0 %v2529
        %v3582 = vpop.f32.mrf.mxu0
        %v3583 = vadd.f32 0.0, %v3582
        %v3584 = vpop.f32.mrf.mxu0
        %v3585 = vpop.f32.mrf.mxu0
        %v3586 = vadd.f32 0.0, %v3585
        %v3587 = vpop.f32.mrf.mxu0
        %3588 = vmatprep.mubr.bf16.mxu0 %v2578
        %3589 = vmatmul.mubr.bf16.gmra.mxu0 %v2530
        %v3590 = vpop.f32.mrf.mxu0
        %v3591 = vadd.f32 0.0, %v3590
        %v3592 = vpop.f32.mrf.mxu0
        %v3593 = vpop.f32.mrf.mxu0
        %v3594 = vadd.f32 0.0, %v3593
        %v3595 = vpop.f32.mrf.mxu0
        %3596 = vmatprep.mubr.bf16.mxu0 %v2579
        %3597 = vmatmul.mubr.bf16.gmra.mxu0 %v2531
        %v3598 = vpop.f32.mrf.mxu0
        %v3599 = vadd.f32 0.0, %v3598
        %v3600 = vpop.f32.mrf.mxu0
        %v3601 = vpop.f32.mrf.mxu0
        %v3602 = vadd.f32 0.0, %v3601
        %v3603 = vpop.f32.mrf.mxu0
        %3604 = vmatprep.mubr.bf16.mxu0 %v2580
        %3605 = vmatmul.mubr.bf16.gmra.mxu0 %v2532
        %v3606 = vpop.f32.mrf.mxu0
        %v3607 = vadd.f32 0.0, %v3606
        %v3608 = vpop.f32.mrf.mxu0
        %v3609 = vpop.f32.mrf.mxu0
        %v3610 = vadd.f32 0.0, %v3609
        %v3611 = vpop.f32.mrf.mxu0
        %3612 = vmatprep.mubr.bf16.mxu0 %v2581
        %3613 = vmatmul.mubr.bf16.gmra.mxu0 %v2533
        %v3614 = vpop.f32.mrf.mxu0
        %v3615 = vadd.f32 0.0, %v3614
        %v3616 = vpop.f32.mrf.mxu0
        %v3617 = vpop.f32.mrf.mxu0
        %v3618 = vadd.f32 0.0, %v3617
        %v3619 = vpop.f32.mrf.mxu0
        %3620 = vmatprep.mubr.bf16.mxu0 %v2582
        %3621 = vmatmul.mubr.bf16.gmra.mxu0 %v2534
        %v3622 = vpop.f32.mrf.mxu0
        %v3623 = vadd.f32 0.0, %v3622
        %v3624 = vpop.f32.mrf.mxu0
        %v3625 = vpop.f32.mrf.mxu0
        %v3626 = vadd.f32 0.0, %v3625
        %v3627 = vpop.f32.mrf.mxu0
        %3628 = vmatprep.mubr.bf16.mxu0 %v2583
        %3629 = vmatmul.mubr.bf16.gmra.mxu0 %v2535
        %v3630 = vpop.f32.mrf.mxu0
        %v3631 = vadd.f32 0.0, %v3630
        %v3632 = vpop.f32.mrf.mxu0
        %v3633 = vpop.f32.mrf.mxu0
        %v3634 = vadd.f32 0.0, %v3633
        %v3635 = vpop.f32.mrf.mxu0
        %3636 = vmatprep.mubr.bf16.mxu0 %v2584
        %3637 = vmatmul.mubr.bf16.gmra.mxu0 %v2536
        %v3638 = vpop.f32.mrf.mxu0
        %v3639 = vadd.f32 0.0, %v3638
        %v3640 = vpop.f32.mrf.mxu0
        %v3641 = vpop.f32.mrf.mxu0
        %v3642 = vadd.f32 0.0, %v3641
        %v3643 = vpop.f32.mrf.mxu0
        %3644 = vmatprep.mubr.bf16.mxu0 %v2585
        %3645 = vmatmul.mubr.bf16.gmra.mxu0 %v2537
        %v3646 = vpop.f32.mrf.mxu0
        %v3647 = vadd.f32 0.0, %v3646
        %v3648 = vpop.f32.mrf.mxu0
        %v3649 = vpop.f32.mrf.mxu0
        %v3650 = vadd.f32 0.0, %v3649
        %v3651 = vpop.f32.mrf.mxu0
        %3652 = vmatprep.mubr.bf16.mxu0 %v2586
        %3653 = vmatmul.mubr.bf16.gmra.mxu0 %v2538
        %v3654 = vpop.f32.mrf.mxu0
        %v3655 = vadd.f32 0.0, %v3654
        %v3656 = vpop.f32.mrf.mxu0
        %v3657 = vpop.f32.mrf.mxu0
        %v3658 = vadd.f32 0.0, %v3657
        %v3659 = vpop.f32.mrf.mxu0
        %3660 = vdwg.mxu0
        %3661 = vmatprep.subr.bf16.mxu0 0
        %3662 = vmatpush1.bf16.msra.mxu0 %v3379
        %3663 = vmatprep.subr.bf16.mxu0 0
        %3664 = vmatpush1.bf16.msra.mxu0 %v3378
        %3665 = vmatprep.subr.bf16.mxu0 0
        %3666 = vmatpush1.bf16.msra.mxu0 %v3377
        %3667 = vmatprep.subr.bf16.mxu0 0
        %3668 = vmatpush1.bf16.msra.mxu0 %v3376
        %3669 = vmatprep.subr.bf16.mxu0 0
        %3670 = vmatpush1.bf16.msra.mxu0 %v3375
        %3671 = vmatprep.subr.bf16.mxu0 0
        %3672 = vmatpush1.bf16.msra.mxu0 %v3374
        %3673 = vmatprep.subr.bf16.mxu0 0
        %3674 = vmatpush1.bf16.msra.mxu0 %v3373
        %3675 = vmatprep.subr.bf16.mxu0 0
        %3676 = vmatpush1.bf16.msra.mxu0 %v3372
        %3677 = vmatprep.subr.bf16.mxu0 0
        %3678 = vmatpush2.bf16.msra.mxu0 %v3387
        %3679 = vmatprep.subr.bf16.mxu0 0
        %3680 = vmatpush2.bf16.msra.mxu0 %v3386
        %3681 = vmatprep.subr.bf16.mxu0 0
        %3682 = vmatpush2.bf16.msra.mxu0 %v3385
        %3683 = vmatprep.subr.bf16.mxu0 0
        %3684 = vmatpush2.bf16.msra.mxu0 %v3384
        %3685 = vmatprep.subr.bf16.mxu0 0
        %3686 = vmatpush2.bf16.msra.mxu0 %v3383
        %3687 = vmatprep.subr.bf16.mxu0 0
        %3688 = vmatpush2.bf16.msra.mxu0 %v3382
        %3689 = vmatprep.subr.bf16.mxu0 0
        %3690 = vmatpush2.bf16.msra.mxu0 %v3381
        %3691 = vmatprep.subr.bf16.mxu0 0
        %3692 = vmatpush2.bf16.msra.mxu0 %v3380
        %3693 = vmatprep.mubr.bf16.mxu0 %v2667
        %3694 = vmatmul.mubr.bf16.gmra.mxu0 %v2619
        %v3695 = vpop.f32.mrf.mxu0
        %v3696 = vadd.f32 %v3535, %v3695
        %v3697 = vpop.f32.mrf.mxu0
        %v3698 = vpop.f32.mrf.mxu0
        %v3699 = vadd.f32 %v3538, %v3698
        %v3700 = vpop.f32.mrf.mxu0
        %3701 = vmatprep.mubr.bf16.mxu0 %v2668
        %3702 = vmatmul.mubr.bf16.gmra.mxu0 %v2620
        %v3703 = vpop.f32.mrf.mxu0
        %v3704 = vadd.f32 %v3543, %v3703
        %v3705 = vpop.f32.mrf.mxu0
        %v3706 = vpop.f32.mrf.mxu0
        %v3707 = vadd.f32 %v3546, %v3706
        %v3708 = vpop.f32.mrf.mxu0
        %3709 = vmatprep.mubr.bf16.mxu0 %v2669
        %3710 = vmatmul.mubr.bf16.gmra.mxu0 %v2621
        %v3711 = vpop.f32.mrf.mxu0
        %v3712 = vadd.f32 %v3551, %v3711
        %v3713 = vpop.f32.mrf.mxu0
        %v3714 = vpop.f32.mrf.mxu0
        %v3715 = vadd.f32 %v3554, %v3714
        %v3716 = vpop.f32.mrf.mxu0
        %3717 = vmatprep.mubr.bf16.mxu0 %v2670
        %3718 = vmatmul.mubr.bf16.gmra.mxu0 %v2622
        %v3719 = vpop.f32.mrf.mxu0
        %v3720 = vadd.f32 %v3559, %v3719
        %v3721 = vpop.f32.mrf.mxu0
        %v3722 = vpop.f32.mrf.mxu0
        %v3723 = vadd.f32 %v3562, %v3722
        %v3724 = vpop.f32.mrf.mxu0
        %3725 = vmatprep.mubr.bf16.mxu0 %v2671
        %3726 = vmatmul.mubr.bf16.gmra.mxu0 %v2623
        %v3727 = vpop.f32.mrf.mxu0
        %v3728 = vadd.f32 %v3567, %v3727
        %v3729 = vpop.f32.mrf.mxu0
        %v3730 = vpop.f32.mrf.mxu0
        %v3731 = vadd.f32 %v3570, %v3730
        %v3732 = vpop.f32.mrf.mxu0
        %3733 = vmatprep.mubr.bf16.mxu0 %v2672
        %3734 = vmatmul.mubr.bf16.gmra.mxu0 %v2624
        %v3735 = vpop.f32.mrf.mxu0
        %v3736 = vadd.f32 %v3575, %v3735
        %v3737 = vpop.f32.mrf.mxu0
        %v3738 = vpop.f32.mrf.mxu0
        %v3739 = vadd.f32 %v3578, %v3738
        %v3740 = vpop.f32.mrf.mxu0
        %3741 = vmatprep.mubr.bf16.mxu0 %v2673
        %3742 = vmatmul.mubr.bf16.gmra.mxu0 %v2625
        %v3743 = vpop.f32.mrf.mxu0
        %v3744 = vadd.f32 %v3583, %v3743
        %v3745 = vpop.f32.mrf.mxu0
        %v3746 = vpop.f32.mrf.mxu0
        %v3747 = vadd.f32 %v3586, %v3746
        %v3748 = vpop.f32.mrf.mxu0
        %3749 = vmatprep.mubr.bf16.mxu0 %v2674
        %3750 = vmatmul.mubr.bf16.gmra.mxu0 %v2626
        %v3751 = vpop.f32.mrf.mxu0
        %v3752 = vadd.f32 %v3591, %v3751
        %v3753 = vpop.f32.mrf.mxu0
        %v3754 = vpop.f32.mrf.mxu0
        %v3755 = vadd.f32 %v3594, %v3754
        %v3756 = vpop.f32.mrf.mxu0
        %3757 = vmatprep.mubr.bf16.mxu0 %v2675
        %3758 = vmatmul.mubr.bf16.gmra.mxu0 %v2627
        %v3759 = vpop.f32.mrf.mxu0
        %v3760 = vadd.f32 %v3599, %v3759
        %v3761 = vpop.f32.mrf.mxu0
        %v3762 = vpop.f32.mrf.mxu0
        %v3763 = vadd.f32 %v3602, %v3762
        %v3764 = vpop.f32.mrf.mxu0
        %3765 = vmatprep.mubr.bf16.mxu0 %v2676
        %3766 = vmatmul.mubr.bf16.gmra.mxu0 %v2628
        %v3767 = vpop.f32.mrf.mxu0
        %v3768 = vadd.f32 %v3607, %v3767
        %v3769 = vpop.f32.mrf.mxu0
        %v3770 = vpop.f32.mrf.mxu0
        %v3771 = vadd.f32 %v3610, %v3770
        %v3772 = vpop.f32.mrf.mxu0
        %3773 = vmatprep.mubr.bf16.mxu0 %v2677
        %3774 = vmatmul.mubr.bf16.gmra.mxu0 %v2629
        %v3775 = vpop.f32.mrf.mxu0
        %v3776 = vadd.f32 %v3615, %v3775
        %v3777 = vpop.f32.mrf.mxu0
        %v3778 = vpop.f32.mrf.mxu0
        %v3779 = vadd.f32 %v3618, %v3778
        %v3780 = vpop.f32.mrf.mxu0
        %3781 = vmatprep.mubr.bf16.mxu0 %v2678
        %3782 = vmatmul.mubr.bf16.gmra.mxu0 %v2630
        %v3783 = vpop.f32.mrf.mxu0
        %v3784 = vadd.f32 %v3623, %v3783
        %v3785 = vpop.f32.mrf.mxu0
        %v3786 = vpop.f32.mrf.mxu0
        %v3787 = vadd.f32 %v3626, %v3786
        %v3788 = vpop.f32.mrf.mxu0
        %3789 = vmatprep.mubr.bf16.mxu0 %v2679
        %3790 = vmatmul.mubr.bf16.gmra.mxu0 %v2631
        %v3791 = vpop.f32.mrf.mxu0
        %v3792 = vadd.f32 %v3631, %v3791
        %v3793 = vpop.f32.mrf.mxu0
        %v3794 = vpop.f32.mrf.mxu0
        %v3795 = vadd.f32 %v3634, %v3794
        %v3796 = vpop.f32.mrf.mxu0
        %3797 = vmatprep.mubr.bf16.mxu0 %v2680
        %3798 = vmatmul.mubr.bf16.gmra.mxu0 %v2632
        %v3799 = vpop.f32.mrf.mxu0
        %v3800 = vadd.f32 %v3639, %v3799
        %v3801 = vpop.f32.mrf.mxu0
        %v3802 = vpop.f32.mrf.mxu0
        %v3803 = vadd.f32 %v3642, %v3802
        %v3804 = vpop.f32.mrf.mxu0
        %3805 = vmatprep.mubr.bf16.mxu0 %v2681
        %3806 = vmatmul.mubr.bf16.gmra.mxu0 %v2633
        %v3807 = vpop.f32.mrf.mxu0
        %v3808 = vadd.f32 %v3647, %v3807
        %v3809 = vpop.f32.mrf.mxu0
        %v3810 = vpop.f32.mrf.mxu0
        %v3811 = vadd.f32 %v3650, %v3810
        %v3812 = vpop.f32.mrf.mxu0
        %3813 = vmatprep.mubr.bf16.mxu0 %v2682
        %3814 = vmatmul.mubr.bf16.gmra.mxu0 %v2634
        %v3815 = vpop.f32.mrf.mxu0
        %v3816 = vadd.f32 %v3655, %v3815
        %v3817 = vpop.f32.mrf.mxu0
        %v3818 = vpop.f32.mrf.mxu0
        %v3819 = vadd.f32 %v3658, %v3818
        %v3820 = vpop.f32.mrf.mxu0
        %3821 = vdwg.mxu0
        %3822 = vmatprep.subr.bf16.mxu0 0
        %3823 = vmatpush1.bf16.msra.mxu0 %v3395
        %3824 = vmatprep.subr.bf16.mxu0 0
        %3825 = vmatpush1.bf16.msra.mxu0 %v3394
        %3826 = vmatprep.subr.bf16.mxu0 0
        %3827 = vmatpush1.bf16.msra.mxu0 %v3393
        %3828 = vmatprep.subr.bf16.mxu0 0
        %3829 = vmatpush1.bf16.msra.mxu0 %v3392
        %3830 = vmatprep.subr.bf16.mxu0 0
        %3831 = vmatpush1.bf16.msra.mxu0 %v3391
        %3832 = vmatprep.subr.bf16.mxu0 0
        %3833 = vmatpush1.bf16.msra.mxu0 %v3390
        %3834 = vmatprep.subr.bf16.mxu0 0
        %3835 = vmatpush1.bf16.msra.mxu0 %v3389
        %3836 = vmatprep.subr.bf16.mxu0 0
        %3837 = vmatpush1.bf16.msra.mxu0 %v3388
        %3838 = vmatprep.subr.bf16.mxu0 0
        %3839 = vmatpush2.bf16.msra.mxu0 %v3403
        %3840 = vmatprep.subr.bf16.mxu0 0
        %3841 = vmatpush2.bf16.msra.mxu0 %v3402
        %3842 = vmatprep.subr.bf16.mxu0 0
        %3843 = vmatpush2.bf16.msra.mxu0 %v3401
        %3844 = vmatprep.subr.bf16.mxu0 0
        %3845 = vmatpush2.bf16.msra.mxu0 %v3400
        %3846 = vmatprep.subr.bf16.mxu0 0
        %3847 = vmatpush2.bf16.msra.mxu0 %v3399
        %3848 = vmatprep.subr.bf16.mxu0 0
        %3849 = vmatpush2.bf16.msra.mxu0 %v3398
        %3850 = vmatprep.subr.bf16.mxu0 0
        %3851 = vmatpush2.bf16.msra.mxu0 %v3397
        %3852 = vmatprep.subr.bf16.mxu0 0
        %3853 = vmatpush2.bf16.msra.mxu0 %v3396
        %3854 = vmatprep.mubr.bf16.mxu0 %v2763
        %3855 = vmatmul.mubr.bf16.gmra.mxu0 %v2715
        %v3856 = vpop.f32.mrf.mxu0
        %v3857 = vadd.f32 %v3696, %v3856
        %v3858 = vpop.f32.mrf.mxu0
        %v3859 = vpop.f32.mrf.mxu0
        %v3860 = vadd.f32 %v3699, %v3859
        %v3861 = vpop.f32.mrf.mxu0
        %3862 = vmatprep.mubr.bf16.mxu0 %v2764
        %3863 = vmatmul.mubr.bf16.gmra.mxu0 %v2716
        %v3864 = vpop.f32.mrf.mxu0
        %v3865 = vadd.f32 %v3704, %v3864
        %v3866 = vpop.f32.mrf.mxu0
        %v3867 = vpop.f32.mrf.mxu0
        %v3868 = vadd.f32 %v3707, %v3867
        %v3869 = vpop.f32.mrf.mxu0
        %3870 = vmatprep.mubr.bf16.mxu0 %v2765
        %3871 = vmatmul.mubr.bf16.gmra.mxu0 %v2717
        %v3872 = vpop.f32.mrf.mxu0
        %v3873 = vadd.f32 %v3712, %v3872
        %v3874 = vpop.f32.mrf.mxu0
        %v3875 = vpop.f32.mrf.mxu0
        %v3876 = vadd.f32 %v3715, %v3875
        %v3877 = vpop.f32.mrf.mxu0
        %3878 = vmatprep.mubr.bf16.mxu0 %v2766
        %3879 = vmatmul.mubr.bf16.gmra.mxu0 %v2718
        %v3880 = vpop.f32.mrf.mxu0
        %v3881 = vadd.f32 %v3720, %v3880
        %v3882 = vpop.f32.mrf.mxu0
        %v3883 = vpop.f32.mrf.mxu0
        %v3884 = vadd.f32 %v3723, %v3883
        %v3885 = vpop.f32.mrf.mxu0
        %3886 = vmatprep.mubr.bf16.mxu0 %v2767
        %3887 = vmatmul.mubr.bf16.gmra.mxu0 %v2719
        %v3888 = vpop.f32.mrf.mxu0
        %v3889 = vadd.f32 %v3728, %v3888
        %v3890 = vpop.f32.mrf.mxu0
        %v3891 = vpop.f32.mrf.mxu0
        %v3892 = vadd.f32 %v3731, %v3891
        %v3893 = vpop.f32.mrf.mxu0
        %3894 = vmatprep.mubr.bf16.mxu0 %v2768
        %3895 = vmatmul.mubr.bf16.gmra.mxu0 %v2720
        %v3896 = vpop.f32.mrf.mxu0
        %v3897 = vadd.f32 %v3736, %v3896
        %v3898 = vpop.f32.mrf.mxu0
        %v3899 = vpop.f32.mrf.mxu0
        %v3900 = vadd.f32 %v3739, %v3899
        %v3901 = vpop.f32.mrf.mxu0
        %3902 = vmatprep.mubr.bf16.mxu0 %v2769
        %3903 = vmatmul.mubr.bf16.gmra.mxu0 %v2721
        %v3904 = vpop.f32.mrf.mxu0
        %v3905 = vadd.f32 %v3744, %v3904
        %v3906 = vpop.f32.mrf.mxu0
        %v3907 = vpop.f32.mrf.mxu0
        %v3908 = vadd.f32 %v3747, %v3907
        %v3909 = vpop.f32.mrf.mxu0
        %3910 = vmatprep.mubr.bf16.mxu0 %v2770
        %3911 = vmatmul.mubr.bf16.gmra.mxu0 %v2722
        %v3912 = vpop.f32.mrf.mxu0
        %v3913 = vadd.f32 %v3752, %v3912
        %v3914 = vpop.f32.mrf.mxu0
        %v3915 = vpop.f32.mrf.mxu0
        %v3916 = vadd.f32 %v3755, %v3915
        %v3917 = vpop.f32.mrf.mxu0
        %3918 = vmatprep.mubr.bf16.mxu0 %v2771
        %3919 = vmatmul.mubr.bf16.gmra.mxu0 %v2723
        %v3920 = vpop.f32.mrf.mxu0
        %v3921 = vadd.f32 %v3760, %v3920
        %v3922 = vpop.f32.mrf.mxu0
        %v3923 = vpop.f32.mrf.mxu0
        %v3924 = vadd.f32 %v3763, %v3923
        %v3925 = vpop.f32.mrf.mxu0
        %3926 = vmatprep.mubr.bf16.mxu0 %v2772
        %3927 = vmatmul.mubr.bf16.gmra.mxu0 %v2724
        %v3928 = vpop.f32.mrf.mxu0
        %v3929 = vadd.f32 %v3768, %v3928
        %v3930 = vpop.f32.mrf.mxu0
        %v3931 = vpop.f32.mrf.mxu0
        %v3932 = vadd.f32 %v3771, %v3931
        %v3933 = vpop.f32.mrf.mxu0
        %3934 = vmatprep.mubr.bf16.mxu0 %v2773
        %3935 = vmatmul.mubr.bf16.gmra.mxu0 %v2725
        %v3936 = vpop.f32.mrf.mxu0
        %v3937 = vadd.f32 %v3776, %v3936
        %v3938 = vpop.f32.mrf.mxu0
        %v3939 = vpop.f32.mrf.mxu0
        %v3940 = vadd.f32 %v3779, %v3939
        %v3941 = vpop.f32.mrf.mxu0
        %3942 = vmatprep.mubr.bf16.mxu0 %v2774
        %3943 = vmatmul.mubr.bf16.gmra.mxu0 %v2726
        %v3944 = vpop.f32.mrf.mxu0
        %v3945 = vadd.f32 %v3784, %v3944
        %v3946 = vpop.f32.mrf.mxu0
        %v3947 = vpop.f32.mrf.mxu0
        %v3948 = vadd.f32 %v3787, %v3947
        %v3949 = vpop.f32.mrf.mxu0
        %3950 = vmatprep.mubr.bf16.mxu0 %v2775
        %3951 = vmatmul.mubr.bf16.gmra.mxu0 %v2727
        %v3952 = vpop.f32.mrf.mxu0
        %v3953 = vadd.f32 %v3792, %v3952
        %v3954 = vpop.f32.mrf.mxu0
        %v3955 = vpop.f32.mrf.mxu0
        %v3956 = vadd.f32 %v3795, %v3955
        %v3957 = vpop.f32.mrf.mxu0
        %3958 = vmatprep.mubr.bf16.mxu0 %v2776
        %3959 = vmatmul.mubr.bf16.gmra.mxu0 %v2728
        %v3960 = vpop.f32.mrf.mxu0
        %v3961 = vadd.f32 %v3800, %v3960
        %v3962 = vpop.f32.mrf.mxu0
        %v3963 = vpop.f32.mrf.mxu0
        %v3964 = vadd.f32 %v3803, %v3963
        %v3965 = vpop.f32.mrf.mxu0
        %3966 = vmatprep.mubr.bf16.mxu0 %v2777
        %3967 = vmatmul.mubr.bf16.gmra.mxu0 %v2729
        %v3968 = vpop.f32.mrf.mxu0
        %v3969 = vadd.f32 %v3808, %v3968
        %v3970 = vpop.f32.mrf.mxu0
        %v3971 = vpop.f32.mrf.mxu0
        %v3972 = vadd.f32 %v3811, %v3971
        %v3973 = vpop.f32.mrf.mxu0
        %3974 = vmatprep.mubr.bf16.mxu0 %v2778
        %3975 = vmatmul.mubr.bf16.gmra.mxu0 %v2730
        %v3976 = vpop.f32.mrf.mxu0
        %v3977 = vadd.f32 %v3816, %v3976
        %v3978 = vpop.f32.mrf.mxu0
        %v3979 = vpop.f32.mrf.mxu0
        %v3980 = vadd.f32 %v3819, %v3979
        %v3981 = vpop.f32.mrf.mxu0
        %3982 = vdwg.mxu0
        %3983 = vmatprep.subr.bf16.mxu0 0
        %3984 = vmatpush1.bf16.msra.mxu0 %v3411
        %3985 = vmatprep.subr.bf16.mxu0 0
        %3986 = vmatpush1.bf16.msra.mxu0 %v3410
        %3987 = vmatprep.subr.bf16.mxu0 0
        %3988 = vmatpush1.bf16.msra.mxu0 %v3409
        %3989 = vmatprep.subr.bf16.mxu0 0
        %3990 = vmatpush1.bf16.msra.mxu0 %v3408
        %3991 = vmatprep.subr.bf16.mxu0 0
        %3992 = vmatpush1.bf16.msra.mxu0 %v3407
        %3993 = vmatprep.subr.bf16.mxu0 0
        %3994 = vmatpush1.bf16.msra.mxu0 %v3406
        %3995 = vmatprep.subr.bf16.mxu0 0
        %3996 = vmatpush1.bf16.msra.mxu0 %v3405
        %3997 = vmatprep.subr.bf16.mxu0 0
        %3998 = vmatpush1.bf16.msra.mxu0 %v3404
        %3999 = vmatprep.subr.bf16.mxu0 0
        %4000 = vmatpush2.bf16.msra.mxu0 %v3419
        %4001 = vmatprep.subr.bf16.mxu0 0
        %4002 = vmatpush2.bf16.msra.mxu0 %v3418
        %4003 = vmatprep.subr.bf16.mxu0 0
        %4004 = vmatpush2.bf16.msra.mxu0 %v3417
        %4005 = vmatprep.subr.bf16.mxu0 0
        %4006 = vmatpush2.bf16.msra.mxu0 %v3416
        %4007 = vmatprep.subr.bf16.mxu0 0
        %4008 = vmatpush2.bf16.msra.mxu0 %v3415
        %4009 = vmatprep.subr.bf16.mxu0 0
        %4010 = vmatpush2.bf16.msra.mxu0 %v3414
        %4011 = vmatprep.subr.bf16.mxu0 0
        %4012 = vmatpush2.bf16.msra.mxu0 %v3413
        %4013 = vmatprep.subr.bf16.mxu0 0
        %4014 = vmatpush2.bf16.msra.mxu0 %v3412
        %4015 = vmatprep.mubr.bf16.mxu0 %v2860
        %4016 = vmatmul.mubr.bf16.gmra.mxu0 %v2812
        %v4017 = vpop.f32.mrf.mxu0
        %v4018 = vadd.f32 %v3857, %v4017
        %v4019 = vpop.f32.mrf.mxu0
        %v4020 = vpop.f32.mrf.mxu0
        %v4021 = vadd.f32 %v3860, %v4020
        %v4022 = vpop.f32.mrf.mxu0
        %4023 = vmatprep.mubr.bf16.mxu0 %v2861
        %4024 = vmatmul.mubr.bf16.gmra.mxu0 %v2813
        %v4025 = vpop.f32.mrf.mxu0
        %v4026 = vadd.f32 %v3865, %v4025
        %v4027 = vpop.f32.mrf.mxu0
        %v4028 = vpop.f32.mrf.mxu0
        %v4029 = vadd.f32 %v3868, %v4028
        %v4030 = vpop.f32.mrf.mxu0
        %4031 = vmatprep.mubr.bf16.mxu0 %v2862
        %4032 = vmatmul.mubr.bf16.gmra.mxu0 %v2814
        %v4033 = vpop.f32.mrf.mxu0
        %v4034 = vadd.f32 %v3873, %v4033
        %v4035 = vpop.f32.mrf.mxu0
        %v4036 = vpop.f32.mrf.mxu0
        %v4037 = vadd.f32 %v3876, %v4036
        %v4038 = vpop.f32.mrf.mxu0
        %4039 = vmatprep.mubr.bf16.mxu0 %v2863
        %4040 = vmatmul.mubr.bf16.gmra.mxu0 %v2815
        %v4041 = vpop.f32.mrf.mxu0
        %v4042 = vadd.f32 %v3881, %v4041
        %v4043 = vpop.f32.mrf.mxu0
        %v4044 = vpop.f32.mrf.mxu0
        %v4045 = vadd.f32 %v3884, %v4044
        %v4046 = vpop.f32.mrf.mxu0
        %4047 = vmatprep.mubr.bf16.mxu0 %v2864
        %4048 = vmatmul.mubr.bf16.gmra.mxu0 %v2816
        %v4049 = vpop.f32.mrf.mxu0
        %v4050 = vadd.f32 %v3889, %v4049
        %v4051 = vpop.f32.mrf.mxu0
        %v4052 = vpop.f32.mrf.mxu0
        %v4053 = vadd.f32 %v3892, %v4052
        %v4054 = vpop.f32.mrf.mxu0
        %4055 = vmatprep.mubr.bf16.mxu0 %v2865
        %4056 = vmatmul.mubr.bf16.gmra.mxu0 %v2817
        %v4057 = vpop.f32.mrf.mxu0
        %v4058 = vadd.f32 %v3897, %v4057
        %v4059 = vpop.f32.mrf.mxu0
        %v4060 = vpop.f32.mrf.mxu0
        %v4061 = vadd.f32 %v3900, %v4060
        %v4062 = vpop.f32.mrf.mxu0
        %4063 = vmatprep.mubr.bf16.mxu0 %v2866
        %4064 = vmatmul.mubr.bf16.gmra.mxu0 %v2818
        %v4065 = vpop.f32.mrf.mxu0
        %v4066 = vadd.f32 %v3905, %v4065
        %v4067 = vpop.f32.mrf.mxu0
        %v4068 = vpop.f32.mrf.mxu0
        %v4069 = vadd.f32 %v3908, %v4068
        %v4070 = vpop.f32.mrf.mxu0
        %4071 = vmatprep.mubr.bf16.mxu0 %v2867
        %4072 = vmatmul.mubr.bf16.gmra.mxu0 %v2819
        %v4073 = vpop.f32.mrf.mxu0
        %v4074 = vadd.f32 %v3913, %v4073
        %v4075 = vpop.f32.mrf.mxu0
        %v4076 = vpop.f32.mrf.mxu0
        %v4077 = vadd.f32 %v3916, %v4076
        %v4078 = vpop.f32.mrf.mxu0
        %4079 = vmatprep.mubr.bf16.mxu0 %v2868
        %4080 = vmatmul.mubr.bf16.gmra.mxu0 %v2820
        %v4081 = vpop.f32.mrf.mxu0
        %v4082 = vadd.f32 %v3921, %v4081
        %v4083 = vpop.f32.mrf.mxu0
        %v4084 = vpop.f32.mrf.mxu0
        %v4085 = vadd.f32 %v3924, %v4084
        %v4086 = vpop.f32.mrf.mxu0
        %4087 = vmatprep.mubr.bf16.mxu0 %v2869
        %4088 = vmatmul.mubr.bf16.gmra.mxu0 %v2821
        %v4089 = vpop.f32.mrf.mxu0
        %v4090 = vadd.f32 %v3929, %v4089
        %v4091 = vpop.f32.mrf.mxu0
        %v4092 = vpop.f32.mrf.mxu0
        %v4093 = vadd.f32 %v3932, %v4092
        %v4094 = vpop.f32.mrf.mxu0
        %4095 = vmatprep.mubr.bf16.mxu0 %v2870
        %4096 = vmatmul.mubr.bf16.gmra.mxu0 %v2822
        %v4097 = vpop.f32.mrf.mxu0
        %v4098 = vadd.f32 %v3937, %v4097
        %v4099 = vpop.f32.mrf.mxu0
        %v4100 = vpop.f32.mrf.mxu0
        %v4101 = vadd.f32 %v3940, %v4100
        %v4102 = vpop.f32.mrf.mxu0
        %4103 = vmatprep.mubr.bf16.mxu0 %v2871
        %4104 = vmatmul.mubr.bf16.gmra.mxu0 %v2823
        %v4105 = vpop.f32.mrf.mxu0
        %v4106 = vadd.f32 %v3945, %v4105
        %v4107 = vpop.f32.mrf.mxu0
        %v4108 = vpop.f32.mrf.mxu0
        %v4109 = vadd.f32 %v3948, %v4108
        %v4110 = vpop.f32.mrf.mxu0
        %4111 = vmatprep.mubr.bf16.mxu0 %v2872
        %4112 = vmatmul.mubr.bf16.gmra.mxu0 %v2824
        %v4113 = vpop.f32.mrf.mxu0
        %v4114 = vadd.f32 %v3953, %v4113
        %v4115 = vpop.f32.mrf.mxu0
        %v4116 = vpop.f32.mrf.mxu0
        %v4117 = vadd.f32 %v3956, %v4116
        %v4118 = vpop.f32.mrf.mxu0
        %4119 = vmatprep.mubr.bf16.mxu0 %v2873
        %4120 = vmatmul.mubr.bf16.gmra.mxu0 %v2825
        %v4121 = vpop.f32.mrf.mxu0
        %v4122 = vadd.f32 %v3961, %v4121
        %v4123 = vpop.f32.mrf.mxu0
        %v4124 = vpop.f32.mrf.mxu0
        %v4125 = vadd.f32 %v3964, %v4124
        %v4126 = vpop.f32.mrf.mxu0
        %4127 = vmatprep.mubr.bf16.mxu0 %v2874
        %4128 = vmatmul.mubr.bf16.gmra.mxu0 %v2826
        %v4129 = vpop.f32.mrf.mxu0
        %v4130 = vadd.f32 %v3969, %v4129
        %v4131 = vpop.f32.mrf.mxu0
        %v4132 = vpop.f32.mrf.mxu0
        %v4133 = vadd.f32 %v3972, %v4132
        %v4134 = vpop.f32.mrf.mxu0
        %4135 = vmatprep.mubr.bf16.mxu0 %v2875
        %4136 = vmatmul.mubr.bf16.gmra.mxu0 %v2827
        %v4137 = vpop.f32.mrf.mxu0
        %v4138 = vadd.f32 %v3977, %v4137
        %v4139 = vpop.f32.mrf.mxu0
        %v4140 = vpop.f32.mrf.mxu0
        %v4141 = vadd.f32 %v3980, %v4140
        %v4142 = vpop.f32.mrf.mxu0
        %4143 = vdwg.mxu0
        %4144 = vmatprep.subr.bf16.mxu0 0
        %4145 = vmatpush1.bf16.msra.mxu0 %v3427
        %4146 = vmatprep.subr.bf16.mxu0 0
        %4147 = vmatpush1.bf16.msra.mxu0 %v3426
        %4148 = vmatprep.subr.bf16.mxu0 0
        %4149 = vmatpush1.bf16.msra.mxu0 %v3425
        %4150 = vmatprep.subr.bf16.mxu0 0
        %4151 = vmatpush1.bf16.msra.mxu0 %v3424
        %4152 = vmatprep.subr.bf16.mxu0 0
        %4153 = vmatpush1.bf16.msra.mxu0 %v3423
        %4154 = vmatprep.subr.bf16.mxu0 0
        %4155 = vmatpush1.bf16.msra.mxu0 %v3422
        %4156 = vmatprep.subr.bf16.mxu0 0
        %4157 = vmatpush1.bf16.msra.mxu0 %v3421
        %4158 = vmatprep.subr.bf16.mxu0 0
        %4159 = vmatpush1.bf16.msra.mxu0 %v3420
        %4160 = vmatprep.subr.bf16.mxu0 0
        %4161 = vmatpush2.bf16.msra.mxu0 0
        %4162 = vmatprep.subr.bf16.mxu0 0
        %4163 = vmatpush2.bf16.msra.mxu0 0
        %4164 = vmatprep.subr.bf16.mxu0 0
        %4165 = vmatpush2.bf16.msra.mxu0 0
        %4166 = vmatprep.subr.bf16.mxu0 0
        %4167 = vmatpush2.bf16.msra.mxu0 0
        %4168 = vmatprep.subr.bf16.mxu0 0
        %4169 = vmatpush2.bf16.msra.mxu0 0
        %4170 = vmatprep.subr.bf16.mxu0 0
        %4171 = vmatpush2.bf16.msra.mxu0 0
        %4172 = vmatprep.subr.bf16.mxu0 0
        %4173 = vmatpush2.bf16.msra.mxu0 0
        %4174 = vmatprep.subr.bf16.mxu0 0
        %4175 = vmatpush2.bf16.msra.mxu0 0
        %4176 = vmatprep.mubr.bf16.mxu0 0
        %4177 = vmatmul.mubr.bf16.gmra.mxu0 %v2908
        %v4178 = vpop.f32.mrf.mxu0
        %v4179 = vadd.f32 %v4018, %v4178
        %v4180 = vpop.f32.mrf.mxu0
        %v4181 = vpop.f32.mrf.mxu0
        %v4182 = vadd.f32 %v4021, %v4181
        %v4183 = vpop.f32.mrf.mxu0
        %4184 = vmatprep.mubr.bf16.mxu0 0
        %4185 = vmatmul.mubr.bf16.gmra.mxu0 %v2909
        %v4186 = vpop.f32.mrf.mxu0
        %v4187 = vadd.f32 %v4026, %v4186
        %v4188 = vpop.f32.mrf.mxu0
        %v4189 = vpop.f32.mrf.mxu0
        %v4190 = vadd.f32 %v4029, %v4189
        %v4191 = vpop.f32.mrf.mxu0
        %4192 = vmatprep.mubr.bf16.mxu0 0
        %4193 = vmatmul.mubr.bf16.gmra.mxu0 %v2910
        %v4194 = vpop.f32.mrf.mxu0
        %v4195 = vadd.f32 %v4034, %v4194
        %v4196 = vpop.f32.mrf.mxu0
        %v4197 = vpop.f32.mrf.mxu0
        %v4198 = vadd.f32 %v4037, %v4197
        %v4199 = vpop.f32.mrf.mxu0
        %4200 = vmatprep.mubr.bf16.mxu0 0
        %4201 = vmatmul.mubr.bf16.gmra.mxu0 %v2911
        %v4202 = vpop.f32.mrf.mxu0
        %v4203 = vadd.f32 %v4042, %v4202
        %v4204 = vpop.f32.mrf.mxu0
        %v4205 = vpop.f32.mrf.mxu0
        %v4206 = vadd.f32 %v4045, %v4205
        %v4207 = vpop.f32.mrf.mxu0
        %4208 = vmatprep.mubr.bf16.mxu0 0
        %4209 = vmatmul.mubr.bf16.gmra.mxu0 %v2912
        %v4210 = vpop.f32.mrf.mxu0
        %v4211 = vadd.f32 %v4050, %v4210
        %v4212 = vpop.f32.mrf.mxu0
        %v4213 = vpop.f32.mrf.mxu0
        %v4214 = vadd.f32 %v4053, %v4213
        %v4215 = vpop.f32.mrf.mxu0
        %4216 = vmatprep.mubr.bf16.mxu0 0
        %4217 = vmatmul.mubr.bf16.gmra.mxu0 %v2913
        %v4218 = vpop.f32.mrf.mxu0
        %v4219 = vadd.f32 %v4058, %v4218
        %v4220 = vpop.f32.mrf.mxu0
        %v4221 = vpop.f32.mrf.mxu0
        %v4222 = vadd.f32 %v4061, %v4221
        %v4223 = vpop.f32.mrf.mxu0
        %4224 = vmatprep.mubr.bf16.mxu0 0
        %4225 = vmatmul.mubr.bf16.gmra.mxu0 %v2914
        %v4226 = vpop.f32.mrf.mxu0
        %v4227 = vadd.f32 %v4066, %v4226
        %v4228 = vpop.f32.mrf.mxu0
        %v4229 = vpop.f32.mrf.mxu0
        %v4230 = vadd.f32 %v4069, %v4229
        %v4231 = vpop.f32.mrf.mxu0
        %4232 = vmatprep.mubr.bf16.mxu0 0
        %4233 = vmatmul.mubr.bf16.gmra.mxu0 %v2915
        %v4234 = vpop.f32.mrf.mxu0
        %v4235 = vadd.f32 %v4074, %v4234
        %v4236 = vpop.f32.mrf.mxu0
        %v4237 = vpop.f32.mrf.mxu0
        %v4238 = vadd.f32 %v4077, %v4237
        %v4239 = vpop.f32.mrf.mxu0
        %4240 = vmatprep.mubr.bf16.mxu0 0
        %4241 = vmatmul.mubr.bf16.gmra.mxu0 %v2916
        %v4242 = vpop.f32.mrf.mxu0
        %v4243 = vadd.f32 %v4082, %v4242
        %v4244 = vpop.f32.mrf.mxu0
        %v4245 = vpop.f32.mrf.mxu0
        %v4246 = vadd.f32 %v4085, %v4245
        %v4247 = vpop.f32.mrf.mxu0
        %4248 = vmatprep.mubr.bf16.mxu0 0
        %4249 = vmatmul.mubr.bf16.gmra.mxu0 %v2917
        %v4250 = vpop.f32.mrf.mxu0
        %v4251 = vadd.f32 %v4090, %v4250
        %v4252 = vpop.f32.mrf.mxu0
        %v4253 = vpop.f32.mrf.mxu0
        %v4254 = vadd.f32 %v4093, %v4253
        %v4255 = vpop.f32.mrf.mxu0
        %4256 = vmatprep.mubr.bf16.mxu0 0
        %4257 = vmatmul.mubr.bf16.gmra.mxu0 %v2918
        %v4258 = vpop.f32.mrf.mxu0
        %v4259 = vadd.f32 %v4098, %v4258
        %v4260 = vpop.f32.mrf.mxu0
        %v4261 = vpop.f32.mrf.mxu0
        %v4262 = vadd.f32 %v4101, %v4261
        %v4263 = vpop.f32.mrf.mxu0
        %4264 = vmatprep.mubr.bf16.mxu0 0
        %4265 = vmatmul.mubr.bf16.gmra.mxu0 %v2919
        %v4266 = vpop.f32.mrf.mxu0
        %v4267 = vadd.f32 %v4106, %v4266
        %v4268 = vpop.f32.mrf.mxu0
        %v4269 = vpop.f32.mrf.mxu0
        %v4270 = vadd.f32 %v4109, %v4269
        %v4271 = vpop.f32.mrf.mxu0
        %4272 = vmatprep.mubr.bf16.mxu0 0
        %4273 = vmatmul.mubr.bf16.gmra.mxu0 %v2920
        %v4274 = vpop.f32.mrf.mxu0
        %v4275 = vadd.f32 %v4114, %v4274
        %v4276 = vpop.f32.mrf.mxu0
        %v4277 = vpop.f32.mrf.mxu0
        %v4278 = vadd.f32 %v4117, %v4277
        %v4279 = vpop.f32.mrf.mxu0
        %4280 = vmatprep.mubr.bf16.mxu0 0
        %4281 = vmatmul.mubr.bf16.gmra.mxu0 %v2921
        %v4282 = vpop.f32.mrf.mxu0
        %v4283 = vadd.f32 %v4122, %v4282
        %v4284 = vpop.f32.mrf.mxu0
        %v4285 = vpop.f32.mrf.mxu0
        %v4286 = vadd.f32 %v4125, %v4285
        %v4287 = vpop.f32.mrf.mxu0
        %4288 = vmatprep.mubr.bf16.mxu0 0
        %4289 = vmatmul.mubr.bf16.gmra.mxu0 %v2922
        %v4290 = vpop.f32.mrf.mxu0
        %v4291 = vadd.f32 %v4130, %v4290
        %v4292 = vpop.f32.mrf.mxu0
        %v4293 = vpop.f32.mrf.mxu0
        %v4294 = vadd.f32 %v4133, %v4293
        %v4295 = vpop.f32.mrf.mxu0
        %4296 = vmatprep.mubr.bf16.mxu0 0
        %4297 = vmatmul.mubr.bf16.gmra.mxu0 %v2923
        %v4298 = vpop.f32.mrf.mxu0
        %v4299 = vadd.f32 %v4138, %v4298
        %v4300 = vpop.f32.mrf.mxu0
        %v4301 = vpop.f32.mrf.mxu0
        %v4302 = vadd.f32 %v4141, %v4301
        %v4303 = vpop.f32.mrf.mxu0
        %4304 = vdwg.mxu0
        %v4305 = vld [vmem:[%s5] sm:$0x1]
        %v4307 = vlaneseq
        %v4308 = vshrl.u32 %v4307, 7
        %v4309 = vsub.s32 0, %v4308
        %v4310 = vrot.slane %v4305, %v4309
        %v4312 = vmul.f32 %v4179, %v4310
        %v4313 = vmul.f32 %v4182, %v4310
        %v4314 = vmul.f32 %v4187, %v4310
        %v4315 = vmul.f32 %v4190, %v4310
        %v4316 = vmul.f32 %v4195, %v4310
        %v4317 = vmul.f32 %v4198, %v4310
        %v4318 = vmul.f32 %v4203, %v4310
        %v4319 = vmul.f32 %v4206, %v4310
        %v4320 = vmul.f32 %v4211, %v4310
        %v4321 = vmul.f32 %v4214, %v4310
        %v4322 = vmul.f32 %v4219, %v4310
        %v4323 = vmul.f32 %v4222, %v4310
        %v4324 = vmul.f32 %v4227, %v4310
        %v4325 = vmul.f32 %v4230, %v4310
        %v4326 = vmul.f32 %v4235, %v4310
        %v4327 = vmul.f32 %v4238, %v4310
        %v4328 = vmul.f32 %v4243, %v4310
        %v4329 = vmul.f32 %v4246, %v4310
        %v4330 = vmul.f32 %v4251, %v4310
        %v4331 = vmul.f32 %v4254, %v4310
        %v4332 = vmul.f32 %v4259, %v4310
        %v4333 = vmul.f32 %v4262, %v4310
        %v4334 = vmul.f32 %v4267, %v4310
        %v4335 = vmul.f32 %v4270, %v4310
        %v4336 = vmul.f32 %v4275, %v4310
        %v4337 = vmul.f32 %v4278, %v4310
        %v4338 = vmul.f32 %v4283, %v4310
        %v4339 = vmul.f32 %v4286, %v4310
        %v4340 = vmul.f32 %v4291, %v4310
        %v4341 = vmul.f32 %v4294, %v4310
        %v4342 = vmul.f32 %v4299, %v4310
        %v4343 = vmul.f32 %v4302, %v4310
        %v4344 = vld [vmem:[%s6] sm:$0x1]
        %v4346 = vlaneseq
        %v4347 = vshrl.u32 %v4346, 7
        %v4348 = vsub.s32 0, %v4347
        %v4349 = vrot.slane %v4344, %v4348
        %v4351 = vadd.f32 %v4312, %v4349
        %v4352 = vadd.f32 %v4313, %v4349
        %v4353 = vadd.f32 %v4314, %v4349
        %v4354 = vadd.f32 %v4315, %v4349
        %v4355 = vadd.f32 %v4316, %v4349
        %v4356 = vadd.f32 %v4317, %v4349
        %v4357 = vadd.f32 %v4318, %v4349
        %v4358 = vadd.f32 %v4319, %v4349
        %v4359 = vadd.f32 %v4320, %v4349
        %v4360 = vadd.f32 %v4321, %v4349
        %v4361 = vadd.f32 %v4322, %v4349
        %v4362 = vadd.f32 %v4323, %v4349
        %v4363 = vadd.f32 %v4324, %v4349
        %v4364 = vadd.f32 %v4325, %v4349
        %v4365 = vadd.f32 %v4326, %v4349
        %v4366 = vadd.f32 %v4327, %v4349
        %v4367 = vadd.f32 %v4328, %v4349
        %v4368 = vadd.f32 %v4329, %v4349
        %v4369 = vadd.f32 %v4330, %v4349
        %v4370 = vadd.f32 %v4331, %v4349
        %v4371 = vadd.f32 %v4332, %v4349
        %v4372 = vadd.f32 %v4333, %v4349
        %v4373 = vadd.f32 %v4334, %v4349
        %v4374 = vadd.f32 %v4335, %v4349
        %v4375 = vadd.f32 %v4336, %v4349
        %v4376 = vadd.f32 %v4337, %v4349
        %v4377 = vadd.f32 %v4338, %v4349
        %v4378 = vadd.f32 %v4339, %v4349
        %v4379 = vadd.f32 %v4340, %v4349
        %v4380 = vadd.f32 %v4341, %v4349
        %v4381 = vadd.f32 %v4342, %v4349
        %v4382 = vadd.f32 %v4343, %v4349
        %v4383 = vadd.f32 %v4351, %v469
        %v4384 = vadd.f32 %v4352, %v470
        %v4385 = vadd.f32 %v4353, %v471
        %v4386 = vadd.f32 %v4354, %v472
        %v4387 = vadd.f32 %v4355, %v473
        %v4388 = vadd.f32 %v4356, %v474
        %v4389 = vadd.f32 %v4357, %v475
        %v4390 = vadd.f32 %v4358, %v476
        %v4391 = vadd.f32 %v4359, %v477
        %v4392 = vadd.f32 %v4360, %v478
        %v4393 = vadd.f32 %v4361, %v479
        %v4394 = vadd.f32 %v4362, %v480
        %v4395 = vadd.f32 %v4363, %v481
        %v4396 = vadd.f32 %v4364, %v482
        %v4397 = vadd.f32 %v4365, %v483
        %v4398 = vadd.f32 %v4366, %v484
        %v4399 = vadd.f32 %v4367, %v485
        %v4400 = vadd.f32 %v4368, %v486
        %v4401 = vadd.f32 %v4369, %v487
        %v4402 = vadd.f32 %v4370, %v488
        %v4403 = vadd.f32 %v4371, %v489
        %v4404 = vadd.f32 %v4372, %v490
        %v4405 = vadd.f32 %v4373, %v491
        %v4406 = vadd.f32 %v4374, %v492
        %v4407 = vadd.f32 %v4375, %v493
        %v4408 = vadd.f32 %v4376, %v494
        %v4409 = vadd.f32 %v4377, %v495
        %v4410 = vadd.f32 %v4378, %v496
        %v4411 = vadd.f32 %v4379, %v497
        %v4412 = vadd.f32 %v4380, %v498
        %v4413 = vadd.f32 %v4381, %v499
        %v4414 = vadd.f32 %v4382, %v500
        %v4415 = vmax.f32 %v4383, 0.0
        %v4416 = vmax.f32 %v4384, 0.0
        %v4417 = vmax.f32 %v4385, 0.0
        %v4418 = vmax.f32 %v4386, 0.0
        %v4419 = vmax.f32 %v4387, 0.0
        %v4420 = vmax.f32 %v4388, 0.0
        %v4421 = vmax.f32 %v4389, 0.0
        %v4422 = vmax.f32 %v4390, 0.0
        %v4423 = vmax.f32 %v4391, 0.0
        %v4424 = vmax.f32 %v4392, 0.0
        %v4425 = vmax.f32 %v4393, 0.0
        %v4426 = vmax.f32 %v4394, 0.0
        %v4427 = vmax.f32 %v4395, 0.0
        %v4428 = vmax.f32 %v4396, 0.0
        %v4429 = vmax.f32 %v4397, 0.0
        %v4430 = vmax.f32 %v4398, 0.0
        %v4431 = vmax.f32 %v4399, 0.0
        %v4432 = vmax.f32 %v4400, 0.0
        %v4433 = vmax.f32 %v4401, 0.0
        %v4434 = vmax.f32 %v4402, 0.0
        %v4435 = vmax.f32 %v4403, 0.0
        %v4436 = vmax.f32 %v4404, 0.0
        %v4437 = vmax.f32 %v4405, 0.0
        %v4438 = vmax.f32 %v4406, 0.0
        %v4439 = vmax.f32 %v4407, 0.0
        %v4440 = vmax.f32 %v4408, 0.0
        %v4441 = vmax.f32 %v4409, 0.0
        %v4442 = vmax.f32 %v4410, 0.0
        %v4443 = vmax.f32 %v4411, 0.0
        %v4444 = vmax.f32 %v4412, 0.0
        %v4445 = vmax.f32 %v4413, 0.0
        %v4446 = vmax.f32 %v4414, 0.0
        %4447 = vst [vmem:[%s286] sm:$0xff] %v4415
        %4448 = vst [vmem:[%s286 + $0x8] sm:$0xff] %v4416
        %4449 = vst [vmem:[%s286 + $0x10] sm:$0xff] %v4417
        %4450 = vst [vmem:[%s286 + $0x18] sm:$0xff] %v4418
        %4451 = vst [vmem:[%s286 + $0x20] sm:$0xff] %v4419
        %4452 = vst [vmem:[%s286 + $0x28] sm:$0xff] %v4420
        %4453 = vst [vmem:[%s286 + $0x30] sm:$0xff] %v4421
        %4454 = vst [vmem:[%s286 + $0x38] sm:$0xff] %v4422
        %4455 = vst [vmem:[%s286 + $0x40] sm:$0xff] %v4423
        %4456 = vst [vmem:[%s286 + $0x48] sm:$0xff] %v4424
        %4457 = vst [vmem:[%s286 + $0x50] sm:$0xff] %v4425
        %4458 = vst [vmem:[%s286 + $0x58] sm:$0xff] %v4426
        %4459 = vst [vmem:[%s286 + $0x60] sm:$0xff] %v4427
        %4460 = vst [vmem:[%s286 + $0x68] sm:$0xff] %v4428
        %4461 = vst [vmem:[%s286 + $0x70] sm:$0xff] %v4429
        %4462 = vst [vmem:[%s286 + $0x78] sm:$0xff] %v4430
        %4463 = vst [vmem:[%s286 + $0x80] sm:$0xff] %v4431
        %4464 = vst [vmem:[%s286 + $0x88] sm:$0xff] %v4432
        %4465 = vst [vmem:[%s286 + $0x90] sm:$0xff] %v4433
        %4466 = vst [vmem:[%s286 + $0x98] sm:$0xff] %v4434
        %4467 = vst [vmem:[%s286 + $0xa0] sm:$0xff] %v4435
        %4468 = vst [vmem:[%s286 + $0xa8] sm:$0xff] %v4436
        %4469 = vst [vmem:[%s286 + $0xb0] sm:$0xff] %v4437
        %4470 = vst [vmem:[%s286 + $0xb8] sm:$0xff] %v4438
        %4471 = vst [vmem:[%s286 + $0xc0] sm:$0xff] %v4439
        %4472 = vst [vmem:[%s286 + $0xc8] sm:$0xff] %v4440
        %4473 = vst [vmem:[%s286 + $0xd0] sm:$0xff] %v4441
        %4474 = vst [vmem:[%s286 + $0xd8] sm:$0xff] %v4442
        %4475 = vst [vmem:[%s286 + $0xe0] sm:$0xff] %v4443
        %4476 = vst [vmem:[%s286 + $0xe8] sm:$0xff] %v4444
        %4477 = vst [vmem:[%s286 + $0xf0] sm:$0xff] %v4445
        %4478 = vst [vmem:[%s286 + $0xf8] sm:$0xff] %v4446
        %s4479 = sand.u32 %s182, 1
        %s4480 = scalar_lea.sflag [#allocation6], %s4479
        %s4481 = sand.u32 %s182, 1
        %s4482 = smul.addr %s4481, 256
        %s4483 = scalar_lea.vmem [#allocation7], %s4482
        // Predicated region
        $region53: #{_lambda_.1} parent=47 // pred_check
          %p4484 = pneg %p192
        $region54: #{_lambda_.1} parent=47 // pred_check_branch
          %4486 = sbr.rel (%p4484) target = $region56
        $region55: #{_lambda_.1} parent=47 // pred_region
          %s4488 = ssub.s32 4096, 4096
          %4489 = vsyncadd %s4480, %s4488
          %s4490 = smul.addr %s22, 32
          %s4491 = smul.addr %s4490, 128
          %s4492 = scalar_lea.hbm %s7, %s4491
          %s4493 = sshll.u32 %s4483, 4
          %s4494 = int_to_ptr.vmem [resolvable:$true] %s4493
          %4499 = dma.vmem_to_hbm [thread:$0]  %s4494, 4096, %s4492, %s4480, 128, 128, 8
        $region56: #{_lambda_.1} parent=47 // pred_fallthru
          _
      $region48: #{_lambda_.1} parent=5 // pred_fallthru
        _
      %p4500 = scmp.le.s32.totalorder 2, %s17
      // Predicated region
      $region57: #{_lambda_.1} parent=5 // pred_check
        %p4501 = pneg %p4500
      $region58: #{_lambda_.1} parent=5 // pred_check_branch
        %4503 = sbr.rel (%p4501) target = $region60
      $region59: #{_lambda_.1} parent=5 // pred_region
        %s4504 = ssub.s32 %s17, 2
        // Predicated region
        $region61: #{_lambda_.1} parent=59 // pred_check
          %p4505 = pneg %p198
        $region62: #{_lambda_.1} parent=59 // pred_check_branch
          %4507 = sbr.rel (%p4505) target = $region64
        $region63: #{_lambda_.1} parent=59 // pred_region
          %s4508 = sand.u32 %s183, 1
          %s4509 = scalar_lea.sflag [#allocation6], %s4508
          %s4510 = sand.u32 %s183, 1
          %s4511 = smul.addr %s4510, 256
          %s4512 = scalar_lea.vmem [#allocation7], %s4511
          %4513 = dma.done %s4509, 4096
        $region64: #{_lambda_.1} parent=59 // pred_fallthru
          _
      $region60: #{_lambda_.1} parent=5 // pred_fallthru
        _
    $region6: #{_lambda_.1} parent=1 // loop_footer
      %s21 = sadd.s32 1, %s17
    $region7: #{_lambda_.1} parent=1 // loop_footer_branch
      %16 = sbr.rel target = $region3
    $region8: #{_lambda_.1} parent=1 // loop_exit
      _
    %4514 = vsyncpa [#allocation5], 1
    %s4515 = scalar_lea.sflag [#allocation5], 1
    %4516 = vsyncpa %s4515, 1
    %4517 = vsyncpa [#allocation6], 1
    %s4518 = scalar_lea.sflag [#allocation6], 1
    %4519 = vsyncpa %s4518, 1

</llo_original>
